<compile_context>
chip_gen: v6e
topology: v6e:2x2x1
jax: 0.10.0
libtpu: 0.0.40
codegen_flags: <defaults>
</compile_context>

<pallas_src>
import functools

import jax
import jax.numpy as jnp
import numpy as np
from jax.experimental import pallas as pl
from jax.experimental.pallas import tpu as pltpu

N_FEATURES = 90
N_HIDDEN = 256
N_OUT = 121
F_PAD = 128    # x / Wih1 contraction dim padded to lane width
OUT_PAD = 128  # linear-head output padded to full lanes (unmasked stores)


def _round_up(a, b):
    return (a + b - 1) // b * b


def _lstm_pred_kernel(x_ref, wih1_ref, whh1_ref, b1_ref,
                      w2_ref, b2_ref, wlin_ref, blin_ref,
                      out_ref,
                      h_ref, c_ref):
    """One grid step == one (batch tile, TU-timestep block).

    Grid = (batch_tiles, time_blocks); h_ref/c_ref persist across the inner
    (time) axis and are reset at the start of each batch tile's time sweep.
    """
    H = N_HIDDEN
    tu = x_ref.shape[0]  # timesteps per block (static)

    @pl.when(pl.program_id(1) == 0)
    def _():
        h_ref[...] = jnp.zeros_like(h_ref)
        c_ref[...] = jnp.zeros_like(c_ref)

    # Hoist weight / state loads out of the unrolled time loop.
    h = h_ref[...]            # (TILE_B, H)
    c = c_ref[...]            # (TILE_B, H)
    wih1 = wih1_ref[...]      # (F_PAD, 4H)
    whh1 = whh1_ref[...]      # (H, 4H)
    w2 = w2_ref[...]          # (H, 4H)  == Wih2^T + Whh2^T (exact fusion)
    wlin = wlin_ref[...]      # (H, OUT_PAD)
    b1 = b1_ref[...]
    b2 = b2_ref[...]
    blin = blin_ref[...]

    for u in range(tu):       # statically unrolled timesteps within the block
        x_t = x_ref[u]        # (TILE_B, F_PAD)

        # ---- lstm1: gates = x @ Wih1 + h @ Whh1 + (b_ih + b_hh) ----
        gates1 = (jnp.dot(x_t, wih1, preferred_element_type=jnp.float32)
                  + jnp.dot(h, whh1, preferred_element_type=jnp.float32)
                  + b1)
        i1 = jax.nn.sigmoid(gates1[:, 0 * H:1 * H])
        f1 = jax.nn.sigmoid(gates1[:, 1 * H:2 * H])
        g1 = jnp.tanh(gates1[:, 2 * H:3 * H])
        o1 = jax.nn.sigmoid(gates1[:, 3 * H:4 * H])
        c = f1 * c + i1 * g1
        h = o1 * jnp.tanh(c)

        # ---- lstm2: the original feeds lstm1's (h, c) as lstm2's state, so
        # both matmuls share the same LHS and the fused W2 is exact. ----
        gates2 = jnp.dot(h, w2, preferred_element_type=jnp.float32) + b2
        i2 = jax.nn.sigmoid(gates2[:, 0 * H:1 * H])
        f2 = jax.nn.sigmoid(gates2[:, 1 * H:2 * H])
        g2 = jnp.tanh(gates2[:, 2 * H:3 * H])
        o2 = jax.nn.sigmoid(gates2[:, 3 * H:4 * H])
        c2 = f2 * c + i2 * g2
        h2 = o2 * jnp.tanh(c2)

        # ---- linear head (output lanes padded to 128) ----
        out_ref[u] = jnp.dot(h2, wlin, preferred_element_type=jnp.float32) + blin

    h_ref[...] = h
    c_ref[...] = c


@functools.partial(jax.jit, static_argnames=("tile_b", "tu"))
def lstm_prediction_forward(x, params, tile_b=256, tu=4):
    """x: (B, T*N_FEATURES) float32  ->  (B, T*N_OUT) float32."""
    wih1, whh1, b1, wih2, whh2, b2, wlin, blin = params
    B = x.shape[0]
    T = x.shape[1] // N_FEATURES
    H = N_HIDDEN

    tile_b = min(tile_b, _round_up(B, 8))    # batch tile (multiple of 8)
    b_pad = _round_up(B, tile_b)
    tu = max(1, min(tu, T))                  # timesteps per grid step
    t_pad = _round_up(T, tu)

    # (B, T*F) -> zero-padded time-major (T_pad, B_pad, F_PAD).  Zero padding
    # of features/batch/time is exact: padded rows/steps are sliced off below.
    x_btf = x.reshape(B, T, N_FEATURES)
    x_btf = jnp.pad(x_btf, ((0, b_pad - B), (0, t_pad - T),
                            (0, F_PAD - N_FEATURES)))
    x_tbf = x_btf.transpose(1, 0, 2)

    # Weight prep (all exact): pad Wih1's K dim, fuse lstm2 weights, pad head.
    wih1_p = jnp.pad(wih1, ((0, F_PAD - N_FEATURES), (0, 0)))
    w2 = wih2 + whh2
    wlin_p = jnp.pad(wlin, ((0, 0), (0, OUT_PAD - N_OUT)))
    blin_p = jnp.pad(blin, ((0, 0), (0, OUT_PAD - N_OUT)))

    n_batch_tiles = b_pad // tile_b
    n_time_blocks = t_pad // tu

    grid_spec = pltpu.PrefetchScalarGridSpec(
        num_scalar_prefetch=0,
        grid=(n_batch_tiles, n_time_blocks),   # batch outer, time inner
        in_specs=[
            pl.BlockSpec((tu, tile_b, F_PAD), lambda b, t: (t, b, 0)),   # x
            pl.BlockSpec((F_PAD, 4 * H), lambda b, t: (0, 0)),           # Wih1^T
            pl.BlockSpec((H, 4 * H), lambda b, t: (0, 0)),               # Whh1^T
            pl.BlockSpec((1, 4 * H), lambda b, t: (0, 0)),               # b1
            pl.BlockSpec((H, 4 * H), lambda b, t: (0, 0)),               # W2 (fused)
            pl.BlockSpec((1, 4 * H), lambda b, t: (0, 0)),               # b2
            pl.BlockSpec((H, OUT_PAD), lambda b, t: (0, 0)),             # Wlin^T
            pl.BlockSpec((1, OUT_PAD), lambda b, t: (0, 0)),             # blin
        ],
        out_specs=pl.BlockSpec((tu, tile_b, OUT_PAD), lambda b, t: (t, b, 0)),
        scratch_shapes=[pltpu.VMEM((tile_b, H), jnp.float32),   # h_t
                        pltpu.VMEM((tile_b, H), jnp.float32)],  # c_t
    )

    out_tbo = pl.pallas_call(
        _lstm_pred_kernel,
        out_shape=jax.ShapeDtypeStruct((t_pad, b_pad, OUT_PAD), jnp.float32),
        grid_spec=grid_spec,
        compiler_params=pltpu.CompilerParams(
            # batch tiles are independent -> parallel (v7x dual-TC sharding);
            # time carries the recurrent state -> arbitrary.
            dimension_semantics=("parallel", "arbitrary"),
            vmem_limit_bytes=64 * 1024 * 1024),
    )(x_tbf, wih1_p, whh1, b1, w2, b2, wlin_p, blin_p)

    # (T_pad, B_pad, OUT_PAD) -> (B, T*OUT)  == torch.cat(outputs, dim=1)
    out = out_tbo[:T, :B, :N_OUT].transpose(1, 0, 2).reshape(B, T * N_OUT)
    return out

    # TODO(synk): the `future` autoregressive loop is not implemented; with the
    # original module it would feed a 121-dim output into a 90-dim LSTMCell and
    # error anyway, so only future=0 (the default) is supported.


def init_params(key):
    """Deterministic init matching the module's parameter shapes.

    PyTorch LSTMCell/Linear use U(-1/sqrt(fan), 1/sqrt(fan)); weights are
    stored pre-transposed for `x @ W` inside the kernel.
    """
    H = N_HIDDEN
    ks = jax.random.split(key, 10)
    s = 1.0 / np.sqrt(H)
    u = lambda k, shape: jax.random.uniform(k, shape, jnp.float32, -s, s)
    wih1 = u(ks[0], (N_FEATURES, 4 * H))                  # (F, 4H)
    whh1 = u(ks[1], (H, 4 * H))                           # (H, 4H)
    b1 = u(ks[2], (1, 4 * H)) + u(ks[3], (1, 4 * H))      # b_ih + b_hh
    wih2 = u(ks[4], (H, 4 * H))
    whh2 = u(ks[5], (H, 4 * H))
    b2 = u(ks[6], (1, 4 * H)) + u(ks[7], (1, 4 * H))
    wlin = u(ks[8], (H, N_OUT))
    blin = u(ks[9], (1, N_OUT))
    return (wih1, whh1, b1, wih2, whh2, b2, wlin, blin)


def reference_forward(x, params):
    """Pure-JAX reference replicating the PyTorch forward (for verification)."""
    wih1, whh1, b1, wih2, whh2, b2, wlin, blin = params
    B = x.shape[0]
    T = x.shape[1] // N_FEATURES
    H = N_HIDDEN
    h = jnp.zeros((B, H), jnp.float32)
    c = jnp.zeros((B, H), jnp.float32)
    outs = []
    for t in range(T):
        x_t = x[:, t * N_FEATURES:(t + 1) * N_FEATURES]
        g1 = x_t @ wih1 + h @ whh1 + b1
        i1, f1, gg1, o1 = (g1[:, 0:H], g1[:, H:2 * H],
                           g1[:, 2 * H:3 * H], g1[:, 3 * H:4 * H])
        c = jax.nn.sigmoid(f1) * c + jax.nn.sigmoid(i1) * jnp.tanh(gg1)
        h = jax.nn.sigmoid(o1) * jnp.tanh(c)
        g2 = h @ wih2 + h @ whh2 + b2
        i2, f2, gg2, o2 = (g2[:, 0:H], g2[:, H:2 * H],
                           g2[:, 2 * H:3 * H], g2[:, 3 * H:4 * H])
        c2 = jax.nn.sigmoid(f2) * c + jax.nn.sigmoid(i2) * jnp.tanh(gg2)
        h2 = jax.nn.sigmoid(o2) * jnp.tanh(c2)
        outs.append(h2 @ wlin + blin)
    return jnp.concatenate(outs, axis=1)


if __name__ == "__main__":
    key = jax.random.PRNGKey(0)
    k_param, k_x = jax.random.split(key)

    # Small example: B=12 (forces batch padding to 16 with tile_b=8, 2 batch
    # tiles), T=6 timesteps (forces time padding to 8 with tu=4, 2 time blocks)
    # so every padding/tiling path in the kernel is exercised.
    B, T = 12, 6
    params = init_params(k_param)
    x = jax.random.normal(k_x, (B, T * N_FEATURES), jnp.float32)  # (12, 540)

    out = lstm_prediction_forward(x, params, tile_b=8, tu=4)
    out = jax.block_until_ready(out)

    ref = reference_forward(x, params)
    np.testing.assert_allclose(np.asarray(out), np.asarray(ref),
                               rtol=1e-4, atol=1e-4)
    assert out.shape == (B, T * N_OUT)

    print("KERNEL_OK")
</pallas_src>

<mosaic_0001>
module attributes {stable_mosaic.version = 11 : i64} {
  func.func @_lstm_pred_kernel(%arg0: i32, %arg1: i32, %arg2: memref<4x8x128xf32, #tpu.memory_space<vmem>>, %arg3: memref<128x1024xf32, #tpu.memory_space<vmem>>, %arg4: memref<256x1024xf32, #tpu.memory_space<vmem>>, %arg5: memref<1x1024xf32, #tpu.memory_space<vmem>>, %arg6: memref<256x1024xf32, #tpu.memory_space<vmem>>, %arg7: memref<1x1024xf32, #tpu.memory_space<vmem>>, %arg8: memref<256x128xf32, #tpu.memory_space<vmem>>, %arg9: memref<1x128xf32, #tpu.memory_space<vmem>>, %arg10: memref<4x8x128xf32, #tpu.memory_space<vmem>>, %arg11: memref<8x256xf32, #tpu.memory_space<vmem>>, %arg12: memref<8x256xf32, #tpu.memory_space<vmem>>) attributes {dimension_semantics = [#tpu.dimension_semantics<parallel>, #tpu.dimension_semantics<arbitrary>], iteration_bounds = array<i64: 2, 2>, scalar_prefetch = 0 : i64, scratch_operands = 2 : i64, tpu.core_type = #tpu.core_type<tc>, window_params = [{transform_indices = @transform_0, window_bounds = array<i64: 4, 8, 128>}, {pipeline_mode = #tpu.pipeline_mode<synchronous>, transform_indices = @transform_1, window_bounds = array<i64: 128, 1024>}, {pipeline_mode = #tpu.pipeline_mode<synchronous>, transform_indices = @transform_2, window_bounds = array<i64: 256, 1024>}, {pipeline_mode = #tpu.pipeline_mode<synchronous>, transform_indices = @transform_3, window_bounds = array<i64: 1, 1024>}, {pipeline_mode = #tpu.pipeline_mode<synchronous>, transform_indices = @transform_4, window_bounds = array<i64: 256, 1024>}, {pipeline_mode = #tpu.pipeline_mode<synchronous>, transform_indices = @transform_5, window_bounds = array<i64: 1, 1024>}, {pipeline_mode = #tpu.pipeline_mode<synchronous>, transform_indices = @transform_6, window_bounds = array<i64: 256, 128>}, {pipeline_mode = #tpu.pipeline_mode<synchronous>, transform_indices = @transform_7, window_bounds = array<i64: 1, 128>}, {transform_indices = @transform_8, window_bounds = array<i64: 4, 8, 128>}]} {
    %c0_i32 = arith.constant 0 : i32
    %0 = arith.cmpi eq, %arg1, %c0_i32 : i32
    %1 = arith.extui %0 : i1 to i32
    %c0_i32_0 = arith.constant 0 : i32
    %2 = arith.cmpi ne, %1, %c0_i32_0 : i32
    scf.if %2 {
      %cst_82 = arith.constant 0.000000e+00 : f32
      %278 = vector.broadcast %cst_82 : f32 to vector<8x256xf32>
      %c0_83 = arith.constant 0 : index
      %c0_84 = arith.constant 0 : index
      %279 = vector.load %arg11[%c0_83, %c0_84] : memref<8x256xf32, #tpu.memory_space<vmem>>, vector<8x256xf32>
      tpu.vector_store %arg11[%c0_83, %c0_84], %278 {strides = array<i32>} : memref<8x256xf32, #tpu.memory_space<vmem>>, vector<8x256xf32>,
      %cst_85 = arith.constant 0.000000e+00 : f32
      %280 = vector.broadcast %cst_85 : f32 to vector<8x256xf32>
      %c0_86 = arith.constant 0 : index
      %c0_87 = arith.constant 0 : index
      %281 = vector.load %arg12[%c0_86, %c0_87] : memref<8x256xf32, #tpu.memory_space<vmem>>, vector<8x256xf32>
      tpu.vector_store %arg12[%c0_86, %c0_87], %280 {strides = array<i32>} : memref<8x256xf32, #tpu.memory_space<vmem>>, vector<8x256xf32>,
    } else {
    }
    %c0 = arith.constant 0 : index
    %c0_1 = arith.constant 0 : index
    %3 = vector.load %arg11[%c0, %c0_1] : memref<8x256xf32, #tpu.memory_space<vmem>>, vector<8x256xf32>
    %c0_2 = arith.constant 0 : index
    %c0_3 = arith.constant 0 : index
    %4 = vector.load %arg12[%c0_2, %c0_3] : memref<8x256xf32, #tpu.memory_space<vmem>>, vector<8x256xf32>
    %c0_4 = arith.constant 0 : index
    %c0_5 = arith.constant 0 : index
    %5 = vector.load %arg3[%c0_4, %c0_5] : memref<128x1024xf32, #tpu.memory_space<vmem>>, vector<128x1024xf32>
    %c0_6 = arith.constant 0 : index
    %c0_7 = arith.constant 0 : index
    %6 = vector.load %arg4[%c0_6, %c0_7] : memref<256x1024xf32, #tpu.memory_space<vmem>>, vector<256x1024xf32>
    %c0_8 = arith.constant 0 : index
    %c0_9 = arith.constant 0 : index
    %7 = vector.load %arg6[%c0_8, %c0_9] : memref<256x1024xf32, #tpu.memory_space<vmem>>, vector<256x1024xf32>
    %c0_10 = arith.constant 0 : index
    %c0_11 = arith.constant 0 : index
    %8 = vector.load %arg8[%c0_10, %c0_11] : memref<256x128xf32, #tpu.memory_space<vmem>>, vector<256x128xf32>
    %c0_12 = arith.constant 0 : index
    %c0_13 = arith.constant 0 : index
    %9 = vector.load %arg5[%c0_12, %c0_13] : memref<1x1024xf32, #tpu.memory_space<vmem>>, vector<1x1024xf32>
    %c0_14 = arith.constant 0 : index
    %c0_15 = arith.constant 0 : index
    %10 = vector.load %arg7[%c0_14, %c0_15] : memref<1x1024xf32, #tpu.memory_space<vmem>>, vector<1x1024xf32>
    %c0_16 = arith.constant 0 : index
    %c0_17 = arith.constant 0 : index
    %11 = vector.load %arg9[%c0_16, %c0_17] : memref<1x128xf32, #tpu.memory_space<vmem>>, vector<1x128xf32>
    %c0_18 = arith.constant 0 : index
    %c0_19 = arith.constant 0 : index
    %c0_20 = arith.constant 0 : index
    %12 = vector.load %arg2[%c0_18, %c0_19, %c0_20] : memref<4x8x128xf32, #tpu.memory_space<vmem>>, vector<1x8x128xf32>
    %13 = vector.shape_cast %12 : vector<1x8x128xf32> to vector<8x128xf32>
    %cst = arith.constant dense<0.000000e+00> : vector<8x1024xf32>
    %14 = tpu.matmul %13, %5, %cst {dimension_numbers = #tpu.dot_dimension_numbers<[1], [0], [0], [1], [0, 0, 1, 1], [], []>} : vector<8x128xf32>, vector<128x1024xf32>, vector<8x1024xf32> -> vector<8x1024xf32>
    %cst_21 = arith.constant dense<0.000000e+00> : vector<8x1024xf32>
    %15 = tpu.matmul %3, %6, %cst_21 {dimension_numbers = #tpu.dot_dimension_numbers<[1], [0], [0], [1], [0, 0, 1, 1], [], []>} : vector<8x256xf32>, vector<256x1024xf32>, vector<8x1024xf32> -> vector<8x1024xf32>
    %16 = arith.addf %14, %15 : vector<8x1024xf32>
    %17 = vector.broadcast %9 : vector<1x1024xf32> to vector<8x1024xf32>
    %18 = arith.addf %16, %17 : vector<8x1024xf32>
    %19 = vector.extract_strided_slice %18 {offsets = [0, 0], sizes = [8, 256], strides = [1, 1]} : vector<8x1024xf32> to vector<8x256xf32>
    %20 = arith.negf %19 : vector<8x256xf32>
    %21 = math.exp %20 : vector<8x256xf32>
    %cst_22 = arith.constant 1.000000e+00 : f32
    %22 = vector.broadcast %cst_22 : f32 to vector<8x256xf32>
    %23 = arith.addf %22, %21 : vector<8x256xf32>
    %24 = arith.divf %22, %23 : vector<8x256xf32>
    %25 = vector.extract_strided_slice %18 {offsets = [0, 256], sizes = [8, 256], strides = [1, 1]} : vector<8x1024xf32> to vector<8x256xf32>
    %26 = arith.negf %25 : vector<8x256xf32>
    %27 = math.exp %26 : vector<8x256xf32>
    %cst_23 = arith.constant 1.000000e+00 : f32
    %28 = vector.broadcast %cst_23 : f32 to vector<8x256xf32>
    %29 = arith.addf %28, %27 : vector<8x256xf32>
    %30 = arith.divf %28, %29 : vector<8x256xf32>
    %31 = vector.extract_strided_slice %18 {offsets = [0, 512], sizes = [8, 256], strides = [1, 1]} : vector<8x1024xf32> to vector<8x256xf32>
    %32 = math.tanh %31 : vector<8x256xf32>
    %33 = vector.extract_strided_slice %18 {offsets = [0, 768], sizes = [8, 256], strides = [1, 1]} : vector<8x1024xf32> to vector<8x256xf32>
    %34 = arith.negf %33 : vector<8x256xf32>
    %35 = math.exp %34 : vector<8x256xf32>
    %cst_24 = arith.constant 1.000000e+00 : f32
    %36 = vector.broadcast %cst_24 : f32 to vector<8x256xf32>
    %37 = arith.addf %36, %35 : vector<8x256xf32>
    %38 = arith.divf %36, %37 : vector<8x256xf32>
    %39 = arith.mulf %30, %4 : vector<8x256xf32>
    %40 = arith.mulf %24, %32 : vector<8x256xf32>
    %41 = arith.addf %39, %40 : vector<8x256xf32>
    %42 = math.tanh %41 : vector<8x256xf32>
    %43 = arith.mulf %38, %42 : vector<8x256xf32>
    %cst_25 = arith.constant dense<0.000000e+00> : vector<8x1024xf32>
    %44 = tpu.matmul %43, %7, %cst_25 {dimension_numbers = #tpu.dot_dimension_numbers<[1], [0], [0], [1], [0, 0, 1, 1], [], []>} : vector<8x256xf32>, vector<256x1024xf32>, vector<8x1024xf32> -> vector<8x1024xf32>
    %45 = vector.broadcast %10 : vector<1x1024xf32> to vector<8x1024xf32>
    %46 = arith.addf %44, %45 : vector<8x1024xf32>
    %47 = vector.extract_strided_slice %46 {offsets = [0, 0], sizes = [8, 256], strides = [1, 1]} : vector<8x1024xf32> to vector<8x256xf32>
    %48 = arith.negf %47 : vector<8x256xf32>
    %49 = math.exp %48 : vector<8x256xf32>
    %cst_26 = arith.constant 1.000000e+00 : f32
    %50 = vector.broadcast %cst_26 : f32 to vector<8x256xf32>
    %51 = arith.addf %50, %49 : vector<8x256xf32>
    %52 = arith.divf %50, %51 : vector<8x256xf32>
    %53 = vector.extract_strided_slice %46 {offsets = [0, 256], sizes = [8, 256], strides = [1, 1]} : vector<8x1024xf32> to vector<8x256xf32>
    %54 = arith.negf %53 : vector<8x256xf32>
    %55 = math.exp %54 : vector<8x256xf32>
    %cst_27 = arith.constant 1.000000e+00 : f32
    %56 = vector.broadcast %cst_27 : f32 to vector<8x256xf32>
    %57 = arith.addf %56, %55 : vector<8x256xf32>
    %58 = arith.divf %56, %57 : vector<8x256xf32>
    %59 = vector.extract_strided_slice %46 {offsets = [0, 512], sizes = [8, 256], strides = [1, 1]} : vector<8x1024xf32> to vector<8x256xf32>
    %60 = math.tanh %59 : vector<8x256xf32>
    %61 = vector.extract_strided_slice %46 {offsets = [0, 768], sizes = [8, 256], strides = [1, 1]} : vector<8x1024xf32> to vector<8x256xf32>
    %62 = arith.negf %61 : vector<8x256xf32>
    %63 = math.exp %62 : vector<8x256xf32>
    %cst_28 = arith.constant 1.000000e+00 : f32
    %64 = vector.broadcast %cst_28 : f32 to vector<8x256xf32>
    %65 = arith.addf %64, %63 : vector<8x256xf32>
    %66 = arith.divf %64, %65 : vector<8x256xf32>
    %67 = arith.mulf %58, %41 : vector<8x256xf32>
    %68 = arith.mulf %52, %60 : vector<8x256xf32>
    %69 = arith.addf %67, %68 : vector<8x256xf32>
    %70 = math.tanh %69 : vector<8x256xf32>
    %71 = arith.mulf %66, %70 : vector<8x256xf32>
    %cst_29 = arith.constant dense<0.000000e+00> : vector<8x128xf32>
    %72 = tpu.matmul %71, %8, %cst_29 {dimension_numbers = #tpu.dot_dimension_numbers<[1], [0], [0], [1], [0, 0, 1, 1], [], []>} : vector<8x256xf32>, vector<256x128xf32>, vector<8x128xf32> -> vector<8x128xf32>
    %73 = vector.broadcast %11 : vector<1x128xf32> to vector<8x128xf32>
    %74 = arith.addf %72, %73 : vector<8x128xf32>
    %c0_30 = arith.constant 0 : index
    %c0_31 = arith.constant 0 : index
    %c0_32 = arith.constant 0 : index
    %75 = vector.load %arg10[%c0_30, %c0_31, %c0_32] : memref<4x8x128xf32, #tpu.memory_space<vmem>>, vector<1x8x128xf32>
    %76 = vector.shape_cast %75 : vector<1x8x128xf32> to vector<8x128xf32>
    %77 = vector.shape_cast %74 : vector<8x128xf32> to vector<1x8x128xf32>
    tpu.vector_store %arg10[%c0_30, %c0_31, %c0_32], %77 {strides = array<i32>} : memref<4x8x128xf32, #tpu.memory_space<vmem>>, vector<1x8x128xf32>,
    %c1 = arith.constant 1 : index
    %c0_33 = arith.constant 0 : index
    %c0_34 = arith.constant 0 : index
    %78 = vector.load %arg2[%c1, %c0_33, %c0_34] : memref<4x8x128xf32, #tpu.memory_space<vmem>>, vector<1x8x128xf32>
    %79 = vector.shape_cast %78 : vector<1x8x128xf32> to vector<8x128xf32>
    %cst_35 = arith.constant dense<0.000000e+00> : vector<8x1024xf32>
    %80 = tpu.matmul %79, %5, %cst_35 {dimension_numbers = #tpu.dot_dimension_numbers<[1], [0], [0], [1], [0, 0, 1, 1], [], []>} : vector<8x128xf32>, vector<128x1024xf32>, vector<8x1024xf32> -> vector<8x1024xf32>
    %cst_36 = arith.constant dense<0.000000e+00> : vector<8x1024xf32>
    %81 = tpu.matmul %43, %6, %cst_36 {dimension_numbers = #tpu.dot_dimension_numbers<[1], [0], [0], [1], [0, 0, 1, 1], [], []>} : vector<8x256xf32>, vector<256x1024xf32>, vector<8x1024xf32> -> vector<8x1024xf32>
    %82 = arith.addf %80, %81 : vector<8x1024xf32>
    %83 = vector.broadcast %9 : vector<1x1024xf32> to vector<8x1024xf32>
    %84 = arith.addf %82, %83 : vector<8x1024xf32>
    %85 = vector.extract_strided_slice %84 {offsets = [0, 0], sizes = [8, 256], strides = [1, 1]} : vector<8x1024xf32> to vector<8x256xf32>
    %86 = arith.negf %85 : vector<8x256xf32>
    %87 = math.exp %86 : vector<8x256xf32>
    %cst_37 = arith.constant 1.000000e+00 : f32
    %88 = vector.broadcast %cst_37 : f32 to vector<8x256xf32>
    %89 = arith.addf %88, %87 : vector<8x256xf32>
    %90 = arith.divf %88, %89 : vector<8x256xf32>
    %91 = vector.extract_strided_slice %84 {offsets = [0, 256], sizes = [8, 256], strides = [1, 1]} : vector<8x1024xf32> to vector<8x256xf32>
    %92 = arith.negf %91 : vector<8x256xf32>
    %93 = math.exp %92 : vector<8x256xf32>
    %cst_38 = arith.constant 1.000000e+00 : f32
    %94 = vector.broadcast %cst_38 : f32 to vector<8x256xf32>
    %95 = arith.addf %94, %93 : vector<8x256xf32>
    %96 = arith.divf %94, %95 : vector<8x256xf32>
    %97 = vector.extract_strided_slice %84 {offsets = [0, 512], sizes = [8, 256], strides = [1, 1]} : vector<8x1024xf32> to vector<8x256xf32>
    %98 = math.tanh %97 : vector<8x256xf32>
    %99 = vector.extract_strided_slice %84 {offsets = [0, 768], sizes = [8, 256], strides = [1, 1]} : vector<8x1024xf32> to vector<8x256xf32>
    %100 = arith.negf %99 : vector<8x256xf32>
    %101 = math.exp %100 : vector<8x256xf32>
    %cst_39 = arith.constant 1.000000e+00 : f32
    %102 = vector.broadcast %cst_39 : f32 to vector<8x256xf32>
    %103 = arith.addf %102, %101 : vector<8x256xf32>
    %104 = arith.divf %102, %103 : vector<8x256xf32>
    %105 = arith.mulf %96, %41 : vector<8x256xf32>
    %106 = arith.mulf %90, %98 : vector<8x256xf32>
    %107 = arith.addf %105, %106 : vector<8x256xf32>
    %108 = math.tanh %107 : vector<8x256xf32>
    %109 = arith.mulf %104, %108 : vector<8x256xf32>
    %cst_40 = arith.constant dense<0.000000e+00> : vector<8x1024xf32>
    %110 = tpu.matmul %109, %7, %cst_40 {dimension_numbers = #tpu.dot_dimension_numbers<[1], [0], [0], [1], [0, 0, 1, 1], [], []>} : vector<8x256xf32>, vector<256x1024xf32>, vector<8x1024xf32> -> vector<8x1024xf32>
    %111 = vector.broadcast %10 : vector<1x1024xf32> to vector<8x1024xf32>
    %112 = arith.addf %110, %111 : vector<8x1024xf32>
    %113 = vector.extract_strided_slice %112 {offsets = [0, 0], sizes = [8, 256], strides = [1, 1]} : vector<8x1024xf32> to vector<8x256xf32>
    %114 = arith.negf %113 : vector<8x256xf32>
    %115 = math.exp %114 : vector<8x256xf32>
    %cst_41 = arith.constant 1.000000e+00 : f32
    %116 = vector.broadcast %cst_41 : f32 to vector<8x256xf32>
    %117 = arith.addf %116, %115 : vector<8x256xf32>
    %118 = arith.divf %116, %117 : vector<8x256xf32>
    %119 = vector.extract_strided_slice %112 {offsets = [0, 256], sizes = [8, 256], strides = [1, 1]} : vector<8x1024xf32> to vector<8x256xf32>
    %120 = arith.negf %119 : vector<8x256xf32>
    %121 = math.exp %120 : vector<8x256xf32>
    %cst_42 = arith.constant 1.000000e+00 : f32
    %122 = vector.broadcast %cst_42 : f32 to vector<8x256xf32>
    %123 = arith.addf %122, %121 : vector<8x256xf32>
    %124 = arith.divf %122, %123 : vector<8x256xf32>
    %125 = vector.extract_strided_slice %112 {offsets = [0, 512], sizes = [8, 256], strides = [1, 1]} : vector<8x1024xf32> to vector<8x256xf32>
    %126 = math.tanh %125 : vector<8x256xf32>
    %127 = vector.extract_strided_slice %112 {offsets = [0, 768], sizes = [8, 256], strides = [1, 1]} : vector<8x1024xf32> to vector<8x256xf32>
    %128 = arith.negf %127 : vector<8x256xf32>
    %129 = math.exp %128 : vector<8x256xf32>
    %cst_43 = arith.constant 1.000000e+00 : f32
    %130 = vector.broadcast %cst_43 : f32 to vector<8x256xf32>
    %131 = arith.addf %130, %129 : vector<8x256xf32>
    %132 = arith.divf %130, %131 : vector<8x256xf32>
    %133 = arith.mulf %124, %107 : vector<8x256xf32>
    %134 = arith.mulf %118, %126 : vector<8x256xf32>
    %135 = arith.addf %133, %134 : vector<8x256xf32>
    %136 = math.tanh %135 : vector<8x256xf32>
    %137 = arith.mulf %132, %136 : vector<8x256xf32>
    %cst_44 = arith.constant dense<0.000000e+00> : vector<8x128xf32>
    %138 = tpu.matmul %137, %8, %cst_44 {dimension_numbers = #tpu.dot_dimension_numbers<[1], [0], [0], [1], [0, 0, 1, 1], [], []>} : vector<8x256xf32>, vector<256x128xf32>, vector<8x128xf32> -> vector<8x128xf32>
    %139 = vector.broadcast %11 : vector<1x128xf32> to vector<8x128xf32>
    %140 = arith.addf %138, %139 : vector<8x128xf32>
    %c1_45 = arith.constant 1 : index
    %c0_46 = arith.constant 0 : index
    %c0_47 = arith.constant 0 : index
    %141 = vector.load %arg10[%c1_45, %c0_46, %c0_47] : memref<4x8x128xf32, #tpu.memory_space<vmem>>, vector<1x8x128xf32>
    %142 = vector.shape_cast %141 : vector<1x8x128xf32> to vector<8x128xf32>
    %143 = vector.shape_cast %140 : vector<8x128xf32> to vector<1x8x128xf32>
    tpu.vector_store %arg10[%c1_45, %c0_46, %c0_47], %143 {strides = array<i32>} : memref<4x8x128xf32, #tpu.memory_space<vmem>>, vector<1x8x128xf32>,
    %c2 = arith.constant 2 : index
    %c0_48 = arith.constant 0 : index
    %c0_49 = arith.constant 0 : index
    %144 = vector.load %arg2[%c2, %c0_48, %c0_49] : memref<4x8x128xf32, #tpu.memory_space<vmem>>, vector<1x8x128xf32>
    %145 = vector.shape_cast %144 : vector<1x8x128xf32> to vector<8x128xf32>
    %cst_50 = arith.constant dense<0.000000e+00> : vector<8x1024xf32>
    %146 = tpu.matmul %145, %5, %cst_50 {dimension_numbers = #tpu.dot_dimension_numbers<[1], [0], [0], [1], [0, 0, 1, 1], [], []>} : vector<8x128xf32>, vector<128x1024xf32>, vector<8x1024xf32> -> vector<8x1024xf32>
    %cst_51 = arith.constant dense<0.000000e+00> : vector<8x1024xf32>
    %147 = tpu.matmul %109, %6, %cst_51 {dimension_numbers = #tpu.dot_dimension_numbers<[1], [0], [0], [1], [0, 0, 1, 1], [], []>} : vector<8x256xf32>, vector<256x1024xf32>, vector<8x1024xf32> -> vector<8x1024xf32>
    %148 = arith.addf %146, %147 : vector<8x1024xf32>
    %149 = vector.broadcast %9 : vector<1x1024xf32> to vector<8x1024xf32>
    %150 = arith.addf %148, %149 : vector<8x1024xf32>
    %151 = vector.extract_strided_slice %150 {offsets = [0, 0], sizes = [8, 256], strides = [1, 1]} : vector<8x1024xf32> to vector<8x256xf32>
    %152 = arith.negf %151 : vector<8x256xf32>
    %153 = math.exp %152 : vector<8x256xf32>
    %cst_52 = arith.constant 1.000000e+00 : f32
    %154 = vector.broadcast %cst_52 : f32 to vector<8x256xf32>
    %155 = arith.addf %154, %153 : vector<8x256xf32>
    %156 = arith.divf %154, %155 : vector<8x256xf32>
    %157 = vector.extract_strided_slice %150 {offsets = [0, 256], sizes = [8, 256], strides = [1, 1]} : vector<8x1024xf32> to vector<8x256xf32>
    %158 = arith.negf %157 : vector<8x256xf32>
    %159 = math.exp %158 : vector<8x256xf32>
    %cst_53 = arith.constant 1.000000e+00 : f32
    %160 = vector.broadcast %cst_53 : f32 to vector<8x256xf32>
    %161 = arith.addf %160, %159 : vector<8x256xf32>
    %162 = arith.divf %160, %161 : vector<8x256xf32>
    %163 = vector.extract_strided_slice %150 {offsets = [0, 512], sizes = [8, 256], strides = [1, 1]} : vector<8x1024xf32> to vector<8x256xf32>
    %164 = math.tanh %163 : vector<8x256xf32>
    %165 = vector.extract_strided_slice %150 {offsets = [0, 768], sizes = [8, 256], strides = [1, 1]} : vector<8x1024xf32> to vector<8x256xf32>
    %166 = arith.negf %165 : vector<8x256xf32>
    %167 = math.exp %166 : vector<8x256xf32>
    %cst_54 = arith.constant 1.000000e+00 : f32
    %168 = vector.broadcast %cst_54 : f32 to vector<8x256xf32>
    %169 = arith.addf %168, %167 : vector<8x256xf32>
    %170 = arith.divf %168, %169 : vector<8x256xf32>
    %171 = arith.mulf %162, %107 : vector<8x256xf32>
    %172 = arith.mulf %156, %164 : vector<8x256xf32>
    %173 = arith.addf %171, %172 : vector<8x256xf32>
    %174 = math.tanh %173 : vector<8x256xf32>
    %175 = arith.mulf %170, %174 : vector<8x256xf32>
    %cst_55 = arith.constant dense<0.000000e+00> : vector<8x1024xf32>
    %176 = tpu.matmul %175, %7, %cst_55 {dimension_numbers = #tpu.dot_dimension_numbers<[1], [0], [0], [1], [0, 0, 1, 1], [], []>} : vector<8x256xf32>, vector<256x1024xf32>, vector<8x1024xf32> -> vector<8x1024xf32>
    %177 = vector.broadcast %10 : vector<1x1024xf32> to vector<8x1024xf32>
    %178 = arith.addf %176, %177 : vector<8x1024xf32>
    %179 = vector.extract_strided_slice %178 {offsets = [0, 0], sizes = [8, 256], strides = [1, 1]} : vector<8x1024xf32> to vector<8x256xf32>
    %180 = arith.negf %179 : vector<8x256xf32>
    %181 = math.exp %180 : vector<8x256xf32>
    %cst_56 = arith.constant 1.000000e+00 : f32
    %182 = vector.broadcast %cst_56 : f32 to vector<8x256xf32>
    %183 = arith.addf %182, %181 : vector<8x256xf32>
    %184 = arith.divf %182, %183 : vector<8x256xf32>
    %185 = vector.extract_strided_slice %178 {offsets = [0, 256], sizes = [8, 256], strides = [1, 1]} : vector<8x1024xf32> to vector<8x256xf32>
    %186 = arith.negf %185 : vector<8x256xf32>
    %187 = math.exp %186 : vector<8x256xf32>
    %cst_57 = arith.constant 1.000000e+00 : f32
    %188 = vector.broadcast %cst_57 : f32 to vector<8x256xf32>
    %189 = arith.addf %188, %187 : vector<8x256xf32>
    %190 = arith.divf %188, %189 : vector<8x256xf32>
    %191 = vector.extract_strided_slice %178 {offsets = [0, 512], sizes = [8, 256], strides = [1, 1]} : vector<8x1024xf32> to vector<8x256xf32>
    %192 = math.tanh %191 : vector<8x256xf32>
    %193 = vector.extract_strided_slice %178 {offsets = [0, 768], sizes = [8, 256], strides = [1, 1]} : vector<8x1024xf32> to vector<8x256xf32>
    %194 = arith.negf %193 : vector<8x256xf32>
    %195 = math.exp %194 : vector<8x256xf32>
    %cst_58 = arith.constant 1.000000e+00 : f32
    %196 = vector.broadcast %cst_58 : f32 to vector<8x256xf32>
    %197 = arith.addf %196, %195 : vector<8x256xf32>
    %198 = arith.divf %196, %197 : vector<8x256xf32>
    %199 = arith.mulf %190, %173 : vector<8x256xf32>
    %200 = arith.mulf %184, %192 : vector<8x256xf32>
    %201 = arith.addf %199, %200 : vector<8x256xf32>
    %202 = math.tanh %201 : vector<8x256xf32>
    %203 = arith.mulf %198, %202 : vector<8x256xf32>
    %cst_59 = arith.constant dense<0.000000e+00> : vector<8x128xf32>
    %204 = tpu.matmul %203, %8, %cst_59 {dimension_numbers = #tpu.dot_dimension_numbers<[1], [0], [0], [1], [0, 0, 1, 1], [], []>} : vector<8x256xf32>, vector<256x128xf32>, vector<8x128xf32> -> vector<8x128xf32>
    %205 = vector.broadcast %11 : vector<1x128xf32> to vector<8x128xf32>
    %206 = arith.addf %204, %205 : vector<8x128xf32>
    %c2_60 = arith.constant 2 : index
    %c0_61 = arith.constant 0 : index
    %c0_62 = arith.constant 0 : index
    %207 = vector.load %arg10[%c2_60, %c0_61, %c0_62] : memref<4x8x128xf32, #tpu.memory_space<vmem>>, vector<1x8x128xf32>
    %208 = vector.shape_cast %207 : vector<1x8x128xf32> to vector<8x128xf32>
    %209 = vector.shape_cast %206 : vector<8x128xf32> to vector<1x8x128xf32>
    tpu.vector_store %arg10[%c2_60, %c0_61, %c0_62], %209 {strides = array<i32>} : memref<4x8x128xf32, #tpu.memory_space<vmem>>, vector<1x8x128xf32>,
    %c3 = arith.constant 3 : index
    %c0_63 = arith.constant 0 : index
    %c0_64 = arith.constant 0 : index
    %210 = vector.load %arg2[%c3, %c0_63, %c0_64] : memref<4x8x128xf32, #tpu.memory_space<vmem>>, vector<1x8x128xf32>
    %211 = vector.shape_cast %210 : vector<1x8x128xf32> to vector<8x128xf32>
    %cst_65 = arith.constant dense<0.000000e+00> : vector<8x1024xf32>
    %212 = tpu.matmul %211, %5, %cst_65 {dimension_numbers = #tpu.dot_dimension_numbers<[1], [0], [0], [1], [0, 0, 1, 1], [], []>} : vector<8x128xf32>, vector<128x1024xf32>, vector<8x1024xf32> -> vector<8x1024xf32>
    %cst_66 = arith.constant dense<0.000000e+00> : vector<8x1024xf32>
    %213 = tpu.matmul %175, %6, %cst_66 {dimension_numbers = #tpu.dot_dimension_numbers<[1], [0], [0], [1], [0, 0, 1, 1], [], []>} : vector<8x256xf32>, vector<256x1024xf32>, vector<8x1024xf32> -> vector<8x1024xf32>
    %214 = arith.addf %212, %213 : vector<8x1024xf32>
    %215 = vector.broadcast %9 : vector<1x1024xf32> to vector<8x1024xf32>
    %216 = arith.addf %214, %215 : vector<8x1024xf32>
    %217 = vector.extract_strided_slice %216 {offsets = [0, 0], sizes = [8, 256], strides = [1, 1]} : vector<8x1024xf32> to vector<8x256xf32>
    %218 = arith.negf %217 : vector<8x256xf32>
    %219 = math.exp %218 : vector<8x256xf32>
    %cst_67 = arith.constant 1.000000e+00 : f32
    %220 = vector.broadcast %cst_67 : f32 to vector<8x256xf32>
    %221 = arith.addf %220, %219 : vector<8x256xf32>
    %222 = arith.divf %220, %221 : vector<8x256xf32>
    %223 = vector.extract_strided_slice %216 {offsets = [0, 256], sizes = [8, 256], strides = [1, 1]} : vector<8x1024xf32> to vector<8x256xf32>
    %224 = arith.negf %223 : vector<8x256xf32>
    %225 = math.exp %224 : vector<8x256xf32>
    %cst_68 = arith.constant 1.000000e+00 : f32
    %226 = vector.broadcast %cst_68 : f32 to vector<8x256xf32>
    %227 = arith.addf %226, %225 : vector<8x256xf32>
    %228 = arith.divf %226, %227 : vector<8x256xf32>
    %229 = vector.extract_strided_slice %216 {offsets = [0, 512], sizes = [8, 256], strides = [1, 1]} : vector<8x1024xf32> to vector<8x256xf32>
    %230 = math.tanh %229 : vector<8x256xf32>
    %231 = vector.extract_strided_slice %216 {offsets = [0, 768], sizes = [8, 256], strides = [1, 1]} : vector<8x1024xf32> to vector<8x256xf32>
    %232 = arith.negf %231 : vector<8x256xf32>
    %233 = math.exp %232 : vector<8x256xf32>
    %cst_69 = arith.constant 1.000000e+00 : f32
    %234 = vector.broadcast %cst_69 : f32 to vector<8x256xf32>
    %235 = arith.addf %234, %233 : vector<8x256xf32>
    %236 = arith.divf %234, %235 : vector<8x256xf32>
    %237 = arith.mulf %228, %173 : vector<8x256xf32>
    %238 = arith.mulf %222, %230 : vector<8x256xf32>
    %239 = arith.addf %237, %238 : vector<8x256xf32>
    %240 = math.tanh %239 : vector<8x256xf32>
    %241 = arith.mulf %236, %240 : vector<8x256xf32>
    %cst_70 = arith.constant dense<0.000000e+00> : vector<8x1024xf32>
    %242 = tpu.matmul %241, %7, %cst_70 {dimension_numbers = #tpu.dot_dimension_numbers<[1], [0], [0], [1], [0, 0, 1, 1], [], []>} : vector<8x256xf32>, vector<256x1024xf32>, vector<8x1024xf32> -> vector<8x1024xf32>
    %243 = vector.broadcast %10 : vector<1x1024xf32> to vector<8x1024xf32>
    %244 = arith.addf %242, %243 : vector<8x1024xf32>
    %245 = vector.extract_strided_slice %244 {offsets = [0, 0], sizes = [8, 256], strides = [1, 1]} : vector<8x1024xf32> to vector<8x256xf32>
    %246 = arith.negf %245 : vector<8x256xf32>
    %247 = math.exp %246 : vector<8x256xf32>
    %cst_71 = arith.constant 1.000000e+00 : f32
    %248 = vector.broadcast %cst_71 : f32 to vector<8x256xf32>
    %249 = arith.addf %248, %247 : vector<8x256xf32>
    %250 = arith.divf %248, %249 : vector<8x256xf32>
    %251 = vector.extract_strided_slice %244 {offsets = [0, 256], sizes = [8, 256], strides = [1, 1]} : vector<8x1024xf32> to vector<8x256xf32>
    %252 = arith.negf %251 : vector<8x256xf32>
    %253 = math.exp %252 : vector<8x256xf32>
    %cst_72 = arith.constant 1.000000e+00 : f32
    %254 = vector.broadcast %cst_72 : f32 to vector<8x256xf32>
    %255 = arith.addf %254, %253 : vector<8x256xf32>
    %256 = arith.divf %254, %255 : vector<8x256xf32>
    %257 = vector.extract_strided_slice %244 {offsets = [0, 512], sizes = [8, 256], strides = [1, 1]} : vector<8x1024xf32> to vector<8x256xf32>
    %258 = math.tanh %257 : vector<8x256xf32>
    %259 = vector.extract_strided_slice %244 {offsets = [0, 768], sizes = [8, 256], strides = [1, 1]} : vector<8x1024xf32> to vector<8x256xf32>
    %260 = arith.negf %259 : vector<8x256xf32>
    %261 = math.exp %260 : vector<8x256xf32>
    %cst_73 = arith.constant 1.000000e+00 : f32
    %262 = vector.broadcast %cst_73 : f32 to vector<8x256xf32>
    %263 = arith.addf %262, %261 : vector<8x256xf32>
    %264 = arith.divf %262, %263 : vector<8x256xf32>
    %265 = arith.mulf %256, %239 : vector<8x256xf32>
    %266 = arith.mulf %250, %258 : vector<8x256xf32>
    %267 = arith.addf %265, %266 : vector<8x256xf32>
    %268 = math.tanh %267 : vector<8x256xf32>
    %269 = arith.mulf %264, %268 : vector<8x256xf32>
    %cst_74 = arith.constant dense<0.000000e+00> : vector<8x128xf32>
    %270 = tpu.matmul %269, %8, %cst_74 {dimension_numbers = #tpu.dot_dimension_numbers<[1], [0], [0], [1], [0, 0, 1, 1], [], []>} : vector<8x256xf32>, vector<256x128xf32>, vector<8x128xf32> -> vector<8x128xf32>
    %271 = vector.broadcast %11 : vector<1x128xf32> to vector<8x128xf32>
    %272 = arith.addf %270, %271 : vector<8x128xf32>
    %c3_75 = arith.constant 3 : index
    %c0_76 = arith.constant 0 : index
    %c0_77 = arith.constant 0 : index
    %273 = vector.load %arg10[%c3_75, %c0_76, %c0_77] : memref<4x8x128xf32, #tpu.memory_space<vmem>>, vector<1x8x128xf32>
    %274 = vector.shape_cast %273 : vector<1x8x128xf32> to vector<8x128xf32>
    %275 = vector.shape_cast %272 : vector<8x128xf32> to vector<1x8x128xf32>
    tpu.vector_store %arg10[%c3_75, %c0_76, %c0_77], %275 {strides = array<i32>} : memref<4x8x128xf32, #tpu.memory_space<vmem>>, vector<1x8x128xf32>,
    %c0_78 = arith.constant 0 : index
    %c0_79 = arith.constant 0 : index
    %276 = vector.load %arg11[%c0_78, %c0_79] : memref<8x256xf32, #tpu.memory_space<vmem>>, vector<8x256xf32>
    tpu.vector_store %arg11[%c0_78, %c0_79], %241 {strides = array<i32>} : memref<8x256xf32, #tpu.memory_space<vmem>>, vector<8x256xf32>,
    %c0_80 = arith.constant 0 : index
    %c0_81 = arith.constant 0 : index
    %277 = vector.load %arg12[%c0_80, %c0_81] : memref<8x256xf32, #tpu.memory_space<vmem>>, vector<8x256xf32>
    tpu.vector_store %arg12[%c0_80, %c0_81], %239 {strides = array<i32>} : memref<8x256xf32, #tpu.memory_space<vmem>>, vector<8x256xf32>,
    return
  }
  func.func @transform_0(%arg0: i32, %arg1: i32) -> (i32, i32, i32) {
    %c0_i32 = arith.constant 0 : i32
    %c0_i32_0 = arith.constant 0 : i32
    return %arg1, %arg0, %c0_i32 : i32, i32, i32
  }
  func.func @transform_1(%arg0: i32, %arg1: i32) -> (i32, i32) {
    %c0_i32 = arith.constant 0 : i32
    %c0_i32_0 = arith.constant 0 : i32
    %c0_i32_1 = arith.constant 0 : i32
    return %c0_i32, %c0_i32_0 : i32, i32
  }
  func.func @transform_2(%arg0: i32, %arg1: i32) -> (i32, i32) {
    %c0_i32 = arith.constant 0 : i32
    %c0_i32_0 = arith.constant 0 : i32
    %c0_i32_1 = arith.constant 0 : i32
    return %c0_i32, %c0_i32_0 : i32, i32
  }
  func.func @transform_3(%arg0: i32, %arg1: i32) -> (i32, i32) {
    %c0_i32 = arith.constant 0 : i32
    %c0_i32_0 = arith.constant 0 : i32
    %c0_i32_1 = arith.constant 0 : i32
    return %c0_i32, %c0_i32_0 : i32, i32
  }
  func.func @transform_4(%arg0: i32, %arg1: i32) -> (i32, i32) {
    %c0_i32 = arith.constant 0 : i32
    %c0_i32_0 = arith.constant 0 : i32
    %c0_i32_1 = arith.constant 0 : i32
    return %c0_i32, %c0_i32_0 : i32, i32
  }
  func.func @transform_5(%arg0: i32, %arg1: i32) -> (i32, i32) {
    %c0_i32 = arith.constant 0 : i32
    %c0_i32_0 = arith.constant 0 : i32
    %c0_i32_1 = arith.constant 0 : i32
    return %c0_i32, %c0_i32_0 : i32, i32
  }
  func.func @transform_6(%arg0: i32, %arg1: i32) -> (i32, i32) {
    %c0_i32 = arith.constant 0 : i32
    %c0_i32_0 = arith.constant 0 : i32
    %c0_i32_1 = arith.constant 0 : i32
    return %c0_i32, %c0_i32_0 : i32, i32
  }
  func.func @transform_7(%arg0: i32, %arg1: i32) -> (i32, i32) {
    %c0_i32 = arith.constant 0 : i32
    %c0_i32_0 = arith.constant 0 : i32
    %c0_i32_1 = arith.constant 0 : i32
    return %c0_i32, %c0_i32_0 : i32, i32
  }
  func.func @transform_8(%arg0: i32, %arg1: i32) -> (i32, i32, i32) {
    %c0_i32 = arith.constant 0 : i32
    %c0_i32_0 = arith.constant 0 : i32
    return %arg1, %arg0, %c0_i32 : i32, i32, i32
  }
}

</mosaic_0001>

<llo_original>
// kernel: lstm_prediction_forward.1
$region0: #{lstm_prediction_forward.1}
  #allocation0 [shape = 'u32[]', space=smem, size = 0x4, offset = 0x4, fixed_abs, tag = 'smem constant byte address 0x4 - core index']
  #allocation1 [shape = 'u32[144,128]{1,0:T(1,128)}', space=vmem, size = 0x12000, scoped, tag = 'internal scratch']
  #allocation2 [shape = 'f32[8,256]{1,0:T(8,128)}', space=vmem, size = 0x2000, scoped, tag = 'scratch operand']
  #allocation3 [shape = 'f32[8,256]{1,0:T(8,128)}', space=vmem, size = 0x2000, scoped, tag = 'scratch operand']
  %s0 = inlined_call_operand.vmem [shape: f32[8,16,128], index: 0, kind: input, shape index: {}]
  %s1 = inlined_call_operand.vmem [shape: f32[128,1024], index: 1, kind: input, shape index: {}]
  %s2 = inlined_call_operand.vmem [shape: f32[256,1024], index: 2, kind: input, shape index: {}]
  %s3 = inlined_call_operand.vmem [shape: f32[1,1024], index: 3, kind: input, shape index: {}]
  %s4 = inlined_call_operand.vmem [shape: f32[256,1024], index: 4, kind: input, shape index: {}]
  %s5 = inlined_call_operand.vmem [shape: f32[1,1024], index: 5, kind: input, shape index: {}]
  %s6 = inlined_call_operand.vmem [shape: f32[256,128], index: 6, kind: input, shape index: {}]
  %s7 = inlined_call_operand.vmem [shape: f32[1,128], index: 7, kind: input, shape index: {}]
  %s8 = inlined_call_operand.vmem [shape: f32[8,16,128], index: 8, kind: output, shape index: {}]
  %s9 = sld [smem:[#allocation0]]
  $region141: #{lstm_prediction_forward.1} parent=0
    _
  %s11 = ssub.s32 1, %s9
  %s12 = scalar_select 0, %s11, %s9
  $region1: #{lstm_prediction_forward.1} parent=0
    #allocation4 [shape = 'u8[32768]{0}', space=vmem, size = 0x8000, scoped, tag = 'input window, operand 0']
    #allocation5 [shape = 'u8[32768]{0}', space=vmem, size = 0x8000, scoped, tag = 'output window, operand 0']
    loop: start=0, step=1, limit=6
    $region2: #{lstm_prediction_forward.1} parent=1 // loop_pre_header
      _
    $region3: #{lstm_prediction_forward.1} parent=1 // loop_header
      %s14 = sphi 0, %s18
      %p15 = scmp.ge.s32.totalorder %s14, 6
      %s21 = sphi 0, %s33
      %s22 = sphi 0, %s29
      %s23 = sphi 0, %s21
      %s24 = sphi 0, %s22
      %s25 = sphi 0, %s23
      %s26 = sphi 0, %s24
      %s38 = sphi 0, %s40
      %s41 = sphi 0, %s38
      %s42 = sphi 0, %s41
      %s58 = sphi 0, %s42
      %s62 = sphi 0, %s62
      %s64 = sphi 0, %s62
      %s65 = sphi 0, %s64
      %s79 = sphi 0, %s65
      %s83 = sphi 0, %s83
      %s85 = sphi 0, %s83
      %s86 = sphi 0, %s85
      %s100 = sphi 0, %s86
      %s104 = sphi 0, %s104
      %s106 = sphi 0, %s104
      %s107 = sphi 0, %s106
      %s121 = sphi 0, %s107
      %s125 = sphi 0, %s125
      %s127 = sphi 0, %s125
      %s128 = sphi 0, %s127
      %s142 = sphi 0, %s128
      %s146 = sphi 0, %s146
      %s148 = sphi 0, %s146
      %s149 = sphi 0, %s148
      %s163 = sphi 0, %s149
      %s167 = sphi 0, %s167
      %s169 = sphi 0, %s167
      %s170 = sphi 0, %s169
      %s184 = sphi 0, %s170
      %s188 = sphi 0, %s188
      %s190 = sphi 0, %s188
      %s191 = sphi 0, %s190
      %s205 = sphi 0, %s191
      %s213 = sphi 0, %s215
      %s216 = sphi 0, %s213
      %s217 = sphi 0, %s216
      %s233 = sphi 0, %s217
    $region4: #{lstm_prediction_forward.1} parent=1 // loop_header_branch
      %17 = sbr.rel (%p15) target = $region8
    $region5: #{lstm_prediction_forward.1} parent=1 // loop_body
      %s19 = ssub.s32 %s14, 1
      %s20 = ssub.s32 %s14, 2
      %s27 = sadd.s32 1, %s22
      %p28 = scmp.ge.s32.totalorder %s27, 2
      %s29 = scalar_select %p28, 0, %s27
      %s30 = sadd.s32 1, %s21
      %s31 = scalar_select %p28, %s30, %s21
      %p32 = scmp.ge.s32.totalorder %s31, 2
      %s33 = scalar_select %p32, 0, %s31
      %s34 = ssub.s32 %s22, %s29
      %s35 = ssub.s32 %s21, %s33
      %s36 = sor.u32 %s34, %s35
      %p37 = scmp.eq.s32.totalorder %s36, 0
      %s39 = sadd.s32 %s38, 1
      %s40 = scalar_select %p37, %s38, %s39
      %p43 = pneg %p37
      %p44 = scmp.eq.s32.totalorder %s14, 3
      %p45 = por %p43, %p44
      %p46 = scmp.ne.s32.totalorder %s38, %s41
      %p47 = scmp.eq.s32.totalorder %s14, 0
      %p48 = por %p46, %p47
      %p49 = scmp.ne.s32.totalorder %s38, %s41
      %p50 = scmp.eq.s32.totalorder %s19, 3
      %p51 = por %p49, %p50
      %p52 = scmp.ne.s32.totalorder %s41, %s42
      %p53 = scmp.eq.s32.totalorder %s19, 0
      %p54 = por %p52, %p53
      %p55 = scmp.ne.s32.totalorder %s41, %s42
      %p56 = scmp.eq.s32.totalorder %s20, 3
      %p57 = por %p55, %p56
      %p59 = scmp.ne.s32.totalorder %s42, %s58
      %p60 = scmp.eq.s32.totalorder %s20, 0
      %p61 = por %p59, %p60
      %s63 = sadd.s32 %s62, 1
      %p66 = scmp.eq.s32.totalorder %s14, 3
      %p67 = scmp.ne.s32.totalorder %s62, %s64
      %p68 = scmp.eq.s32.totalorder %s14, 0
      %p69 = por %p67, %p68
      %p70 = scmp.ne.s32.totalorder %s62, %s64
      %p71 = scmp.eq.s32.totalorder %s19, 3
      %p72 = por %p70, %p71
      %p73 = scmp.ne.s32.totalorder %s64, %s65
      %p74 = scmp.eq.s32.totalorder %s19, 0
      %p75 = por %p73, %p74
      %p76 = scmp.ne.s32.totalorder %s64, %s65
      %p77 = scmp.eq.s32.totalorder %s20, 3
      %p78 = por %p76, %p77
      %p80 = scmp.ne.s32.totalorder %s65, %s79
      %p81 = scmp.eq.s32.totalorder %s20, 0
      %p82 = por %p80, %p81
      %s84 = sadd.s32 %s83, 1
      %p87 = scmp.eq.s32.totalorder %s14, 3
      %p88 = scmp.ne.s32.totalorder %s83, %s85
      %p89 = scmp.eq.s32.totalorder %s14, 0
      %p90 = por %p88, %p89
      %p91 = scmp.ne.s32.totalorder %s83, %s85
      %p92 = scmp.eq.s32.totalorder %s19, 3
      %p93 = por %p91, %p92
      %p94 = scmp.ne.s32.totalorder %s85, %s86
      %p95 = scmp.eq.s32.totalorder %s19, 0
      %p96 = por %p94, %p95
      %p97 = scmp.ne.s32.totalorder %s85, %s86
      %p98 = scmp.eq.s32.totalorder %s20, 3
      %p99 = por %p97, %p98
      %p101 = scmp.ne.s32.totalorder %s86, %s100
      %p102 = scmp.eq.s32.totalorder %s20, 0
      %p103 = por %p101, %p102
      %s105 = sadd.s32 %s104, 1
      %p108 = scmp.eq.s32.totalorder %s14, 3
      %p109 = scmp.ne.s32.totalorder %s104, %s106
      %p110 = scmp.eq.s32.totalorder %s14, 0
      %p111 = por %p109, %p110
      %p112 = scmp.ne.s32.totalorder %s104, %s106
      %p113 = scmp.eq.s32.totalorder %s19, 3
      %p114 = por %p112, %p113
      %p115 = scmp.ne.s32.totalorder %s106, %s107
      %p116 = scmp.eq.s32.totalorder %s19, 0
      %p117 = por %p115, %p116
      %p118 = scmp.ne.s32.totalorder %s106, %s107
      %p119 = scmp.eq.s32.totalorder %s20, 3
      %p120 = por %p118, %p119
      %p122 = scmp.ne.s32.totalorder %s107, %s121
      %p123 = scmp.eq.s32.totalorder %s20, 0
      %p124 = por %p122, %p123
      %s126 = sadd.s32 %s125, 1
      %p129 = scmp.eq.s32.totalorder %s14, 3
      %p130 = scmp.ne.s32.totalorder %s125, %s127
      %p131 = scmp.eq.s32.totalorder %s14, 0
      %p132 = por %p130, %p131
      %p133 = scmp.ne.s32.totalorder %s125, %s127
      %p134 = scmp.eq.s32.totalorder %s19, 3
      %p135 = por %p133, %p134
      %p136 = scmp.ne.s32.totalorder %s127, %s128
      %p137 = scmp.eq.s32.totalorder %s19, 0
      %p138 = por %p136, %p137
      %p139 = scmp.ne.s32.totalorder %s127, %s128
      %p140 = scmp.eq.s32.totalorder %s20, 3
      %p141 = por %p139, %p140
      %p143 = scmp.ne.s32.totalorder %s128, %s142
      %p144 = scmp.eq.s32.totalorder %s20, 0
      %p145 = por %p143, %p144
      %s147 = sadd.s32 %s146, 1
      %p150 = scmp.eq.s32.totalorder %s14, 3
      %p151 = scmp.ne.s32.totalorder %s146, %s148
      %p152 = scmp.eq.s32.totalorder %s14, 0
      %p153 = por %p151, %p152
      %p154 = scmp.ne.s32.totalorder %s146, %s148
      %p155 = scmp.eq.s32.totalorder %s19, 3
      %p156 = por %p154, %p155
      %p157 = scmp.ne.s32.totalorder %s148, %s149
      %p158 = scmp.eq.s32.totalorder %s19, 0
      %p159 = por %p157, %p158
      %p160 = scmp.ne.s32.totalorder %s148, %s149
      %p161 = scmp.eq.s32.totalorder %s20, 3
      %p162 = por %p160, %p161
      %p164 = scmp.ne.s32.totalorder %s149, %s163
      %p165 = scmp.eq.s32.totalorder %s20, 0
      %p166 = por %p164, %p165
      %s168 = sadd.s32 %s167, 1
      %p171 = scmp.eq.s32.totalorder %s14, 3
      %p172 = scmp.ne.s32.totalorder %s167, %s169
      %p173 = scmp.eq.s32.totalorder %s14, 0
      %p174 = por %p172, %p173
      %p175 = scmp.ne.s32.totalorder %s167, %s169
      %p176 = scmp.eq.s32.totalorder %s19, 3
      %p177 = por %p175, %p176
      %p178 = scmp.ne.s32.totalorder %s169, %s170
      %p179 = scmp.eq.s32.totalorder %s19, 0
      %p180 = por %p178, %p179
      %p181 = scmp.ne.s32.totalorder %s169, %s170
      %p182 = scmp.eq.s32.totalorder %s20, 3
      %p183 = por %p181, %p182
      %p185 = scmp.ne.s32.totalorder %s170, %s184
      %p186 = scmp.eq.s32.totalorder %s20, 0
      %p187 = por %p185, %p186
      %s189 = sadd.s32 %s188, 1
      %p192 = scmp.eq.s32.totalorder %s14, 3
      %p193 = scmp.ne.s32.totalorder %s188, %s190
      %p194 = scmp.eq.s32.totalorder %s14, 0
      %p195 = por %p193, %p194
      %p196 = scmp.ne.s32.totalorder %s188, %s190
      %p197 = scmp.eq.s32.totalorder %s19, 3
      %p198 = por %p196, %p197
      %p199 = scmp.ne.s32.totalorder %s190, %s191
      %p200 = scmp.eq.s32.totalorder %s19, 0
      %p201 = por %p199, %p200
      %p202 = scmp.ne.s32.totalorder %s190, %s191
      %p203 = scmp.eq.s32.totalorder %s20, 3
      %p204 = por %p202, %p203
      %p206 = scmp.ne.s32.totalorder %s191, %s205
      %p207 = scmp.eq.s32.totalorder %s20, 0
      %p208 = por %p206, %p207
      %s209 = ssub.s32 %s22, %s29
      %s210 = ssub.s32 %s21, %s33
      %s211 = sor.u32 %s209, %s210
      %p212 = scmp.eq.s32.totalorder %s211, 0
      %s214 = sadd.s32 %s213, 1
      %s215 = scalar_select %p212, %s213, %s214
      %p218 = pneg %p212
      %p219 = scmp.eq.s32.totalorder %s14, 3
      %p220 = por %p218, %p219
      %p221 = scmp.ne.s32.totalorder %s213, %s216
      %p222 = scmp.eq.s32.totalorder %s14, 0
      %p223 = por %p221, %p222
      %p224 = scmp.ne.s32.totalorder %s213, %s216
      %p225 = scmp.eq.s32.totalorder %s19, 3
      %p226 = por %p224, %p225
      %p227 = scmp.ne.s32.totalorder %s216, %s217
      %p228 = scmp.eq.s32.totalorder %s19, 0
      %p229 = por %p227, %p228
      %p230 = scmp.ne.s32.totalorder %s216, %s217
      %p231 = scmp.eq.s32.totalorder %s20, 3
      %p232 = por %p230, %p231
      %p234 = scmp.ne.s32.totalorder %s217, %s233
      %p235 = scmp.eq.s32.totalorder %s20, 0
      %p236 = por %p234, %p235
      %p237 = scmp.le.s32.totalorder 1, %s14
      %p238 = scmp.lt.s32.totalorder %s14, 5
      %p239 = pnand %p237, %p238
      %p240 = pneg %p239
      // Predicated region
      $region9: #{lstm_prediction_forward.1} parent=5 // pred_check
        _
      $region10: #{lstm_prediction_forward.1} parent=5 // pred_check_branch
        %242 = sbr.rel (%p239) target = $region12
      $region11: #{lstm_prediction_forward.1} parent=5 // pred_region
        %s243 = ssub.s32 %s14, 1
        // Predicated region
        $region13: #{lstm_prediction_forward.1} parent=11 // pred_check
          %p244 = pneg %p75
        $region14: #{lstm_prediction_forward.1} parent=11 // pred_check_branch
          %246 = sbr.rel (%p244) target = $region16
        $region15: #{lstm_prediction_forward.1} parent=11 // pred_region
          _
        $region16: #{lstm_prediction_forward.1} parent=11 // pred_fallthru
          _
        // Predicated region
        $region17: #{lstm_prediction_forward.1} parent=11 // pred_check
          %p247 = pneg %p96
        $region18: #{lstm_prediction_forward.1} parent=11 // pred_check_branch
          %249 = sbr.rel (%p247) target = $region20
        $region19: #{lstm_prediction_forward.1} parent=11 // pred_region
          _
        $region20: #{lstm_prediction_forward.1} parent=11 // pred_fallthru
          _
        // Predicated region
        $region21: #{lstm_prediction_forward.1} parent=11 // pred_check
          %p250 = pneg %p117
        $region22: #{lstm_prediction_forward.1} parent=11 // pred_check_branch
          %252 = sbr.rel (%p250) target = $region24
        $region23: #{lstm_prediction_forward.1} parent=11 // pred_region
          _
        $region24: #{lstm_prediction_forward.1} parent=11 // pred_fallthru
          _
        // Predicated region
        $region25: #{lstm_prediction_forward.1} parent=11 // pred_check
          %p253 = pneg %p138
        $region26: #{lstm_prediction_forward.1} parent=11 // pred_check_branch
          %255 = sbr.rel (%p253) target = $region28
        $region27: #{lstm_prediction_forward.1} parent=11 // pred_region
          _
        $region28: #{lstm_prediction_forward.1} parent=11 // pred_fallthru
          _
        // Predicated region
        $region29: #{lstm_prediction_forward.1} parent=11 // pred_check
          %p256 = pneg %p159
        $region30: #{lstm_prediction_forward.1} parent=11 // pred_check_branch
          %258 = sbr.rel (%p256) target = $region32
        $region31: #{lstm_prediction_forward.1} parent=11 // pred_region
          _
        $region32: #{lstm_prediction_forward.1} parent=11 // pred_fallthru
          _
        // Predicated region
        $region33: #{lstm_prediction_forward.1} parent=11 // pred_check
          %p259 = pneg %p180
        $region34: #{lstm_prediction_forward.1} parent=11 // pred_check_branch
          %261 = sbr.rel (%p259) target = $region36
        $region35: #{lstm_prediction_forward.1} parent=11 // pred_region
          _
        $region36: #{lstm_prediction_forward.1} parent=11 // pred_fallthru
          _
        // Predicated region
        $region37: #{lstm_prediction_forward.1} parent=11 // pred_check
          %p262 = pneg %p201
        $region38: #{lstm_prediction_forward.1} parent=11 // pred_check_branch
          %264 = sbr.rel (%p262) target = $region40
        $region39: #{lstm_prediction_forward.1} parent=11 // pred_region
          _
        $region40: #{lstm_prediction_forward.1} parent=11 // pred_fallthru
          _
      $region12: #{lstm_prediction_forward.1} parent=5 // pred_fallthru
        _
      %p265 = scmp.lt.s32.totalorder %s14, 4
      // Predicated region
      $region41: #{lstm_prediction_forward.1} parent=5 // pred_check
        %p266 = pneg %p265
      $region42: #{lstm_prediction_forward.1} parent=5 // pred_check_branch
        %268 = sbr.rel (%p266) target = $region44
      $region43: #{lstm_prediction_forward.1} parent=5 // pred_region
        // Predicated region
        $region45: #{lstm_prediction_forward.1} parent=43 // pred_check
          %p269 = pneg %p48
        $region46: #{lstm_prediction_forward.1} parent=43 // pred_check_branch
          %271 = sbr.rel (%p269) target = $region48
        $region47: #{lstm_prediction_forward.1} parent=43 // pred_region
          %s272 = sand.u32 %s38, 1
          %s273 = sand.u32 %s38, 1
          %s274 = smul.addr %s273, 32
          %s275 = scalar_lea.vmem [#allocation4], %s274
          %s276 = smul.u32 4, %s22
          %s277 = smul.addr %s276, 2
          %s278 = sadd.s32 %s21, %s277
          %s279 = smul.addr %s278, 8
          %s280 = scalar_lea.vmem %s0, %s279
          // Predicated region
          $region49: #{lstm_prediction_forward.1} parent=47 // pred_check
            _
          $region50: #{lstm_prediction_forward.1} parent=47 // pred_check_branch
            %282 = sbr.rel (0) target = $region52
          $region51: #{lstm_prediction_forward.1} parent=47 // pred_region
            // Predicated region
            $region53: #{lstm_prediction_forward.1} parent=51 // pred_check
              _
            $region54: #{lstm_prediction_forward.1} parent=51 // pred_check_branch
              %284 = sbr.rel (0) target = $region56
            $region55: #{lstm_prediction_forward.1} parent=51 // pred_region
              // Predicated region
              $region68: #{lstm_prediction_forward.1} parent=55 // pred_check
                _
              $region69: #{lstm_prediction_forward.1} parent=55 // pred_check_branch
                %306 = sbr.rel (0) target = $region71
              $region70: #{lstm_prediction_forward.1} parent=55 // pred_region
                loop: start=0, step=1, limit=1
                $region72: #{lstm_prediction_forward.1} parent=70 // loop_pre_header
                  _
                $region73: #{lstm_prediction_forward.1} parent=70 // loop_header
                  %s308 = sphi 0, %s312
                  %p309 = scmp.ge.s32.totalorder %s308, 1
                  %s313 = sphi %s280, %s280
                  %s314 = sphi %s275, %s275
                $region74: #{lstm_prediction_forward.1} parent=70 // loop_header_branch
                  %311 = sbr.rel (%p309) target = $region78
                $region75: #{lstm_prediction_forward.1} parent=70 // loop_body
                  %v315 = vld [vmem:[%s313] sm:$0xff]
                  %316 = vst [vmem:[%s314] sm:$0xff] %v315
                  %v317 = vld [vmem:[%s313 + $0x10] sm:$0xff]
                  %318 = vst [vmem:[%s314 + $0x8] sm:$0xff] %v317
                  %v319 = vld [vmem:[%s313 + $0x20] sm:$0xff]
                  %320 = vst [vmem:[%s314 + $0x10] sm:$0xff] %v319
                  %v321 = vld [vmem:[%s313 + $0x30] sm:$0xff]
                  %322 = vst [vmem:[%s314 + $0x18] sm:$0xff] %v321
                $region76: #{lstm_prediction_forward.1} parent=70 // loop_footer
                  %s312 = sadd.s32 1, %s308
                $region77: #{lstm_prediction_forward.1} parent=70 // loop_footer_branch
                  %307 = sbr.rel target = $region73
                $region78: #{lstm_prediction_forward.1} parent=70 // loop_exit
                  _
              $region71: #{lstm_prediction_forward.1} parent=55 // pred_fallthru
                _
              // Predicated region
              $region79: #{lstm_prediction_forward.1} parent=55 // pred_check
                _
              $region80: #{lstm_prediction_forward.1} parent=55 // pred_check_branch
                %324 = sbr.rel target = $region82
              $region81: #{lstm_prediction_forward.1} parent=55 // pred_region
                _
              $region82: #{lstm_prediction_forward.1} parent=55 // pred_fallthru
                _
            $region56: #{lstm_prediction_forward.1} parent=51 // pred_fallthru
              _
            // Predicated region
            $region57: #{lstm_prediction_forward.1} parent=51 // pred_check
              _
            $region58: #{lstm_prediction_forward.1} parent=51 // pred_check_branch
              %286 = sbr.rel target = $region60
            $region59: #{lstm_prediction_forward.1} parent=51 // pred_region
              %s288 = ssub.s32 256, 1
              loop: start=0, step=1, limit=1
              $region61: #{lstm_prediction_forward.1} parent=59 // loop_pre_header
                _
              $region62: #{lstm_prediction_forward.1} parent=59 // loop_header
                %s290 = sphi 0, %s294
                %p291 = scmp.ge.s32.totalorder %s290, 1
                %s295 = sphi %s280, %s280
                %s296 = sphi %s275, %s275
              $region63: #{lstm_prediction_forward.1} parent=59 // loop_header_branch
                %293 = sbr.rel (%p291) target = $region67
              $region64: #{lstm_prediction_forward.1} parent=59 // loop_body
                %v297 = vld [vmem:[%s295] sm:%s288]
                %298 = vst [vmem:[%s296] sm:%s288] %v297
                %v299 = vld [vmem:[%s295 + $0x10] sm:%s288]
                %300 = vst [vmem:[%s296 + $0x8] sm:%s288] %v299
                %v301 = vld [vmem:[%s295 + $0x20] sm:%s288]
                %302 = vst [vmem:[%s296 + $0x10] sm:%s288] %v301
                %v303 = vld [vmem:[%s295 + $0x30] sm:%s288]
                %304 = vst [vmem:[%s296 + $0x18] sm:%s288] %v303
              $region65: #{lstm_prediction_forward.1} parent=59 // loop_footer
                %s294 = sadd.s32 1, %s290
              $region66: #{lstm_prediction_forward.1} parent=59 // loop_footer_branch
                %289 = sbr.rel target = $region62
              $region67: #{lstm_prediction_forward.1} parent=59 // loop_exit
                _
            $region60: #{lstm_prediction_forward.1} parent=51 // pred_fallthru
              _
          $region52: #{lstm_prediction_forward.1} parent=47 // pred_fallthru
            _
          %325 = vnop
        $region48: #{lstm_prediction_forward.1} parent=43 // pred_fallthru
          _
      $region44: #{lstm_prediction_forward.1} parent=5 // pred_fallthru
        _
      %p326 = scmp.le.s32.totalorder 1, %s14
      %p327 = scmp.lt.s32.totalorder %s14, 5
      %p328 = pnand %p326, %p327
      %p329 = pneg %p328
      // Predicated region
      $region83: #{lstm_prediction_forward.1} parent=5 // pred_check
        _
      $region84: #{lstm_prediction_forward.1} parent=5 // pred_check_branch
        %331 = sbr.rel (%p328) target = $region86
      $region85: #{lstm_prediction_forward.1} parent=5 // pred_region
        %s332 = ssub.s32 %s14, 1
        %s333 = sand.u32 %s41, 1
        %s334 = sand.u32 %s41, 1
        %s335 = smul.addr %s334, 32
        %s336 = scalar_lea.vmem [#allocation4], %s335
        // Predicated region
        $region87: #{lstm_prediction_forward.1} parent=85 // pred_check
          %p337 = pneg %p54
        $region88: #{lstm_prediction_forward.1} parent=85 // pred_check_branch
          %339 = sbr.rel (%p337) target = $region90
        $region89: #{lstm_prediction_forward.1} parent=85 // pred_region
          _
        $region90: #{lstm_prediction_forward.1} parent=85 // pred_fallthru
          _
        %s340 = sand.u32 %s41, 1
        %s341 = sand.u32 %s41, 1
        %s342 = smul.addr %s341, 32
        %s343 = scalar_lea.vmem [#allocation4], %s342
        %p344 = pneg %p54
        %p345 = pneg %p51
        %p346 = pneg %p75
        %p347 = pneg %p72
        %p348 = pneg %p96
        %p349 = pneg %p93
        %p350 = pneg %p117
        %p351 = pneg %p114
        %p352 = pneg %p138
        %p353 = pneg %p135
        %p354 = pneg %p159
        %p355 = pneg %p156
        %p356 = pneg %p180
        %p357 = pneg %p177
        %p358 = pneg %p201
        %p359 = pneg %p198
        %p360 = pneg %p229
        %p361 = pneg %p226
        %s362 = sand.u32 %s216, 1
        %s363 = sand.u32 %s216, 1
        %s364 = smul.addr %s363, 32
        %s365 = scalar_lea.vmem [#allocation5], %s364
        %s366 = smul.u32 4, %s24
        %s367 = smul.u32 4, %s24
        %p368 = scmp.eq.s32.totalorder %s24, 0
        // Predicated region
        $region91: #{lstm_prediction_forward.1} parent=85 // pred_check
          %p369 = pneg %p368
        $region92: #{lstm_prediction_forward.1} parent=85 // pred_check_branch
          %371 = sbr.rel (%p369) target = $region94
        $region93: #{lstm_prediction_forward.1} parent=85 // pred_region
          %372 = vst [vmem:[#allocation2] sm:$0xff] 0.0
          %373 = vst [vmem:[#allocation2 + $0x8] sm:$0xff] 0.0
          %374 = vst [vmem:[#allocation3] sm:$0xff] 0.0
          %375 = vst [vmem:[#allocation3 + $0x8] sm:$0xff] 0.0
        $region94: #{lstm_prediction_forward.1} parent=85 // pred_fallthru
          _
        %v376 = vld [vmem:[#allocation2] sm:$0xff]
        %v377 = vld [vmem:[#allocation2 + $0x8] sm:$0xff]
        %v378 = vld [vmem:[#allocation3] sm:$0xff]
        %v379 = vld [vmem:[#allocation3 + $0x8] sm:$0xff]
        %v380 = vld [vmem:[%s1] sm:$0xff]
        %v381 = vld [vmem:[%s1 + $0x8] sm:$0xff]
        %v382 = vld [vmem:[%s1 + $0x10] sm:$0xff]
        %v383 = vld [vmem:[%s1 + $0x18] sm:$0xff]
        %v384 = vld [vmem:[%s1 + $0x20] sm:$0xff]
        %v385 = vld [vmem:[%s1 + $0x28] sm:$0xff]
        %v386 = vld [vmem:[%s1 + $0x30] sm:$0xff]
        %v387 = vld [vmem:[%s1 + $0x38] sm:$0xff]
        %v388 = vld [vmem:[%s1 + $0x40] sm:$0xff]
        %v389 = vld [vmem:[%s1 + $0x48] sm:$0xff]
        %v390 = vld [vmem:[%s1 + $0x50] sm:$0xff]
        %v391 = vld [vmem:[%s1 + $0x58] sm:$0xff]
        %v392 = vld [vmem:[%s1 + $0x60] sm:$0xff]
        %v393 = vld [vmem:[%s1 + $0x68] sm:$0xff]
        %v394 = vld [vmem:[%s1 + $0x70] sm:$0xff]
        %v395 = vld [vmem:[%s1 + $0x78] sm:$0xff]
        %v396 = vld [vmem:[%s1 + $0x80] sm:$0xff]
        %v397 = vld [vmem:[%s1 + $0x88] sm:$0xff]
        %v398 = vld [vmem:[%s1 + $0x90] sm:$0xff]
        %v399 = vld [vmem:[%s1 + $0x98] sm:$0xff]
        %v400 = vld [vmem:[%s1 + $0xa0] sm:$0xff]
        %v401 = vld [vmem:[%s1 + $0xa8] sm:$0xff]
        %v402 = vld [vmem:[%s1 + $0xb0] sm:$0xff]
        %v403 = vld [vmem:[%s1 + $0xb8] sm:$0xff]
        %v404 = vld [vmem:[%s1 + $0xc0] sm:$0xff]
        %v405 = vld [vmem:[%s1 + $0xc8] sm:$0xff]
        %v406 = vld [vmem:[%s1 + $0xd0] sm:$0xff]
        %v407 = vld [vmem:[%s1 + $0xd8] sm:$0xff]
        %v408 = vld [vmem:[%s1 + $0xe0] sm:$0xff]
        %v409 = vld [vmem:[%s1 + $0xe8] sm:$0xff]
        %v410 = vld [vmem:[%s1 + $0xf0] sm:$0xff]
        %v411 = vld [vmem:[%s1 + $0xf8] sm:$0xff]
        %v412 = vld [vmem:[%s1 + $0x100] sm:$0xff]
        %v413 = vld [vmem:[%s1 + $0x108] sm:$0xff]
        %v414 = vld [vmem:[%s1 + $0x110] sm:$0xff]
        %v415 = vld [vmem:[%s1 + $0x118] sm:$0xff]
        %v416 = vld [vmem:[%s1 + $0x120] sm:$0xff]
        %v417 = vld [vmem:[%s1 + $0x128] sm:$0xff]
        %v418 = vld [vmem:[%s1 + $0x130] sm:$0xff]
        %v419 = vld [vmem:[%s1 + $0x138] sm:$0xff]
        %v420 = vld [vmem:[%s1 + $0x140] sm:$0xff]
        %v421 = vld [vmem:[%s1 + $0x148] sm:$0xff]
        %v422 = vld [vmem:[%s1 + $0x150] sm:$0xff]
        %v423 = vld [vmem:[%s1 + $0x158] sm:$0xff]
        %v424 = vld [vmem:[%s1 + $0x160] sm:$0xff]
        %v425 = vld [vmem:[%s1 + $0x168] sm:$0xff]
        %v426 = vld [vmem:[%s1 + $0x170] sm:$0xff]
        %v427 = vld [vmem:[%s1 + $0x178] sm:$0xff]
        %v428 = vld [vmem:[%s1 + $0x180] sm:$0xff]
        %v429 = vld [vmem:[%s1 + $0x188] sm:$0xff]
        %v430 = vld [vmem:[%s1 + $0x190] sm:$0xff]
        %v431 = vld [vmem:[%s1 + $0x198] sm:$0xff]
        %v432 = vld [vmem:[%s1 + $0x1a0] sm:$0xff]
        %v433 = vld [vmem:[%s1 + $0x1a8] sm:$0xff]
        %v434 = vld [vmem:[%s1 + $0x1b0] sm:$0xff]
        %v435 = vld [vmem:[%s1 + $0x1b8] sm:$0xff]
        %v436 = vld [vmem:[%s1 + $0x1c0] sm:$0xff]
        %v437 = vld [vmem:[%s1 + $0x1c8] sm:$0xff]
        %v438 = vld [vmem:[%s1 + $0x1d0] sm:$0xff]
        %v439 = vld [vmem:[%s1 + $0x1d8] sm:$0xff]
        %v440 = vld [vmem:[%s1 + $0x1e0] sm:$0xff]
        %v441 = vld [vmem:[%s1 + $0x1e8] sm:$0xff]
        %v442 = vld [vmem:[%s1 + $0x1f0] sm:$0xff]
        %v443 = vld [vmem:[%s1 + $0x1f8] sm:$0xff]
        %v444 = vld [vmem:[%s1 + $0x200] sm:$0xff]
        %v445 = vld [vmem:[%s1 + $0x208] sm:$0xff]
        %v446 = vld [vmem:[%s1 + $0x210] sm:$0xff]
        %v447 = vld [vmem:[%s1 + $0x218] sm:$0xff]
        %v448 = vld [vmem:[%s1 + $0x220] sm:$0xff]
        %v449 = vld [vmem:[%s1 + $0x228] sm:$0xff]
        %v450 = vld [vmem:[%s1 + $0x230] sm:$0xff]
        %v451 = vld [vmem:[%s1 + $0x238] sm:$0xff]
        %v452 = vld [vmem:[%s1 + $0x240] sm:$0xff]
        %v453 = vld [vmem:[%s1 + $0x248] sm:$0xff]
        %v454 = vld [vmem:[%s1 + $0x250] sm:$0xff]
        %v455 = vld [vmem:[%s1 + $0x258] sm:$0xff]
        %v456 = vld [vmem:[%s1 + $0x260] sm:$0xff]
        %v457 = vld [vmem:[%s1 + $0x268] sm:$0xff]
        %v458 = vld [vmem:[%s1 + $0x270] sm:$0xff]
        %v459 = vld [vmem:[%s1 + $0x278] sm:$0xff]
        %v460 = vld [vmem:[%s1 + $0x280] sm:$0xff]
        %v461 = vld [vmem:[%s1 + $0x288] sm:$0xff]
        %v462 = vld [vmem:[%s1 + $0x290] sm:$0xff]
        %v463 = vld [vmem:[%s1 + $0x298] sm:$0xff]
        %v464 = vld [vmem:[%s1 + $0x2a0] sm:$0xff]
        %v465 = vld [vmem:[%s1 + $0x2a8] sm:$0xff]
        %v466 = vld [vmem:[%s1 + $0x2b0] sm:$0xff]
        %v467 = vld [vmem:[%s1 + $0x2b8] sm:$0xff]
        %v468 = vld [vmem:[%s1 + $0x2c0] sm:$0xff]
        %v469 = vld [vmem:[%s1 + $0x2c8] sm:$0xff]
        %v470 = vld [vmem:[%s1 + $0x2d0] sm:$0xff]
        %v471 = vld [vmem:[%s1 + $0x2d8] sm:$0xff]
        %v472 = vld [vmem:[%s1 + $0x2e0] sm:$0xff]
        %v473 = vld [vmem:[%s1 + $0x2e8] sm:$0xff]
        %v474 = vld [vmem:[%s1 + $0x2f0] sm:$0xff]
        %v475 = vld [vmem:[%s1 + $0x2f8] sm:$0xff]
        %v476 = vld [vmem:[%s1 + $0x300] sm:$0xff]
        %v477 = vld [vmem:[%s1 + $0x308] sm:$0xff]
        %v478 = vld [vmem:[%s1 + $0x310] sm:$0xff]
        %v479 = vld [vmem:[%s1 + $0x318] sm:$0xff]
        %v480 = vld [vmem:[%s1 + $0x320] sm:$0xff]
        %v481 = vld [vmem:[%s1 + $0x328] sm:$0xff]
        %v482 = vld [vmem:[%s1 + $0x330] sm:$0xff]
        %v483 = vld [vmem:[%s1 + $0x338] sm:$0xff]
        %v484 = vld [vmem:[%s1 + $0x340] sm:$0xff]
        %v485 = vld [vmem:[%s1 + $0x348] sm:$0xff]
        %v486 = vld [vmem:[%s1 + $0x350] sm:$0xff]
        %v487 = vld [vmem:[%s1 + $0x358] sm:$0xff]
        %v488 = vld [vmem:[%s1 + $0x360] sm:$0xff]
        %v489 = vld [vmem:[%s1 + $0x368] sm:$0xff]
        %v490 = vld [vmem:[%s1 + $0x370] sm:$0xff]
        %v491 = vld [vmem:[%s1 + $0x378] sm:$0xff]
        %v492 = vld [vmem:[%s1 + $0x380] sm:$0xff]
        %v493 = vld [vmem:[%s1 + $0x388] sm:$0xff]
        %v494 = vld [vmem:[%s1 + $0x390] sm:$0xff]
        %v495 = vld [vmem:[%s1 + $0x398] sm:$0xff]
        %v496 = vld [vmem:[%s1 + $0x3a0] sm:$0xff]
        %v497 = vld [vmem:[%s1 + $0x3a8] sm:$0xff]
        %v498 = vld [vmem:[%s1 + $0x3b0] sm:$0xff]
        %v499 = vld [vmem:[%s1 + $0x3b8] sm:$0xff]
        %v500 = vld [vmem:[%s1 + $0x3c0] sm:$0xff]
        %v501 = vld [vmem:[%s1 + $0x3c8] sm:$0xff]
        %v502 = vld [vmem:[%s1 + $0x3d0] sm:$0xff]
        %v503 = vld [vmem:[%s1 + $0x3d8] sm:$0xff]
        %v504 = vld [vmem:[%s1 + $0x3e0] sm:$0xff]
        %v505 = vld [vmem:[%s1 + $0x3e8] sm:$0xff]
        %v506 = vld [vmem:[%s1 + $0x3f0] sm:$0xff]
        %v507 = vld [vmem:[%s1 + $0x3f8] sm:$0xff]
        %v508 = vld [vmem:[%s2] sm:$0xff]
        %v509 = vld [vmem:[%s2 + $0x8] sm:$0xff]
        %v510 = vld [vmem:[%s2 + $0x10] sm:$0xff]
        %v511 = vld [vmem:[%s2 + $0x18] sm:$0xff]
        %v512 = vld [vmem:[%s2 + $0x20] sm:$0xff]
        %v513 = vld [vmem:[%s2 + $0x28] sm:$0xff]
        %v514 = vld [vmem:[%s2 + $0x30] sm:$0xff]
        %v515 = vld [vmem:[%s2 + $0x38] sm:$0xff]
        %v516 = vld [vmem:[%s2 + $0x40] sm:$0xff]
        %v517 = vld [vmem:[%s2 + $0x48] sm:$0xff]
        %v518 = vld [vmem:[%s2 + $0x50] sm:$0xff]
        %v519 = vld [vmem:[%s2 + $0x58] sm:$0xff]
        %v520 = vld [vmem:[%s2 + $0x60] sm:$0xff]
        %v521 = vld [vmem:[%s2 + $0x68] sm:$0xff]
        %v522 = vld [vmem:[%s2 + $0x70] sm:$0xff]
        %v523 = vld [vmem:[%s2 + $0x78] sm:$0xff]
        %v524 = vld [vmem:[%s2 + $0x80] sm:$0xff]
        %v525 = vld [vmem:[%s2 + $0x88] sm:$0xff]
        %v526 = vld [vmem:[%s2 + $0x90] sm:$0xff]
        %v527 = vld [vmem:[%s2 + $0x98] sm:$0xff]
        %v528 = vld [vmem:[%s2 + $0xa0] sm:$0xff]
        %v529 = vld [vmem:[%s2 + $0xa8] sm:$0xff]
        %v530 = vld [vmem:[%s2 + $0xb0] sm:$0xff]
        %v531 = vld [vmem:[%s2 + $0xb8] sm:$0xff]
        %v532 = vld [vmem:[%s2 + $0xc0] sm:$0xff]
        %v533 = vld [vmem:[%s2 + $0xc8] sm:$0xff]
        %v534 = vld [vmem:[%s2 + $0xd0] sm:$0xff]
        %v535 = vld [vmem:[%s2 + $0xd8] sm:$0xff]
        %v536 = vld [vmem:[%s2 + $0xe0] sm:$0xff]
        %v537 = vld [vmem:[%s2 + $0xe8] sm:$0xff]
        %v538 = vld [vmem:[%s2 + $0xf0] sm:$0xff]
        %v539 = vld [vmem:[%s2 + $0xf8] sm:$0xff]
        %v540 = vld [vmem:[%s2 + $0x100] sm:$0xff]
        %v541 = vld [vmem:[%s2 + $0x108] sm:$0xff]
        %v542 = vld [vmem:[%s2 + $0x110] sm:$0xff]
        %v543 = vld [vmem:[%s2 + $0x118] sm:$0xff]
        %v544 = vld [vmem:[%s2 + $0x120] sm:$0xff]
        %v545 = vld [vmem:[%s2 + $0x128] sm:$0xff]
        %v546 = vld [vmem:[%s2 + $0x130] sm:$0xff]
        %v547 = vld [vmem:[%s2 + $0x138] sm:$0xff]
        %v548 = vld [vmem:[%s2 + $0x140] sm:$0xff]
        %v549 = vld [vmem:[%s2 + $0x148] sm:$0xff]
        %v550 = vld [vmem:[%s2 + $0x150] sm:$0xff]
        %v551 = vld [vmem:[%s2 + $0x158] sm:$0xff]
        %v552 = vld [vmem:[%s2 + $0x160] sm:$0xff]
        %v553 = vld [vmem:[%s2 + $0x168] sm:$0xff]
        %v554 = vld [vmem:[%s2 + $0x170] sm:$0xff]
        %v555 = vld [vmem:[%s2 + $0x178] sm:$0xff]
        %v556 = vld [vmem:[%s2 + $0x180] sm:$0xff]
        %v557 = vld [vmem:[%s2 + $0x188] sm:$0xff]
        %v558 = vld [vmem:[%s2 + $0x190] sm:$0xff]
        %v559 = vld [vmem:[%s2 + $0x198] sm:$0xff]
        %v560 = vld [vmem:[%s2 + $0x1a0] sm:$0xff]
        %v561 = vld [vmem:[%s2 + $0x1a8] sm:$0xff]
        %v562 = vld [vmem:[%s2 + $0x1b0] sm:$0xff]
        %v563 = vld [vmem:[%s2 + $0x1b8] sm:$0xff]
        %v564 = vld [vmem:[%s2 + $0x1c0] sm:$0xff]
        %v565 = vld [vmem:[%s2 + $0x1c8] sm:$0xff]
        %v566 = vld [vmem:[%s2 + $0x1d0] sm:$0xff]
        %v567 = vld [vmem:[%s2 + $0x1d8] sm:$0xff]
        %v568 = vld [vmem:[%s2 + $0x1e0] sm:$0xff]
        %v569 = vld [vmem:[%s2 + $0x1e8] sm:$0xff]
        %v570 = vld [vmem:[%s2 + $0x1f0] sm:$0xff]
        %v571 = vld [vmem:[%s2 + $0x1f8] sm:$0xff]
        %v572 = vld [vmem:[%s2 + $0x200] sm:$0xff]
        %v573 = vld [vmem:[%s2 + $0x208] sm:$0xff]
        %v574 = vld [vmem:[%s2 + $0x210] sm:$0xff]
        %v575 = vld [vmem:[%s2 + $0x218] sm:$0xff]
        %v576 = vld [vmem:[%s2 + $0x220] sm:$0xff]
        %v577 = vld [vmem:[%s2 + $0x228] sm:$0xff]
        %v578 = vld [vmem:[%s2 + $0x230] sm:$0xff]
        %v579 = vld [vmem:[%s2 + $0x238] sm:$0xff]
        %v580 = vld [vmem:[%s2 + $0x240] sm:$0xff]
        %v581 = vld [vmem:[%s2 + $0x248] sm:$0xff]
        %v582 = vld [vmem:[%s2 + $0x250] sm:$0xff]
        %v583 = vld [vmem:[%s2 + $0x258] sm:$0xff]
        %v584 = vld [vmem:[%s2 + $0x260] sm:$0xff]
        %v585 = vld [vmem:[%s2 + $0x268] sm:$0xff]
        %v586 = vld [vmem:[%s2 + $0x270] sm:$0xff]
        %v587 = vld [vmem:[%s2 + $0x278] sm:$0xff]
        %v588 = vld [vmem:[%s2 + $0x280] sm:$0xff]
        %v589 = vld [vmem:[%s2 + $0x288] sm:$0xff]
        %v590 = vld [vmem:[%s2 + $0x290] sm:$0xff]
        %v591 = vld [vmem:[%s2 + $0x298] sm:$0xff]
        %v592 = vld [vmem:[%s2 + $0x2a0] sm:$0xff]
        %v593 = vld [vmem:[%s2 + $0x2a8] sm:$0xff]
        %v594 = vld [vmem:[%s2 + $0x2b0] sm:$0xff]
        %v595 = vld [vmem:[%s2 + $0x2b8] sm:$0xff]
        %v596 = vld [vmem:[%s2 + $0x2c0] sm:$0xff]
        %v597 = vld [vmem:[%s2 + $0x2c8] sm:$0xff]
        %v598 = vld [vmem:[%s2 + $0x2d0] sm:$0xff]
        %v599 = vld [vmem:[%s2 + $0x2d8] sm:$0xff]
        %v600 = vld [vmem:[%s2 + $0x2e0] sm:$0xff]
        %v601 = vld [vmem:[%s2 + $0x2e8] sm:$0xff]
        %v602 = vld [vmem:[%s2 + $0x2f0] sm:$0xff]
        %v603 = vld [vmem:[%s2 + $0x2f8] sm:$0xff]
        %v604 = vld [vmem:[%s2 + $0x300] sm:$0xff]
        %v605 = vld [vmem:[%s2 + $0x308] sm:$0xff]
        %v606 = vld [vmem:[%s2 + $0x310] sm:$0xff]
        %v607 = vld [vmem:[%s2 + $0x318] sm:$0xff]
        %v608 = vld [vmem:[%s2 + $0x320] sm:$0xff]
        %v609 = vld [vmem:[%s2 + $0x328] sm:$0xff]
        %v610 = vld [vmem:[%s2 + $0x330] sm:$0xff]
        %v611 = vld [vmem:[%s2 + $0x338] sm:$0xff]
        %v612 = vld [vmem:[%s2 + $0x340] sm:$0xff]
        %v613 = vld [vmem:[%s2 + $0x348] sm:$0xff]
        %v614 = vld [vmem:[%s2 + $0x350] sm:$0xff]
        %v615 = vld [vmem:[%s2 + $0x358] sm:$0xff]
        %v616 = vld [vmem:[%s2 + $0x360] sm:$0xff]
        %v617 = vld [vmem:[%s2 + $0x368] sm:$0xff]
        %v618 = vld [vmem:[%s2 + $0x370] sm:$0xff]
        %v619 = vld [vmem:[%s2 + $0x378] sm:$0xff]
        %v620 = vld [vmem:[%s2 + $0x380] sm:$0xff]
        %v621 = vld [vmem:[%s2 + $0x388] sm:$0xff]
        %v622 = vld [vmem:[%s2 + $0x390] sm:$0xff]
        %v623 = vld [vmem:[%s2 + $0x398] sm:$0xff]
        %v624 = vld [vmem:[%s2 + $0x3a0] sm:$0xff]
        %v625 = vld [vmem:[%s2 + $0x3a8] sm:$0xff]
        %v626 = vld [vmem:[%s2 + $0x3b0] sm:$0xff]
        %v627 = vld [vmem:[%s2 + $0x3b8] sm:$0xff]
        %v628 = vld [vmem:[%s2 + $0x3c0] sm:$0xff]
        %v629 = vld [vmem:[%s2 + $0x3c8] sm:$0xff]
        %v630 = vld [vmem:[%s2 + $0x3d0] sm:$0xff]
        %v631 = vld [vmem:[%s2 + $0x3d8] sm:$0xff]
        %v632 = vld [vmem:[%s2 + $0x3e0] sm:$0xff]
        %v633 = vld [vmem:[%s2 + $0x3e8] sm:$0xff]
        %v634 = vld [vmem:[%s2 + $0x3f0] sm:$0xff]
        %v635 = vld [vmem:[%s2 + $0x3f8] sm:$0xff]
        %v636 = vld [vmem:[%s2 + $0x400] sm:$0xff]
        %v637 = vld [vmem:[%s2 + $0x408] sm:$0xff]
        %v638 = vld [vmem:[%s2 + $0x410] sm:$0xff]
        %v639 = vld [vmem:[%s2 + $0x418] sm:$0xff]
        %v640 = vld [vmem:[%s2 + $0x420] sm:$0xff]
        %v641 = vld [vmem:[%s2 + $0x428] sm:$0xff]
        %v642 = vld [vmem:[%s2 + $0x430] sm:$0xff]
        %v643 = vld [vmem:[%s2 + $0x438] sm:$0xff]
        %v644 = vld [vmem:[%s2 + $0x440] sm:$0xff]
        %v645 = vld [vmem:[%s2 + $0x448] sm:$0xff]
        %v646 = vld [vmem:[%s2 + $0x450] sm:$0xff]
        %v647 = vld [vmem:[%s2 + $0x458] sm:$0xff]
        %v648 = vld [vmem:[%s2 + $0x460] sm:$0xff]
        %v649 = vld [vmem:[%s2 + $0x468] sm:$0xff]
        %v650 = vld [vmem:[%s2 + $0x470] sm:$0xff]
        %v651 = vld [vmem:[%s2 + $0x478] sm:$0xff]
        %v652 = vld [vmem:[%s2 + $0x480] sm:$0xff]
        %v653 = vld [vmem:[%s2 + $0x488] sm:$0xff]
        %v654 = vld [vmem:[%s2 + $0x490] sm:$0xff]
        %v655 = vld [vmem:[%s2 + $0x498] sm:$0xff]
        %v656 = vld [vmem:[%s2 + $0x4a0] sm:$0xff]
        %v657 = vld [vmem:[%s2 + $0x4a8] sm:$0xff]
        %v658 = vld [vmem:[%s2 + $0x4b0] sm:$0xff]
        %v659 = vld [vmem:[%s2 + $0x4b8] sm:$0xff]
        %v660 = vld [vmem:[%s2 + $0x4c0] sm:$0xff]
        %v661 = vld [vmem:[%s2 + $0x4c8] sm:$0xff]
        %v662 = vld [vmem:[%s2 + $0x4d0] sm:$0xff]
        %v663 = vld [vmem:[%s2 + $0x4d8] sm:$0xff]
        %v664 = vld [vmem:[%s2 + $0x4e0] sm:$0xff]
        %v665 = vld [vmem:[%s2 + $0x4e8] sm:$0xff]
        %v666 = vld [vmem:[%s2 + $0x4f0] sm:$0xff]
        %v667 = vld [vmem:[%s2 + $0x4f8] sm:$0xff]
        %v668 = vld [vmem:[%s2 + $0x500] sm:$0xff]
        %v669 = vld [vmem:[%s2 + $0x508] sm:$0xff]
        %v670 = vld [vmem:[%s2 + $0x510] sm:$0xff]
        %v671 = vld [vmem:[%s2 + $0x518] sm:$0xff]
        %v672 = vld [vmem:[%s2 + $0x520] sm:$0xff]
        %v673 = vld [vmem:[%s2 + $0x528] sm:$0xff]
        %v674 = vld [vmem:[%s2 + $0x530] sm:$0xff]
        %v675 = vld [vmem:[%s2 + $0x538] sm:$0xff]
        %v676 = vld [vmem:[%s2 + $0x540] sm:$0xff]
        %v677 = vld [vmem:[%s2 + $0x548] sm:$0xff]
        %v678 = vld [vmem:[%s2 + $0x550] sm:$0xff]
        %v679 = vld [vmem:[%s2 + $0x558] sm:$0xff]
        %v680 = vld [vmem:[%s2 + $0x560] sm:$0xff]
        %v681 = vld [vmem:[%s2 + $0x568] sm:$0xff]
        %v682 = vld [vmem:[%s2 + $0x570] sm:$0xff]
        %v683 = vld [vmem:[%s2 + $0x578] sm:$0xff]
        %v684 = vld [vmem:[%s2 + $0x580] sm:$0xff]
        %v685 = vld [vmem:[%s2 + $0x588] sm:$0xff]
        %v686 = vld [vmem:[%s2 + $0x590] sm:$0xff]
        %v687 = vld [vmem:[%s2 + $0x598] sm:$0xff]
        %v688 = vld [vmem:[%s2 + $0x5a0] sm:$0xff]
        %v689 = vld [vmem:[%s2 + $0x5a8] sm:$0xff]
        %v690 = vld [vmem:[%s2 + $0x5b0] sm:$0xff]
        %v691 = vld [vmem:[%s2 + $0x5b8] sm:$0xff]
        %v692 = vld [vmem:[%s2 + $0x5c0] sm:$0xff]
        %v693 = vld [vmem:[%s2 + $0x5c8] sm:$0xff]
        %v694 = vld [vmem:[%s2 + $0x5d0] sm:$0xff]
        %v695 = vld [vmem:[%s2 + $0x5d8] sm:$0xff]
        %v696 = vld [vmem:[%s2 + $0x5e0] sm:$0xff]
        %v697 = vld [vmem:[%s2 + $0x5e8] sm:$0xff]
        %v698 = vld [vmem:[%s2 + $0x5f0] sm:$0xff]
        %v699 = vld [vmem:[%s2 + $0x5f8] sm:$0xff]
        %v700 = vld [vmem:[%s2 + $0x600] sm:$0xff]
        %v701 = vld [vmem:[%s2 + $0x608] sm:$0xff]
        %v702 = vld [vmem:[%s2 + $0x610] sm:$0xff]
        %v703 = vld [vmem:[%s2 + $0x618] sm:$0xff]
        %v704 = vld [vmem:[%s2 + $0x620] sm:$0xff]
        %v705 = vld [vmem:[%s2 + $0x628] sm:$0xff]
        %v706 = vld [vmem:[%s2 + $0x630] sm:$0xff]
        %v707 = vld [vmem:[%s2 + $0x638] sm:$0xff]
        %v708 = vld [vmem:[%s2 + $0x640] sm:$0xff]
        %v709 = vld [vmem:[%s2 + $0x648] sm:$0xff]
        %v710 = vld [vmem:[%s2 + $0x650] sm:$0xff]
        %v711 = vld [vmem:[%s2 + $0x658] sm:$0xff]
        %v712 = vld [vmem:[%s2 + $0x660] sm:$0xff]
        %v713 = vld [vmem:[%s2 + $0x668] sm:$0xff]
        %v714 = vld [vmem:[%s2 + $0x670] sm:$0xff]
        %v715 = vld [vmem:[%s2 + $0x678] sm:$0xff]
        %v716 = vld [vmem:[%s2 + $0x680] sm:$0xff]
        %v717 = vld [vmem:[%s2 + $0x688] sm:$0xff]
        %v718 = vld [vmem:[%s2 + $0x690] sm:$0xff]
        %v719 = vld [vmem:[%s2 + $0x698] sm:$0xff]
        %v720 = vld [vmem:[%s2 + $0x6a0] sm:$0xff]
        %v721 = vld [vmem:[%s2 + $0x6a8] sm:$0xff]
        %v722 = vld [vmem:[%s2 + $0x6b0] sm:$0xff]
        %v723 = vld [vmem:[%s2 + $0x6b8] sm:$0xff]
        %v724 = vld [vmem:[%s2 + $0x6c0] sm:$0xff]
        %v725 = vld [vmem:[%s2 + $0x6c8] sm:$0xff]
        %v726 = vld [vmem:[%s2 + $0x6d0] sm:$0xff]
        %v727 = vld [vmem:[%s2 + $0x6d8] sm:$0xff]
        %v728 = vld [vmem:[%s2 + $0x6e0] sm:$0xff]
        %v729 = vld [vmem:[%s2 + $0x6e8] sm:$0xff]
        %v730 = vld [vmem:[%s2 + $0x6f0] sm:$0xff]
        %v731 = vld [vmem:[%s2 + $0x6f8] sm:$0xff]
        %v732 = vld [vmem:[%s2 + $0x700] sm:$0xff]
        %v733 = vld [vmem:[%s2 + $0x708] sm:$0xff]
        %v734 = vld [vmem:[%s2 + $0x710] sm:$0xff]
        %v735 = vld [vmem:[%s2 + $0x718] sm:$0xff]
        %v736 = vld [vmem:[%s2 + $0x720] sm:$0xff]
        %v737 = vld [vmem:[%s2 + $0x728] sm:$0xff]
        %v738 = vld [vmem:[%s2 + $0x730] sm:$0xff]
        %v739 = vld [vmem:[%s2 + $0x738] sm:$0xff]
        %v740 = vld [vmem:[%s2 + $0x740] sm:$0xff]
        %v741 = vld [vmem:[%s2 + $0x748] sm:$0xff]
        %v742 = vld [vmem:[%s2 + $0x750] sm:$0xff]
        %v743 = vld [vmem:[%s2 + $0x758] sm:$0xff]
        %v744 = vld [vmem:[%s2 + $0x760] sm:$0xff]
        %v745 = vld [vmem:[%s2 + $0x768] sm:$0xff]
        %v746 = vld [vmem:[%s2 + $0x770] sm:$0xff]
        %v747 = vld [vmem:[%s2 + $0x778] sm:$0xff]
        %v748 = vld [vmem:[%s2 + $0x780] sm:$0xff]
        %v749 = vld [vmem:[%s2 + $0x788] sm:$0xff]
        %v750 = vld [vmem:[%s2 + $0x790] sm:$0xff]
        %v751 = vld [vmem:[%s2 + $0x798] sm:$0xff]
        %v752 = vld [vmem:[%s2 + $0x7a0] sm:$0xff]
        %v753 = vld [vmem:[%s2 + $0x7a8] sm:$0xff]
        %v754 = vld [vmem:[%s2 + $0x7b0] sm:$0xff]
        %v755 = vld [vmem:[%s2 + $0x7b8] sm:$0xff]
        %v756 = vld [vmem:[%s2 + $0x7c0] sm:$0xff]
        %v757 = vld [vmem:[%s2 + $0x7c8] sm:$0xff]
        %v758 = vld [vmem:[%s2 + $0x7d0] sm:$0xff]
        %v759 = vld [vmem:[%s2 + $0x7d8] sm:$0xff]
        %v760 = vld [vmem:[%s2 + $0x7e0] sm:$0xff]
        %v761 = vld [vmem:[%s2 + $0x7e8] sm:$0xff]
        %v762 = vld [vmem:[%s2 + $0x7f0] sm:$0xff]
        %v763 = vld [vmem:[%s2 + $0x7f8] sm:$0xff]
        %v764 = vld [vmem:[%s4] sm:$0xff]
        %v765 = vld [vmem:[%s4 + $0x8] sm:$0xff]
        %v766 = vld [vmem:[%s4 + $0x10] sm:$0xff]
        %v767 = vld [vmem:[%s4 + $0x18] sm:$0xff]
        %v768 = vld [vmem:[%s4 + $0x20] sm:$0xff]
        %v769 = vld [vmem:[%s4 + $0x28] sm:$0xff]
        %v770 = vld [vmem:[%s4 + $0x30] sm:$0xff]
        %v771 = vld [vmem:[%s4 + $0x38] sm:$0xff]
        %v772 = vld [vmem:[%s4 + $0x40] sm:$0xff]
        %v773 = vld [vmem:[%s4 + $0x48] sm:$0xff]
        %v774 = vld [vmem:[%s4 + $0x50] sm:$0xff]
        %v775 = vld [vmem:[%s4 + $0x58] sm:$0xff]
        %v776 = vld [vmem:[%s4 + $0x60] sm:$0xff]
        %v777 = vld [vmem:[%s4 + $0x68] sm:$0xff]
        %v778 = vld [vmem:[%s4 + $0x70] sm:$0xff]
        %v779 = vld [vmem:[%s4 + $0x78] sm:$0xff]
        %v780 = vld [vmem:[%s4 + $0x80] sm:$0xff]
        %v781 = vld [vmem:[%s4 + $0x88] sm:$0xff]
        %v782 = vld [vmem:[%s4 + $0x90] sm:$0xff]
        %v783 = vld [vmem:[%s4 + $0x98] sm:$0xff]
        %v784 = vld [vmem:[%s4 + $0xa0] sm:$0xff]
        %v785 = vld [vmem:[%s4 + $0xa8] sm:$0xff]
        %v786 = vld [vmem:[%s4 + $0xb0] sm:$0xff]
        %v787 = vld [vmem:[%s4 + $0xb8] sm:$0xff]
        %v788 = vld [vmem:[%s4 + $0xc0] sm:$0xff]
        %v789 = vld [vmem:[%s4 + $0xc8] sm:$0xff]
        %v790 = vld [vmem:[%s4 + $0xd0] sm:$0xff]
        %v791 = vld [vmem:[%s4 + $0xd8] sm:$0xff]
        %v792 = vld [vmem:[%s4 + $0xe0] sm:$0xff]
        %v793 = vld [vmem:[%s4 + $0xe8] sm:$0xff]
        %v794 = vld [vmem:[%s4 + $0xf0] sm:$0xff]
        %v795 = vld [vmem:[%s4 + $0xf8] sm:$0xff]
        %v796 = vld [vmem:[%s4 + $0x100] sm:$0xff]
        %v797 = vld [vmem:[%s4 + $0x108] sm:$0xff]
        %v798 = vld [vmem:[%s4 + $0x110] sm:$0xff]
        %v799 = vld [vmem:[%s4 + $0x118] sm:$0xff]
        %v800 = vld [vmem:[%s4 + $0x120] sm:$0xff]
        %v801 = vld [vmem:[%s4 + $0x128] sm:$0xff]
        %v802 = vld [vmem:[%s4 + $0x130] sm:$0xff]
        %v803 = vld [vmem:[%s4 + $0x138] sm:$0xff]
        %v804 = vld [vmem:[%s4 + $0x140] sm:$0xff]
        %v805 = vld [vmem:[%s4 + $0x148] sm:$0xff]
        %v806 = vld [vmem:[%s4 + $0x150] sm:$0xff]
        %v807 = vld [vmem:[%s4 + $0x158] sm:$0xff]
        %v808 = vld [vmem:[%s4 + $0x160] sm:$0xff]
        %v809 = vld [vmem:[%s4 + $0x168] sm:$0xff]
        %v810 = vld [vmem:[%s4 + $0x170] sm:$0xff]
        %v811 = vld [vmem:[%s4 + $0x178] sm:$0xff]
        %v812 = vld [vmem:[%s4 + $0x180] sm:$0xff]
        %v813 = vld [vmem:[%s4 + $0x188] sm:$0xff]
        %v814 = vld [vmem:[%s4 + $0x190] sm:$0xff]
        %v815 = vld [vmem:[%s4 + $0x198] sm:$0xff]
        %v816 = vld [vmem:[%s4 + $0x1a0] sm:$0xff]
        %v817 = vld [vmem:[%s4 + $0x1a8] sm:$0xff]
        %v818 = vld [vmem:[%s4 + $0x1b0] sm:$0xff]
        %v819 = vld [vmem:[%s4 + $0x1b8] sm:$0xff]
        %v820 = vld [vmem:[%s4 + $0x1c0] sm:$0xff]
        %v821 = vld [vmem:[%s4 + $0x1c8] sm:$0xff]
        %v822 = vld [vmem:[%s4 + $0x1d0] sm:$0xff]
        %v823 = vld [vmem:[%s4 + $0x1d8] sm:$0xff]
        %v824 = vld [vmem:[%s4 + $0x1e0] sm:$0xff]
        %v825 = vld [vmem:[%s4 + $0x1e8] sm:$0xff]
        %v826 = vld [vmem:[%s4 + $0x1f0] sm:$0xff]
        %v827 = vld [vmem:[%s4 + $0x1f8] sm:$0xff]
        %v828 = vld [vmem:[%s4 + $0x200] sm:$0xff]
        %v829 = vld [vmem:[%s4 + $0x208] sm:$0xff]
        %v830 = vld [vmem:[%s4 + $0x210] sm:$0xff]
        %v831 = vld [vmem:[%s4 + $0x218] sm:$0xff]
        %v832 = vld [vmem:[%s4 + $0x220] sm:$0xff]
        %v833 = vld [vmem:[%s4 + $0x228] sm:$0xff]
        %v834 = vld [vmem:[%s4 + $0x230] sm:$0xff]
        %v835 = vld [vmem:[%s4 + $0x238] sm:$0xff]
        %v836 = vld [vmem:[%s4 + $0x240] sm:$0xff]
        %v837 = vld [vmem:[%s4 + $0x248] sm:$0xff]
        %v838 = vld [vmem:[%s4 + $0x250] sm:$0xff]
        %v839 = vld [vmem:[%s4 + $0x258] sm:$0xff]
        %v840 = vld [vmem:[%s4 + $0x260] sm:$0xff]
        %v841 = vld [vmem:[%s4 + $0x268] sm:$0xff]
        %v842 = vld [vmem:[%s4 + $0x270] sm:$0xff]
        %v843 = vld [vmem:[%s4 + $0x278] sm:$0xff]
        %v844 = vld [vmem:[%s4 + $0x280] sm:$0xff]
        %v845 = vld [vmem:[%s4 + $0x288] sm:$0xff]
        %v846 = vld [vmem:[%s4 + $0x290] sm:$0xff]
        %v847 = vld [vmem:[%s4 + $0x298] sm:$0xff]
        %v848 = vld [vmem:[%s4 + $0x2a0] sm:$0xff]
        %v849 = vld [vmem:[%s4 + $0x2a8] sm:$0xff]
        %v850 = vld [vmem:[%s4 + $0x2b0] sm:$0xff]
        %v851 = vld [vmem:[%s4 + $0x2b8] sm:$0xff]
        %v852 = vld [vmem:[%s4 + $0x2c0] sm:$0xff]
        %v853 = vld [vmem:[%s4 + $0x2c8] sm:$0xff]
        %v854 = vld [vmem:[%s4 + $0x2d0] sm:$0xff]
        %v855 = vld [vmem:[%s4 + $0x2d8] sm:$0xff]
        %v856 = vld [vmem:[%s4 + $0x2e0] sm:$0xff]
        %v857 = vld [vmem:[%s4 + $0x2e8] sm:$0xff]
        %v858 = vld [vmem:[%s4 + $0x2f0] sm:$0xff]
        %v859 = vld [vmem:[%s4 + $0x2f8] sm:$0xff]
        %v860 = vld [vmem:[%s4 + $0x300] sm:$0xff]
        %v861 = vld [vmem:[%s4 + $0x308] sm:$0xff]
        %v862 = vld [vmem:[%s4 + $0x310] sm:$0xff]
        %v863 = vld [vmem:[%s4 + $0x318] sm:$0xff]
        %v864 = vld [vmem:[%s4 + $0x320] sm:$0xff]
        %v865 = vld [vmem:[%s4 + $0x328] sm:$0xff]
        %v866 = vld [vmem:[%s4 + $0x330] sm:$0xff]
        %v867 = vld [vmem:[%s4 + $0x338] sm:$0xff]
        %v868 = vld [vmem:[%s4 + $0x340] sm:$0xff]
        %v869 = vld [vmem:[%s4 + $0x348] sm:$0xff]
        %v870 = vld [vmem:[%s4 + $0x350] sm:$0xff]
        %v871 = vld [vmem:[%s4 + $0x358] sm:$0xff]
        %v872 = vld [vmem:[%s4 + $0x360] sm:$0xff]
        %v873 = vld [vmem:[%s4 + $0x368] sm:$0xff]
        %v874 = vld [vmem:[%s4 + $0x370] sm:$0xff]
        %v875 = vld [vmem:[%s4 + $0x378] sm:$0xff]
        %v876 = vld [vmem:[%s4 + $0x380] sm:$0xff]
        %v877 = vld [vmem:[%s4 + $0x388] sm:$0xff]
        %v878 = vld [vmem:[%s4 + $0x390] sm:$0xff]
        %v879 = vld [vmem:[%s4 + $0x398] sm:$0xff]
        %v880 = vld [vmem:[%s4 + $0x3a0] sm:$0xff]
        %v881 = vld [vmem:[%s4 + $0x3a8] sm:$0xff]
        %v882 = vld [vmem:[%s4 + $0x3b0] sm:$0xff]
        %v883 = vld [vmem:[%s4 + $0x3b8] sm:$0xff]
        %v884 = vld [vmem:[%s4 + $0x3c0] sm:$0xff]
        %v885 = vld [vmem:[%s4 + $0x3c8] sm:$0xff]
        %v886 = vld [vmem:[%s4 + $0x3d0] sm:$0xff]
        %v887 = vld [vmem:[%s4 + $0x3d8] sm:$0xff]
        %v888 = vld [vmem:[%s4 + $0x3e0] sm:$0xff]
        %v889 = vld [vmem:[%s4 + $0x3e8] sm:$0xff]
        %v890 = vld [vmem:[%s4 + $0x3f0] sm:$0xff]
        %v891 = vld [vmem:[%s4 + $0x3f8] sm:$0xff]
        %v892 = vld [vmem:[%s4 + $0x400] sm:$0xff]
        %v893 = vld [vmem:[%s4 + $0x408] sm:$0xff]
        %v894 = vld [vmem:[%s4 + $0x410] sm:$0xff]
        %v895 = vld [vmem:[%s4 + $0x418] sm:$0xff]
        %v896 = vld [vmem:[%s4 + $0x420] sm:$0xff]
        %v897 = vld [vmem:[%s4 + $0x428] sm:$0xff]
        %v898 = vld [vmem:[%s4 + $0x430] sm:$0xff]
        %v899 = vld [vmem:[%s4 + $0x438] sm:$0xff]
        %v900 = vld [vmem:[%s4 + $0x440] sm:$0xff]
        %v901 = vld [vmem:[%s4 + $0x448] sm:$0xff]
        %v902 = vld [vmem:[%s4 + $0x450] sm:$0xff]
        %v903 = vld [vmem:[%s4 + $0x458] sm:$0xff]
        %v904 = vld [vmem:[%s4 + $0x460] sm:$0xff]
        %v905 = vld [vmem:[%s4 + $0x468] sm:$0xff]
        %v906 = vld [vmem:[%s4 + $0x470] sm:$0xff]
        %v907 = vld [vmem:[%s4 + $0x478] sm:$0xff]
        %v908 = vld [vmem:[%s4 + $0x480] sm:$0xff]
        %v909 = vld [vmem:[%s4 + $0x488] sm:$0xff]
        %v910 = vld [vmem:[%s4 + $0x490] sm:$0xff]
        %v911 = vld [vmem:[%s4 + $0x498] sm:$0xff]
        %v912 = vld [vmem:[%s4 + $0x4a0] sm:$0xff]
        %v913 = vld [vmem:[%s4 + $0x4a8] sm:$0xff]
        %v914 = vld [vmem:[%s4 + $0x4b0] sm:$0xff]
        %v915 = vld [vmem:[%s4 + $0x4b8] sm:$0xff]
        %v916 = vld [vmem:[%s4 + $0x4c0] sm:$0xff]
        %v917 = vld [vmem:[%s4 + $0x4c8] sm:$0xff]
        %v918 = vld [vmem:[%s4 + $0x4d0] sm:$0xff]
        %v919 = vld [vmem:[%s4 + $0x4d8] sm:$0xff]
        %v920 = vld [vmem:[%s4 + $0x4e0] sm:$0xff]
        %v921 = vld [vmem:[%s4 + $0x4e8] sm:$0xff]
        %v922 = vld [vmem:[%s4 + $0x4f0] sm:$0xff]
        %v923 = vld [vmem:[%s4 + $0x4f8] sm:$0xff]
        %v924 = vld [vmem:[%s4 + $0x500] sm:$0xff]
        %v925 = vld [vmem:[%s4 + $0x508] sm:$0xff]
        %v926 = vld [vmem:[%s4 + $0x510] sm:$0xff]
        %v927 = vld [vmem:[%s4 + $0x518] sm:$0xff]
        %v928 = vld [vmem:[%s4 + $0x520] sm:$0xff]
        %v929 = vld [vmem:[%s4 + $0x528] sm:$0xff]
        %v930 = vld [vmem:[%s4 + $0x530] sm:$0xff]
        %v931 = vld [vmem:[%s4 + $0x538] sm:$0xff]
        %v932 = vld [vmem:[%s4 + $0x540] sm:$0xff]
        %v933 = vld [vmem:[%s4 + $0x548] sm:$0xff]
        %v934 = vld [vmem:[%s4 + $0x550] sm:$0xff]
        %v935 = vld [vmem:[%s4 + $0x558] sm:$0xff]
        %v936 = vld [vmem:[%s4 + $0x560] sm:$0xff]
        %v937 = vld [vmem:[%s4 + $0x568] sm:$0xff]
        %v938 = vld [vmem:[%s4 + $0x570] sm:$0xff]
        %v939 = vld [vmem:[%s4 + $0x578] sm:$0xff]
        %v940 = vld [vmem:[%s4 + $0x580] sm:$0xff]
        %v941 = vld [vmem:[%s4 + $0x588] sm:$0xff]
        %v942 = vld [vmem:[%s4 + $0x590] sm:$0xff]
        %v943 = vld [vmem:[%s4 + $0x598] sm:$0xff]
        %v944 = vld [vmem:[%s4 + $0x5a0] sm:$0xff]
        %v945 = vld [vmem:[%s4 + $0x5a8] sm:$0xff]
        %v946 = vld [vmem:[%s4 + $0x5b0] sm:$0xff]
        %v947 = vld [vmem:[%s4 + $0x5b8] sm:$0xff]
        %v948 = vld [vmem:[%s4 + $0x5c0] sm:$0xff]
        %v949 = vld [vmem:[%s4 + $0x5c8] sm:$0xff]
        %v950 = vld [vmem:[%s4 + $0x5d0] sm:$0xff]
        %v951 = vld [vmem:[%s4 + $0x5d8] sm:$0xff]
        %v952 = vld [vmem:[%s4 + $0x5e0] sm:$0xff]
        %v953 = vld [vmem:[%s4 + $0x5e8] sm:$0xff]
        %v954 = vld [vmem:[%s4 + $0x5f0] sm:$0xff]
        %v955 = vld [vmem:[%s4 + $0x5f8] sm:$0xff]
        %v956 = vld [vmem:[%s4 + $0x600] sm:$0xff]
        %v957 = vld [vmem:[%s4 + $0x608] sm:$0xff]
        %v958 = vld [vmem:[%s4 + $0x610] sm:$0xff]
        %v959 = vld [vmem:[%s4 + $0x618] sm:$0xff]
        %v960 = vld [vmem:[%s4 + $0x620] sm:$0xff]
        %v961 = vld [vmem:[%s4 + $0x628] sm:$0xff]
        %v962 = vld [vmem:[%s4 + $0x630] sm:$0xff]
        %v963 = vld [vmem:[%s4 + $0x638] sm:$0xff]
        %v964 = vld [vmem:[%s4 + $0x640] sm:$0xff]
        %v965 = vld [vmem:[%s4 + $0x648] sm:$0xff]
        %v966 = vld [vmem:[%s4 + $0x650] sm:$0xff]
        %v967 = vld [vmem:[%s4 + $0x658] sm:$0xff]
        %v968 = vld [vmem:[%s4 + $0x660] sm:$0xff]
        %v969 = vld [vmem:[%s4 + $0x668] sm:$0xff]
        %v970 = vld [vmem:[%s4 + $0x670] sm:$0xff]
        %v971 = vld [vmem:[%s4 + $0x678] sm:$0xff]
        %v972 = vld [vmem:[%s4 + $0x680] sm:$0xff]
        %v973 = vld [vmem:[%s4 + $0x688] sm:$0xff]
        %v974 = vld [vmem:[%s4 + $0x690] sm:$0xff]
        %v975 = vld [vmem:[%s4 + $0x698] sm:$0xff]
        %v976 = vld [vmem:[%s4 + $0x6a0] sm:$0xff]
        %v977 = vld [vmem:[%s4 + $0x6a8] sm:$0xff]
        %v978 = vld [vmem:[%s4 + $0x6b0] sm:$0xff]
        %v979 = vld [vmem:[%s4 + $0x6b8] sm:$0xff]
        %v980 = vld [vmem:[%s4 + $0x6c0] sm:$0xff]
        %v981 = vld [vmem:[%s4 + $0x6c8] sm:$0xff]
        %v982 = vld [vmem:[%s4 + $0x6d0] sm:$0xff]
        %v983 = vld [vmem:[%s4 + $0x6d8] sm:$0xff]
        %v984 = vld [vmem:[%s4 + $0x6e0] sm:$0xff]
        %v985 = vld [vmem:[%s4 + $0x6e8] sm:$0xff]
        %v986 = vld [vmem:[%s4 + $0x6f0] sm:$0xff]
        %v987 = vld [vmem:[%s4 + $0x6f8] sm:$0xff]
        %v988 = vld [vmem:[%s4 + $0x700] sm:$0xff]
        %v989 = vld [vmem:[%s4 + $0x708] sm:$0xff]
        %v990 = vld [vmem:[%s4 + $0x710] sm:$0xff]
        %v991 = vld [vmem:[%s4 + $0x718] sm:$0xff]
        %v992 = vld [vmem:[%s4 + $0x720] sm:$0xff]
        %v993 = vld [vmem:[%s4 + $0x728] sm:$0xff]
        %v994 = vld [vmem:[%s4 + $0x730] sm:$0xff]
        %v995 = vld [vmem:[%s4 + $0x738] sm:$0xff]
        %v996 = vld [vmem:[%s4 + $0x740] sm:$0xff]
        %v997 = vld [vmem:[%s4 + $0x748] sm:$0xff]
        %v998 = vld [vmem:[%s4 + $0x750] sm:$0xff]
        %v999 = vld [vmem:[%s4 + $0x758] sm:$0xff]
        %v1000 = vld [vmem:[%s4 + $0x760] sm:$0xff]
        %v1001 = vld [vmem:[%s4 + $0x768] sm:$0xff]
        %v1002 = vld [vmem:[%s4 + $0x770] sm:$0xff]
        %v1003 = vld [vmem:[%s4 + $0x778] sm:$0xff]
        %v1004 = vld [vmem:[%s4 + $0x780] sm:$0xff]
        %v1005 = vld [vmem:[%s4 + $0x788] sm:$0xff]
        %v1006 = vld [vmem:[%s4 + $0x790] sm:$0xff]
        %v1007 = vld [vmem:[%s4 + $0x798] sm:$0xff]
        %v1008 = vld [vmem:[%s4 + $0x7a0] sm:$0xff]
        %v1009 = vld [vmem:[%s4 + $0x7a8] sm:$0xff]
        %v1010 = vld [vmem:[%s4 + $0x7b0] sm:$0xff]
        %v1011 = vld [vmem:[%s4 + $0x7b8] sm:$0xff]
        %v1012 = vld [vmem:[%s4 + $0x7c0] sm:$0xff]
        %v1013 = vld [vmem:[%s4 + $0x7c8] sm:$0xff]
        %v1014 = vld [vmem:[%s4 + $0x7d0] sm:$0xff]
        %v1015 = vld [vmem:[%s4 + $0x7d8] sm:$0xff]
        %v1016 = vld [vmem:[%s4 + $0x7e0] sm:$0xff]
        %v1017 = vld [vmem:[%s4 + $0x7e8] sm:$0xff]
        %v1018 = vld [vmem:[%s4 + $0x7f0] sm:$0xff]
        %v1019 = vld [vmem:[%s4 + $0x7f8] sm:$0xff]
        %v1020 = vld [vmem:[%s6] sm:$0xff]
        %v1021 = vld [vmem:[%s6 + $0x8] sm:$0xff]
        %v1022 = vld [vmem:[%s6 + $0x10] sm:$0xff]
        %v1023 = vld [vmem:[%s6 + $0x18] sm:$0xff]
        %v1024 = vld [vmem:[%s6 + $0x20] sm:$0xff]
        %v1025 = vld [vmem:[%s6 + $0x28] sm:$0xff]
        %v1026 = vld [vmem:[%s6 + $0x30] sm:$0xff]
        %v1027 = vld [vmem:[%s6 + $0x38] sm:$0xff]
        %v1028 = vld [vmem:[%s6 + $0x40] sm:$0xff]
        %v1029 = vld [vmem:[%s6 + $0x48] sm:$0xff]
        %v1030 = vld [vmem:[%s6 + $0x50] sm:$0xff]
        %v1031 = vld [vmem:[%s6 + $0x58] sm:$0xff]
        %v1032 = vld [vmem:[%s6 + $0x60] sm:$0xff]
        %v1033 = vld [vmem:[%s6 + $0x68] sm:$0xff]
        %v1034 = vld [vmem:[%s6 + $0x70] sm:$0xff]
        %v1035 = vld [vmem:[%s6 + $0x78] sm:$0xff]
        %v1036 = vld [vmem:[%s6 + $0x80] sm:$0xff]
        %v1037 = vld [vmem:[%s6 + $0x88] sm:$0xff]
        %v1038 = vld [vmem:[%s6 + $0x90] sm:$0xff]
        %v1039 = vld [vmem:[%s6 + $0x98] sm:$0xff]
        %v1040 = vld [vmem:[%s6 + $0xa0] sm:$0xff]
        %v1041 = vld [vmem:[%s6 + $0xa8] sm:$0xff]
        %v1042 = vld [vmem:[%s6 + $0xb0] sm:$0xff]
        %v1043 = vld [vmem:[%s6 + $0xb8] sm:$0xff]
        %v1044 = vld [vmem:[%s6 + $0xc0] sm:$0xff]
        %v1045 = vld [vmem:[%s6 + $0xc8] sm:$0xff]
        %v1046 = vld [vmem:[%s6 + $0xd0] sm:$0xff]
        %v1047 = vld [vmem:[%s6 + $0xd8] sm:$0xff]
        %v1048 = vld [vmem:[%s6 + $0xe0] sm:$0xff]
        %v1049 = vld [vmem:[%s6 + $0xe8] sm:$0xff]
        %v1050 = vld [vmem:[%s6 + $0xf0] sm:$0xff]
        %v1051 = vld [vmem:[%s6 + $0xf8] sm:$0xff]
        %v1052 = vld [vmem:[%s3] sm:$0xff]
        %v1053 = vld [vmem:[%s5] sm:$0xff]
        %v1054 = vld [vmem:[%s7] sm:$0x1]
        %v1055 = vld [vmem:[%s336] sm:$0xff]
        %1056 = vmatprep.subr.mxu0 %v629
        %1057 = vmatpush1.msra.mxu0 %v628
        %1058 = vmatprep.subr.mxu0 %v621
        %1059 = vmatpush1.msra.mxu0 %v620
        %1060 = vmatprep.subr.mxu0 %v613
        %1061 = vmatpush1.msra.mxu0 %v612
        %1062 = vmatprep.subr.mxu0 %v605
        %1063 = vmatpush1.msra.mxu0 %v604
        %1064 = vmatprep.subr.mxu0 %v597
        %1065 = vmatpush1.msra.mxu0 %v596
        %1066 = vmatprep.subr.mxu0 %v589
        %1067 = vmatpush1.msra.mxu0 %v588
        %1068 = vmatprep.subr.mxu0 %v581
        %1069 = vmatpush1.msra.mxu0 %v580
        %1070 = vmatprep.subr.mxu0 %v573
        %1071 = vmatpush1.msra.mxu0 %v572
        %1072 = vmatprep.subr.mxu0 %v565
        %1073 = vmatpush1.msra.mxu0 %v564
        %1074 = vmatprep.subr.mxu0 %v557
        %1075 = vmatpush1.msra.mxu0 %v556
        %1076 = vmatprep.subr.mxu0 %v549
        %1077 = vmatpush1.msra.mxu0 %v548
        %1078 = vmatprep.subr.mxu0 %v541
        %1079 = vmatpush1.msra.mxu0 %v540
        %1080 = vmatprep.subr.mxu0 %v533
        %1081 = vmatpush1.msra.mxu0 %v532
        %1082 = vmatprep.subr.mxu0 %v525
        %1083 = vmatpush1.msra.mxu0 %v524
        %1084 = vmatprep.subr.mxu0 %v517
        %1085 = vmatpush1.msra.mxu0 %v516
        %1086 = vmatprep.subr.mxu0 %v509
        %1087 = vmatpush1.msra.mxu0 %v508
        %1088 = vmatprep.subr.mxu0 %v757
        %1089 = vmatpush2.msra.mxu0 %v756
        %1090 = vmatprep.subr.mxu0 %v749
        %1091 = vmatpush2.msra.mxu0 %v748
        %1092 = vmatprep.subr.mxu0 %v741
        %1093 = vmatpush2.msra.mxu0 %v740
        %1094 = vmatprep.subr.mxu0 %v733
        %1095 = vmatpush2.msra.mxu0 %v732
        %1096 = vmatprep.subr.mxu0 %v725
        %1097 = vmatpush2.msra.mxu0 %v724
        %1098 = vmatprep.subr.mxu0 %v717
        %1099 = vmatpush2.msra.mxu0 %v716
        %1100 = vmatprep.subr.mxu0 %v709
        %1101 = vmatpush2.msra.mxu0 %v708
        %1102 = vmatprep.subr.mxu0 %v701
        %1103 = vmatpush2.msra.mxu0 %v700
        %1104 = vmatprep.subr.mxu0 %v693
        %1105 = vmatpush2.msra.mxu0 %v692
        %1106 = vmatprep.subr.mxu0 %v685
        %1107 = vmatpush2.msra.mxu0 %v684
        %1108 = vmatprep.subr.mxu0 %v677
        %1109 = vmatpush2.msra.mxu0 %v676
        %1110 = vmatprep.subr.mxu0 %v669
        %1111 = vmatpush2.msra.mxu0 %v668
        %1112 = vmatprep.subr.mxu0 %v661
        %1113 = vmatpush2.msra.mxu0 %v660
        %1114 = vmatprep.subr.mxu0 %v653
        %1115 = vmatpush2.msra.mxu0 %v652
        %1116 = vmatprep.subr.mxu0 %v645
        %1117 = vmatpush2.msra.mxu0 %v644
        %1118 = vmatprep.subr.mxu0 %v637
        %1119 = vmatpush2.msra.mxu0 %v636
        %1120 = vmatprep.mubr.f32.mxu0 %v377
        %1121 = vmatmul.mubr.f32.gmra.mxu0 %v376
        %v1122 = vpop.f32.mrf.mxu0
        %v1123 = vadd.f32 0.0, %v1122
        %v1124 = vpop.f32.mrf.mxu0
        %v1125 = vadd.f32 0.0, %v1124
        %1126 = vdwg.mxu0
        %1127 = vmatprep.subr.mxu0 %v631
        %1128 = vmatpush1.msra.mxu0 %v630
        %1129 = vmatprep.subr.mxu0 %v623
        %1130 = vmatpush1.msra.mxu0 %v622
        %1131 = vmatprep.subr.mxu0 %v615
        %1132 = vmatpush1.msra.mxu0 %v614
        %1133 = vmatprep.subr.mxu0 %v607
        %1134 = vmatpush1.msra.mxu0 %v606
        %1135 = vmatprep.subr.mxu0 %v599
        %1136 = vmatpush1.msra.mxu0 %v598
        %1137 = vmatprep.subr.mxu0 %v591
        %1138 = vmatpush1.msra.mxu0 %v590
        %1139 = vmatprep.subr.mxu0 %v583
        %1140 = vmatpush1.msra.mxu0 %v582
        %1141 = vmatprep.subr.mxu0 %v575
        %1142 = vmatpush1.msra.mxu0 %v574
        %1143 = vmatprep.subr.mxu0 %v567
        %1144 = vmatpush1.msra.mxu0 %v566
        %1145 = vmatprep.subr.mxu0 %v559
        %1146 = vmatpush1.msra.mxu0 %v558
        %1147 = vmatprep.subr.mxu0 %v551
        %1148 = vmatpush1.msra.mxu0 %v550
        %1149 = vmatprep.subr.mxu0 %v543
        %1150 = vmatpush1.msra.mxu0 %v542
        %1151 = vmatprep.subr.mxu0 %v535
        %1152 = vmatpush1.msra.mxu0 %v534
        %1153 = vmatprep.subr.mxu0 %v527
        %1154 = vmatpush1.msra.mxu0 %v526
        %1155 = vmatprep.subr.mxu0 %v519
        %1156 = vmatpush1.msra.mxu0 %v518
        %1157 = vmatprep.subr.mxu0 %v511
        %1158 = vmatpush1.msra.mxu0 %v510
        %1159 = vmatprep.subr.mxu0 %v759
        %1160 = vmatpush2.msra.mxu0 %v758
        %1161 = vmatprep.subr.mxu0 %v751
        %1162 = vmatpush2.msra.mxu0 %v750
        %1163 = vmatprep.subr.mxu0 %v743
        %1164 = vmatpush2.msra.mxu0 %v742
        %1165 = vmatprep.subr.mxu0 %v735
        %1166 = vmatpush2.msra.mxu0 %v734
        %1167 = vmatprep.subr.mxu0 %v727
        %1168 = vmatpush2.msra.mxu0 %v726
        %1169 = vmatprep.subr.mxu0 %v719
        %1170 = vmatpush2.msra.mxu0 %v718
        %1171 = vmatprep.subr.mxu0 %v711
        %1172 = vmatpush2.msra.mxu0 %v710
        %1173 = vmatprep.subr.mxu0 %v703
        %1174 = vmatpush2.msra.mxu0 %v702
        %1175 = vmatprep.subr.mxu0 %v695
        %1176 = vmatpush2.msra.mxu0 %v694
        %1177 = vmatprep.subr.mxu0 %v687
        %1178 = vmatpush2.msra.mxu0 %v686
        %1179 = vmatprep.subr.mxu0 %v679
        %1180 = vmatpush2.msra.mxu0 %v678
        %1181 = vmatprep.subr.mxu0 %v671
        %1182 = vmatpush2.msra.mxu0 %v670
        %1183 = vmatprep.subr.mxu0 %v663
        %1184 = vmatpush2.msra.mxu0 %v662
        %1185 = vmatprep.subr.mxu0 %v655
        %1186 = vmatpush2.msra.mxu0 %v654
        %1187 = vmatprep.subr.mxu0 %v647
        %1188 = vmatpush2.msra.mxu0 %v646
        %1189 = vmatprep.subr.mxu0 %v639
        %1190 = vmatpush2.msra.mxu0 %v638
        %1191 = vmatprep.mubr.f32.mxu0 %v377
        %1192 = vmatmul.mubr.f32.gmra.mxu0 %v376
        %v1193 = vpop.f32.mrf.mxu0
        %v1194 = vadd.f32 0.0, %v1193
        %v1195 = vpop.f32.mrf.mxu0
        %v1196 = vadd.f32 0.0, %v1195
        %1197 = vdwg.mxu0
        %1198 = vmatprep.subr.mxu0 %v633
        %1199 = vmatpush1.msra.mxu0 %v632
        %1200 = vmatprep.subr.mxu0 %v625
        %1201 = vmatpush1.msra.mxu0 %v624
        %1202 = vmatprep.subr.mxu0 %v617
        %1203 = vmatpush1.msra.mxu0 %v616
        %1204 = vmatprep.subr.mxu0 %v609
        %1205 = vmatpush1.msra.mxu0 %v608
        %1206 = vmatprep.subr.mxu0 %v601
        %1207 = vmatpush1.msra.mxu0 %v600
        %1208 = vmatprep.subr.mxu0 %v593
        %1209 = vmatpush1.msra.mxu0 %v592
        %1210 = vmatprep.subr.mxu0 %v585
        %1211 = vmatpush1.msra.mxu0 %v584
        %1212 = vmatprep.subr.mxu0 %v577
        %1213 = vmatpush1.msra.mxu0 %v576
        %1214 = vmatprep.subr.mxu0 %v569
        %1215 = vmatpush1.msra.mxu0 %v568
        %1216 = vmatprep.subr.mxu0 %v561
        %1217 = vmatpush1.msra.mxu0 %v560
        %1218 = vmatprep.subr.mxu0 %v553
        %1219 = vmatpush1.msra.mxu0 %v552
        %1220 = vmatprep.subr.mxu0 %v545
        %1221 = vmatpush1.msra.mxu0 %v544
        %1222 = vmatprep.subr.mxu0 %v537
        %1223 = vmatpush1.msra.mxu0 %v536
        %1224 = vmatprep.subr.mxu0 %v529
        %1225 = vmatpush1.msra.mxu0 %v528
        %1226 = vmatprep.subr.mxu0 %v521
        %1227 = vmatpush1.msra.mxu0 %v520
        %1228 = vmatprep.subr.mxu0 %v513
        %1229 = vmatpush1.msra.mxu0 %v512
        %1230 = vmatprep.subr.mxu0 %v761
        %1231 = vmatpush2.msra.mxu0 %v760
        %1232 = vmatprep.subr.mxu0 %v753
        %1233 = vmatpush2.msra.mxu0 %v752
        %1234 = vmatprep.subr.mxu0 %v745
        %1235 = vmatpush2.msra.mxu0 %v744
        %1236 = vmatprep.subr.mxu0 %v737
        %1237 = vmatpush2.msra.mxu0 %v736
        %1238 = vmatprep.subr.mxu0 %v729
        %1239 = vmatpush2.msra.mxu0 %v728
        %1240 = vmatprep.subr.mxu0 %v721
        %1241 = vmatpush2.msra.mxu0 %v720
        %1242 = vmatprep.subr.mxu0 %v713
        %1243 = vmatpush2.msra.mxu0 %v712
        %1244 = vmatprep.subr.mxu0 %v705
        %1245 = vmatpush2.msra.mxu0 %v704
        %1246 = vmatprep.subr.mxu0 %v697
        %1247 = vmatpush2.msra.mxu0 %v696
        %1248 = vmatprep.subr.mxu0 %v689
        %1249 = vmatpush2.msra.mxu0 %v688
        %1250 = vmatprep.subr.mxu0 %v681
        %1251 = vmatpush2.msra.mxu0 %v680
        %1252 = vmatprep.subr.mxu0 %v673
        %1253 = vmatpush2.msra.mxu0 %v672
        %1254 = vmatprep.subr.mxu0 %v665
        %1255 = vmatpush2.msra.mxu0 %v664
        %1256 = vmatprep.subr.mxu0 %v657
        %1257 = vmatpush2.msra.mxu0 %v656
        %1258 = vmatprep.subr.mxu0 %v649
        %1259 = vmatpush2.msra.mxu0 %v648
        %1260 = vmatprep.subr.mxu0 %v641
        %1261 = vmatpush2.msra.mxu0 %v640
        %1262 = vmatprep.mubr.f32.mxu0 %v377
        %1263 = vmatmul.mubr.f32.gmra.mxu0 %v376
        %v1264 = vpop.f32.mrf.mxu0
        %v1265 = vadd.f32 0.0, %v1264
        %v1266 = vpop.f32.mrf.mxu0
        %v1267 = vadd.f32 0.0, %v1266
        %1268 = vdwg.mxu0
        %1269 = vmatprep.subr.mxu0 %v635
        %1270 = vmatpush1.msra.mxu0 %v634
        %1271 = vmatprep.subr.mxu0 %v627
        %1272 = vmatpush1.msra.mxu0 %v626
        %1273 = vmatprep.subr.mxu0 %v619
        %1274 = vmatpush1.msra.mxu0 %v618
        %1275 = vmatprep.subr.mxu0 %v611
        %1276 = vmatpush1.msra.mxu0 %v610
        %1277 = vmatprep.subr.mxu0 %v603
        %1278 = vmatpush1.msra.mxu0 %v602
        %1279 = vmatprep.subr.mxu0 %v595
        %1280 = vmatpush1.msra.mxu0 %v594
        %1281 = vmatprep.subr.mxu0 %v587
        %1282 = vmatpush1.msra.mxu0 %v586
        %1283 = vmatprep.subr.mxu0 %v579
        %1284 = vmatpush1.msra.mxu0 %v578
        %1285 = vmatprep.subr.mxu0 %v571
        %1286 = vmatpush1.msra.mxu0 %v570
        %1287 = vmatprep.subr.mxu0 %v563
        %1288 = vmatpush1.msra.mxu0 %v562
        %1289 = vmatprep.subr.mxu0 %v555
        %1290 = vmatpush1.msra.mxu0 %v554
        %1291 = vmatprep.subr.mxu0 %v547
        %1292 = vmatpush1.msra.mxu0 %v546
        %1293 = vmatprep.subr.mxu0 %v539
        %1294 = vmatpush1.msra.mxu0 %v538
        %1295 = vmatprep.subr.mxu0 %v531
        %1296 = vmatpush1.msra.mxu0 %v530
        %1297 = vmatprep.subr.mxu0 %v523
        %1298 = vmatpush1.msra.mxu0 %v522
        %1299 = vmatprep.subr.mxu0 %v515
        %1300 = vmatpush1.msra.mxu0 %v514
        %1301 = vmatprep.subr.mxu0 %v763
        %1302 = vmatpush2.msra.mxu0 %v762
        %1303 = vmatprep.subr.mxu0 %v755
        %1304 = vmatpush2.msra.mxu0 %v754
        %1305 = vmatprep.subr.mxu0 %v747
        %1306 = vmatpush2.msra.mxu0 %v746
        %1307 = vmatprep.subr.mxu0 %v739
        %1308 = vmatpush2.msra.mxu0 %v738
        %1309 = vmatprep.subr.mxu0 %v731
        %1310 = vmatpush2.msra.mxu0 %v730
        %1311 = vmatprep.subr.mxu0 %v723
        %1312 = vmatpush2.msra.mxu0 %v722
        %1313 = vmatprep.subr.mxu0 %v715
        %1314 = vmatpush2.msra.mxu0 %v714
        %1315 = vmatprep.subr.mxu0 %v707
        %1316 = vmatpush2.msra.mxu0 %v706
        %1317 = vmatprep.subr.mxu0 %v699
        %1318 = vmatpush2.msra.mxu0 %v698
        %1319 = vmatprep.subr.mxu0 %v691
        %1320 = vmatpush2.msra.mxu0 %v690
        %1321 = vmatprep.subr.mxu0 %v683
        %1322 = vmatpush2.msra.mxu0 %v682
        %1323 = vmatprep.subr.mxu0 %v675
        %1324 = vmatpush2.msra.mxu0 %v674
        %1325 = vmatprep.subr.mxu0 %v667
        %1326 = vmatpush2.msra.mxu0 %v666
        %1327 = vmatprep.subr.mxu0 %v659
        %1328 = vmatpush2.msra.mxu0 %v658
        %1329 = vmatprep.subr.mxu0 %v651
        %1330 = vmatpush2.msra.mxu0 %v650
        %1331 = vmatprep.subr.mxu0 %v643
        %1332 = vmatpush2.msra.mxu0 %v642
        %1333 = vmatprep.mubr.f32.mxu0 %v377
        %1334 = vmatmul.mubr.f32.gmra.mxu0 %v376
        %v1335 = vpop.f32.mrf.mxu0
        %v1336 = vadd.f32 0.0, %v1335
        %v1337 = vpop.f32.mrf.mxu0
        %v1338 = vadd.f32 0.0, %v1337
        %1339 = vdwg.mxu0
        %1340 = vmatprep.subr.mxu0 %v501
        %1341 = vmatpush1.msra.mxu0 %v500
        %1342 = vmatprep.subr.mxu0 %v493
        %1343 = vmatpush1.msra.mxu0 %v492
        %1344 = vmatprep.subr.mxu0 %v485
        %1345 = vmatpush1.msra.mxu0 %v484
        %1346 = vmatprep.subr.mxu0 %v477
        %1347 = vmatpush1.msra.mxu0 %v476
        %1348 = vmatprep.subr.mxu0 %v469
        %1349 = vmatpush1.msra.mxu0 %v468
        %1350 = vmatprep.subr.mxu0 %v461
        %1351 = vmatpush1.msra.mxu0 %v460
        %1352 = vmatprep.subr.mxu0 %v453
        %1353 = vmatpush1.msra.mxu0 %v452
        %1354 = vmatprep.subr.mxu0 %v445
        %1355 = vmatpush1.msra.mxu0 %v444
        %1356 = vmatprep.subr.mxu0 %v437
        %1357 = vmatpush1.msra.mxu0 %v436
        %1358 = vmatprep.subr.mxu0 %v429
        %1359 = vmatpush1.msra.mxu0 %v428
        %1360 = vmatprep.subr.mxu0 %v421
        %1361 = vmatpush1.msra.mxu0 %v420
        %1362 = vmatprep.subr.mxu0 %v413
        %1363 = vmatpush1.msra.mxu0 %v412
        %1364 = vmatprep.subr.mxu0 %v405
        %1365 = vmatpush1.msra.mxu0 %v404
        %1366 = vmatprep.subr.mxu0 %v397
        %1367 = vmatpush1.msra.mxu0 %v396
        %1368 = vmatprep.subr.mxu0 %v389
        %1369 = vmatpush1.msra.mxu0 %v388
        %1370 = vmatprep.subr.mxu0 %v381
        %1371 = vmatpush1.msra.mxu0 %v380
        %1372 = vmatprep.subr.mxu0 0.0
        %1373 = vmatpush2.msra.mxu0 0.0
        %1374 = vmatprep.subr.mxu0 0.0
        %1375 = vmatpush2.msra.mxu0 0.0
        %1376 = vmatprep.subr.mxu0 0.0
        %1377 = vmatpush2.msra.mxu0 0.0
        %1378 = vmatprep.subr.mxu0 0.0
        %1379 = vmatpush2.msra.mxu0 0.0
        %1380 = vmatprep.subr.mxu0 0.0
        %1381 = vmatpush2.msra.mxu0 0.0
        %1382 = vmatprep.subr.mxu0 0.0
        %1383 = vmatpush2.msra.mxu0 0.0
        %1384 = vmatprep.subr.mxu0 0.0
        %1385 = vmatpush2.msra.mxu0 0.0
        %1386 = vmatprep.subr.mxu0 0.0
        %1387 = vmatpush2.msra.mxu0 0.0
        %1388 = vmatprep.subr.mxu0 0.0
        %1389 = vmatpush2.msra.mxu0 0.0
        %1390 = vmatprep.subr.mxu0 0.0
        %1391 = vmatpush2.msra.mxu0 0.0
        %1392 = vmatprep.subr.mxu0 0.0
        %1393 = vmatpush2.msra.mxu0 0.0
        %1394 = vmatprep.subr.mxu0 0.0
        %1395 = vmatpush2.msra.mxu0 0.0
        %1396 = vmatprep.subr.mxu0 0.0
        %1397 = vmatpush2.msra.mxu0 0.0
        %1398 = vmatprep.subr.mxu0 0.0
        %1399 = vmatpush2.msra.mxu0 0.0
        %1400 = vmatprep.subr.mxu0 0.0
        %1401 = vmatpush2.msra.mxu0 0.0
        %1402 = vmatprep.subr.mxu0 0.0
        %1403 = vmatpush2.msra.mxu0 0.0
        %1404 = vmatprep.mubr.f32.mxu0 0.0
        %1405 = vmatmul.mubr.f32.gmra.mxu0 %v1055
        %v1406 = vpop.f32.mrf.mxu0
        %v1407 = vadd.f32 %v1123, %v1406
        %v1408 = vpop.f32.mrf.mxu0
        %v1409 = vadd.f32 %v1125, %v1408
        %1410 = vdwg.mxu0
        %1411 = vmatprep.subr.mxu0 %v503
        %1412 = vmatpush1.msra.mxu0 %v502
        %1413 = vmatprep.subr.mxu0 %v495
        %1414 = vmatpush1.msra.mxu0 %v494
        %1415 = vmatprep.subr.mxu0 %v487
        %1416 = vmatpush1.msra.mxu0 %v486
        %1417 = vmatprep.subr.mxu0 %v479
        %1418 = vmatpush1.msra.mxu0 %v478
        %1419 = vmatprep.subr.mxu0 %v471
        %1420 = vmatpush1.msra.mxu0 %v470
        %1421 = vmatprep.subr.mxu0 %v463
        %1422 = vmatpush1.msra.mxu0 %v462
        %1423 = vmatprep.subr.mxu0 %v455
        %1424 = vmatpush1.msra.mxu0 %v454
        %1425 = vmatprep.subr.mxu0 %v447
        %1426 = vmatpush1.msra.mxu0 %v446
        %1427 = vmatprep.subr.mxu0 %v439
        %1428 = vmatpush1.msra.mxu0 %v438
        %1429 = vmatprep.subr.mxu0 %v431
        %1430 = vmatpush1.msra.mxu0 %v430
        %1431 = vmatprep.subr.mxu0 %v423
        %1432 = vmatpush1.msra.mxu0 %v422
        %1433 = vmatprep.subr.mxu0 %v415
        %1434 = vmatpush1.msra.mxu0 %v414
        %1435 = vmatprep.subr.mxu0 %v407
        %1436 = vmatpush1.msra.mxu0 %v406
        %1437 = vmatprep.subr.mxu0 %v399
        %1438 = vmatpush1.msra.mxu0 %v398
        %1439 = vmatprep.subr.mxu0 %v391
        %1440 = vmatpush1.msra.mxu0 %v390
        %1441 = vmatprep.subr.mxu0 %v383
        %1442 = vmatpush1.msra.mxu0 %v382
        %1443 = vmatprep.subr.mxu0 0.0
        %1444 = vmatpush2.msra.mxu0 0.0
        %1445 = vmatprep.subr.mxu0 0.0
        %1446 = vmatpush2.msra.mxu0 0.0
        %1447 = vmatprep.subr.mxu0 0.0
        %1448 = vmatpush2.msra.mxu0 0.0
        %1449 = vmatprep.subr.mxu0 0.0
        %1450 = vmatpush2.msra.mxu0 0.0
        %1451 = vmatprep.subr.mxu0 0.0
        %1452 = vmatpush2.msra.mxu0 0.0
        %1453 = vmatprep.subr.mxu0 0.0
        %1454 = vmatpush2.msra.mxu0 0.0
        %1455 = vmatprep.subr.mxu0 0.0
        %1456 = vmatpush2.msra.mxu0 0.0
        %1457 = vmatprep.subr.mxu0 0.0
        %1458 = vmatpush2.msra.mxu0 0.0
        %1459 = vmatprep.subr.mxu0 0.0
        %1460 = vmatpush2.msra.mxu0 0.0
        %1461 = vmatprep.subr.mxu0 0.0
        %1462 = vmatpush2.msra.mxu0 0.0
        %1463 = vmatprep.subr.mxu0 0.0
        %1464 = vmatpush2.msra.mxu0 0.0
        %1465 = vmatprep.subr.mxu0 0.0
        %1466 = vmatpush2.msra.mxu0 0.0
        %1467 = vmatprep.subr.mxu0 0.0
        %1468 = vmatpush2.msra.mxu0 0.0
        %1469 = vmatprep.subr.mxu0 0.0
        %1470 = vmatpush2.msra.mxu0 0.0
        %1471 = vmatprep.subr.mxu0 0.0
        %1472 = vmatpush2.msra.mxu0 0.0
        %1473 = vmatprep.subr.mxu0 0.0
        %1474 = vmatpush2.msra.mxu0 0.0
        %1475 = vmatprep.mubr.f32.mxu0 0.0
        %1476 = vmatmul.mubr.f32.gmra.mxu0 %v1055
        %v1477 = vpop.f32.mrf.mxu0
        %v1478 = vadd.f32 %v1194, %v1477
        %v1479 = vpop.f32.mrf.mxu0
        %v1480 = vadd.f32 %v1196, %v1479
        %1481 = vdwg.mxu0
        %1482 = vmatprep.subr.mxu0 %v505
        %1483 = vmatpush1.msra.mxu0 %v504
        %1484 = vmatprep.subr.mxu0 %v497
        %1485 = vmatpush1.msra.mxu0 %v496
        %1486 = vmatprep.subr.mxu0 %v489
        %1487 = vmatpush1.msra.mxu0 %v488
        %1488 = vmatprep.subr.mxu0 %v481
        %1489 = vmatpush1.msra.mxu0 %v480
        %1490 = vmatprep.subr.mxu0 %v473
        %1491 = vmatpush1.msra.mxu0 %v472
        %1492 = vmatprep.subr.mxu0 %v465
        %1493 = vmatpush1.msra.mxu0 %v464
        %1494 = vmatprep.subr.mxu0 %v457
        %1495 = vmatpush1.msra.mxu0 %v456
        %1496 = vmatprep.subr.mxu0 %v449
        %1497 = vmatpush1.msra.mxu0 %v448
        %1498 = vmatprep.subr.mxu0 %v441
        %1499 = vmatpush1.msra.mxu0 %v440
        %1500 = vmatprep.subr.mxu0 %v433
        %1501 = vmatpush1.msra.mxu0 %v432
        %1502 = vmatprep.subr.mxu0 %v425
        %1503 = vmatpush1.msra.mxu0 %v424
        %1504 = vmatprep.subr.mxu0 %v417
        %1505 = vmatpush1.msra.mxu0 %v416
        %1506 = vmatprep.subr.mxu0 %v409
        %1507 = vmatpush1.msra.mxu0 %v408
        %1508 = vmatprep.subr.mxu0 %v401
        %1509 = vmatpush1.msra.mxu0 %v400
        %1510 = vmatprep.subr.mxu0 %v393
        %1511 = vmatpush1.msra.mxu0 %v392
        %1512 = vmatprep.subr.mxu0 %v385
        %1513 = vmatpush1.msra.mxu0 %v384
        %1514 = vmatprep.subr.mxu0 0.0
        %1515 = vmatpush2.msra.mxu0 0.0
        %1516 = vmatprep.subr.mxu0 0.0
        %1517 = vmatpush2.msra.mxu0 0.0
        %1518 = vmatprep.subr.mxu0 0.0
        %1519 = vmatpush2.msra.mxu0 0.0
        %1520 = vmatprep.subr.mxu0 0.0
        %1521 = vmatpush2.msra.mxu0 0.0
        %1522 = vmatprep.subr.mxu0 0.0
        %1523 = vmatpush2.msra.mxu0 0.0
        %1524 = vmatprep.subr.mxu0 0.0
        %1525 = vmatpush2.msra.mxu0 0.0
        %1526 = vmatprep.subr.mxu0 0.0
        %1527 = vmatpush2.msra.mxu0 0.0
        %1528 = vmatprep.subr.mxu0 0.0
        %1529 = vmatpush2.msra.mxu0 0.0
        %1530 = vmatprep.subr.mxu0 0.0
        %1531 = vmatpush2.msra.mxu0 0.0
        %1532 = vmatprep.subr.mxu0 0.0
        %1533 = vmatpush2.msra.mxu0 0.0
        %1534 = vmatprep.subr.mxu0 0.0
        %1535 = vmatpush2.msra.mxu0 0.0
        %1536 = vmatprep.subr.mxu0 0.0
        %1537 = vmatpush2.msra.mxu0 0.0
        %1538 = vmatprep.subr.mxu0 0.0
        %1539 = vmatpush2.msra.mxu0 0.0
        %1540 = vmatprep.subr.mxu0 0.0
        %1541 = vmatpush2.msra.mxu0 0.0
        %1542 = vmatprep.subr.mxu0 0.0
        %1543 = vmatpush2.msra.mxu0 0.0
        %1544 = vmatprep.subr.mxu0 0.0
        %1545 = vmatpush2.msra.mxu0 0.0
        %1546 = vmatprep.mubr.f32.mxu0 0.0
        %1547 = vmatmul.mubr.f32.gmra.mxu0 %v1055
        %v1548 = vpop.f32.mrf.mxu0
        %v1549 = vadd.f32 %v1265, %v1548
        %v1550 = vpop.f32.mrf.mxu0
        %v1551 = vadd.f32 %v1267, %v1550
        %1552 = vdwg.mxu0
        %1553 = vmatprep.subr.mxu0 %v507
        %1554 = vmatpush1.msra.mxu0 %v506
        %1555 = vmatprep.subr.mxu0 %v499
        %1556 = vmatpush1.msra.mxu0 %v498
        %1557 = vmatprep.subr.mxu0 %v491
        %1558 = vmatpush1.msra.mxu0 %v490
        %1559 = vmatprep.subr.mxu0 %v483
        %1560 = vmatpush1.msra.mxu0 %v482
        %1561 = vmatprep.subr.mxu0 %v475
        %1562 = vmatpush1.msra.mxu0 %v474
        %1563 = vmatprep.subr.mxu0 %v467
        %1564 = vmatpush1.msra.mxu0 %v466
        %1565 = vmatprep.subr.mxu0 %v459
        %1566 = vmatpush1.msra.mxu0 %v458
        %1567 = vmatprep.subr.mxu0 %v451
        %1568 = vmatpush1.msra.mxu0 %v450
        %1569 = vmatprep.subr.mxu0 %v443
        %1570 = vmatpush1.msra.mxu0 %v442
        %1571 = vmatprep.subr.mxu0 %v435
        %1572 = vmatpush1.msra.mxu0 %v434
        %1573 = vmatprep.subr.mxu0 %v427
        %1574 = vmatpush1.msra.mxu0 %v426
        %1575 = vmatprep.subr.mxu0 %v419
        %1576 = vmatpush1.msra.mxu0 %v418
        %1577 = vmatprep.subr.mxu0 %v411
        %1578 = vmatpush1.msra.mxu0 %v410
        %1579 = vmatprep.subr.mxu0 %v403
        %1580 = vmatpush1.msra.mxu0 %v402
        %1581 = vmatprep.subr.mxu0 %v395
        %1582 = vmatpush1.msra.mxu0 %v394
        %1583 = vmatprep.subr.mxu0 %v387
        %1584 = vmatpush1.msra.mxu0 %v386
        %1585 = vmatprep.subr.mxu0 0.0
        %1586 = vmatpush2.msra.mxu0 0.0
        %1587 = vmatprep.subr.mxu0 0.0
        %1588 = vmatpush2.msra.mxu0 0.0
        %1589 = vmatprep.subr.mxu0 0.0
        %1590 = vmatpush2.msra.mxu0 0.0
        %1591 = vmatprep.subr.mxu0 0.0
        %1592 = vmatpush2.msra.mxu0 0.0
        %1593 = vmatprep.subr.mxu0 0.0
        %1594 = vmatpush2.msra.mxu0 0.0
        %1595 = vmatprep.subr.mxu0 0.0
        %1596 = vmatpush2.msra.mxu0 0.0
        %1597 = vmatprep.subr.mxu0 0.0
        %1598 = vmatpush2.msra.mxu0 0.0
        %1599 = vmatprep.subr.mxu0 0.0
        %1600 = vmatpush2.msra.mxu0 0.0
        %1601 = vmatprep.subr.mxu0 0.0
        %1602 = vmatpush2.msra.mxu0 0.0
        %1603 = vmatprep.subr.mxu0 0.0
        %1604 = vmatpush2.msra.mxu0 0.0
        %1605 = vmatprep.subr.mxu0 0.0
        %1606 = vmatpush2.msra.mxu0 0.0
        %1607 = vmatprep.subr.mxu0 0.0
        %1608 = vmatpush2.msra.mxu0 0.0
        %1609 = vmatprep.subr.mxu0 0.0
        %1610 = vmatpush2.msra.mxu0 0.0
        %1611 = vmatprep.subr.mxu0 0.0
        %1612 = vmatpush2.msra.mxu0 0.0
        %1613 = vmatprep.subr.mxu0 0.0
        %1614 = vmatpush2.msra.mxu0 0.0
        %1615 = vmatprep.subr.mxu0 0.0
        %1616 = vmatpush2.msra.mxu0 0.0
        %1617 = vmatprep.mubr.f32.mxu0 0.0
        %1618 = vmatmul.mubr.f32.gmra.mxu0 %v1055
        %v1619 = vpop.f32.mrf.mxu0
        %v1620 = vadd.f32 %v1336, %v1619
        %v1621 = vpop.f32.mrf.mxu0
        %v1622 = vadd.f32 %v1338, %v1621
        %1623 = vdwg.mxu0
        %v1625 = vlaneseq
        %v1626 = vshrl.u32 %v1625, 7
        %v1627 = vsub.s32 0, %v1626
        %v1628 = vrot.slane %v1052, %v1627
        %v1629 = vlaneseq
        %v1630 = vshrl.u32 %v1629, 7
        %v1631 = vsub.s32 1, %v1630
        %v1632 = vrot.slane %v1052, %v1631
        %v1633 = vlaneseq
        %v1634 = vshrl.u32 %v1633, 7
        %v1635 = vsub.s32 2, %v1634
        %v1636 = vrot.slane %v1052, %v1635
        %v1637 = vlaneseq
        %v1638 = vshrl.u32 %v1637, 7
        %v1639 = vsub.s32 3, %v1638
        %v1640 = vrot.slane %v1052, %v1639
        %v1641 = vlaneseq
        %v1642 = vshrl.u32 %v1641, 7
        %v1643 = vsub.s32 4, %v1642
        %v1644 = vrot.slane %v1052, %v1643
        %v1645 = vlaneseq
        %v1646 = vshrl.u32 %v1645, 7
        %v1647 = vsub.s32 5, %v1646
        %v1648 = vrot.slane %v1052, %v1647
        %v1649 = vlaneseq
        %v1650 = vshrl.u32 %v1649, 7
        %v1651 = vsub.s32 6, %v1650
        %v1652 = vrot.slane %v1052, %v1651
        %v1653 = vlaneseq
        %v1654 = vshrl.u32 %v1653, 7
        %v1655 = vsub.s32 7, %v1654
        %v1656 = vrot.slane %v1052, %v1655
        %v1665 = vadd.f32 %v1407, %v1628
        %v1666 = vadd.f32 %v1409, %v1632
        %v1667 = vadd.f32 %v1478, %v1636
        %v1668 = vadd.f32 %v1480, %v1640
        %v1669 = vadd.f32 %v1549, %v1644
        %v1670 = vadd.f32 %v1551, %v1648
        %v1671 = vadd.f32 %v1620, %v1652
        %v1672 = vadd.f32 %v1622, %v1656
        %v1673 = vxor.u32 %v1665, 2147483648
        %v1674 = vxor.u32 %v1666, 2147483648
        %v1675 = vmul.f32 %v1673, 1.442695
        %v1676 = vpow.pop %v1675
        %v1677 = vmul.f32 %v1674, 1.442695
        %v1678 = vpow.pop %v1677
        %v1679 = vadd.f32 %v1676, 1.0
        %v1680 = vadd.f32 %v1678, 1.0
        %v1681 = vrcp.pop %v1679
        %v1682 = vmul.f32 1.0, %v1681
        %v1683 = vrcp.pop %v1680
        %v1684 = vmul.f32 1.0, %v1683
        %v1685 = vxor.u32 %v1667, 2147483648
        %v1686 = vxor.u32 %v1668, 2147483648
        %v1687 = vmul.f32 %v1685, 1.442695
        %v1688 = vpow.pop %v1687
        %v1689 = vmul.f32 %v1686, 1.442695
        %v1690 = vpow.pop %v1689
        %v1691 = vadd.f32 %v1688, 1.0
        %v1692 = vadd.f32 %v1690, 1.0
        %v1693 = vrcp.pop %v1691
        %v1694 = vmul.f32 1.0, %v1693
        %v1695 = vrcp.pop %v1692
        %v1696 = vmul.f32 1.0, %v1695
        %v1697 = vtanh.pop %v1669
        %v1698 = vtanh.pop %v1670
        %v1699 = vxor.u32 %v1671, 2147483648
        %v1700 = vxor.u32 %v1672, 2147483648
        %v1701 = vmul.f32 %v1699, 1.442695
        %v1702 = vpow.pop %v1701
        %v1703 = vmul.f32 %v1700, 1.442695
        %v1704 = vpow.pop %v1703
        %v1705 = vadd.f32 %v1702, 1.0
        %v1706 = vadd.f32 %v1704, 1.0
        %v1707 = vrcp.pop %v1705
        %v1708 = vmul.f32 1.0, %v1707
        %v1709 = vrcp.pop %v1706
        %v1710 = vmul.f32 1.0, %v1709
        %v1711 = vmul.f32 %v1694, %v378
        %v1712 = vmul.f32 %v1696, %v379
        %v1713 = vmul.f32 %v1682, %v1697
        %v1714 = vmul.f32 %v1684, %v1698
        %v1715 = vadd.f32 %v1711, %v1713
        %v1716 = vadd.f32 %v1712, %v1714
        %v1717 = vtanh.pop %v1715
        %v1718 = vtanh.pop %v1716
        %v1719 = vmul.f32 %v1708, %v1717
        %v1720 = vmul.f32 %v1710, %v1718
        %v1722 = vlaneseq
        %v1723 = vshrl.u32 %v1722, 7
        %v1724 = vsub.s32 0, %v1723
        %v1725 = vrot.slane %v1053, %v1724
        %v1726 = vlaneseq
        %v1727 = vshrl.u32 %v1726, 7
        %v1728 = vsub.s32 1, %v1727
        %v1729 = vrot.slane %v1053, %v1728
        %v1730 = vlaneseq
        %v1731 = vshrl.u32 %v1730, 7
        %v1732 = vsub.s32 2, %v1731
        %v1733 = vrot.slane %v1053, %v1732
        %v1734 = vlaneseq
        %v1735 = vshrl.u32 %v1734, 7
        %v1736 = vsub.s32 3, %v1735
        %v1737 = vrot.slane %v1053, %v1736
        %v1738 = vlaneseq
        %v1739 = vshrl.u32 %v1738, 7
        %v1740 = vsub.s32 4, %v1739
        %v1741 = vrot.slane %v1053, %v1740
        %v1742 = vlaneseq
        %v1743 = vshrl.u32 %v1742, 7
        %v1744 = vsub.s32 5, %v1743
        %v1745 = vrot.slane %v1053, %v1744
        %v1746 = vlaneseq
        %v1747 = vshrl.u32 %v1746, 7
        %v1748 = vsub.s32 6, %v1747
        %v1749 = vrot.slane %v1053, %v1748
        %v1750 = vlaneseq
        %v1751 = vshrl.u32 %v1750, 7
        %v1752 = vsub.s32 7, %v1751
        %v1753 = vrot.slane %v1053, %v1752
        %1762 = vmatprep.subr.mxu0 %v885
        %1763 = vmatpush1.msra.mxu0 %v884
        %1764 = vmatprep.subr.mxu0 %v877
        %1765 = vmatpush1.msra.mxu0 %v876
        %1766 = vmatprep.subr.mxu0 %v869
        %1767 = vmatpush1.msra.mxu0 %v868
        %1768 = vmatprep.subr.mxu0 %v861
        %1769 = vmatpush1.msra.mxu0 %v860
        %1770 = vmatprep.subr.mxu0 %v853
        %1771 = vmatpush1.msra.mxu0 %v852
        %1772 = vmatprep.subr.mxu0 %v845
        %1773 = vmatpush1.msra.mxu0 %v844
        %1774 = vmatprep.subr.mxu0 %v837
        %1775 = vmatpush1.msra.mxu0 %v836
        %1776 = vmatprep.subr.mxu0 %v829
        %1777 = vmatpush1.msra.mxu0 %v828
        %1778 = vmatprep.subr.mxu0 %v821
        %1779 = vmatpush1.msra.mxu0 %v820
        %1780 = vmatprep.subr.mxu0 %v813
        %1781 = vmatpush1.msra.mxu0 %v812
        %1782 = vmatprep.subr.mxu0 %v805
        %1783 = vmatpush1.msra.mxu0 %v804
        %1784 = vmatprep.subr.mxu0 %v797
        %1785 = vmatpush1.msra.mxu0 %v796
        %1786 = vmatprep.subr.mxu0 %v789
        %1787 = vmatpush1.msra.mxu0 %v788
        %1788 = vmatprep.subr.mxu0 %v781
        %1789 = vmatpush1.msra.mxu0 %v780
        %1790 = vmatprep.subr.mxu0 %v773
        %1791 = vmatpush1.msra.mxu0 %v772
        %1792 = vmatprep.subr.mxu0 %v765
        %1793 = vmatpush1.msra.mxu0 %v764
        %1794 = vmatprep.subr.mxu0 %v1013
        %1795 = vmatpush2.msra.mxu0 %v1012
        %1796 = vmatprep.subr.mxu0 %v1005
        %1797 = vmatpush2.msra.mxu0 %v1004
        %1798 = vmatprep.subr.mxu0 %v997
        %1799 = vmatpush2.msra.mxu0 %v996
        %1800 = vmatprep.subr.mxu0 %v989
        %1801 = vmatpush2.msra.mxu0 %v988
        %1802 = vmatprep.subr.mxu0 %v981
        %1803 = vmatpush2.msra.mxu0 %v980
        %1804 = vmatprep.subr.mxu0 %v973
        %1805 = vmatpush2.msra.mxu0 %v972
        %1806 = vmatprep.subr.mxu0 %v965
        %1807 = vmatpush2.msra.mxu0 %v964
        %1808 = vmatprep.subr.mxu0 %v957
        %1809 = vmatpush2.msra.mxu0 %v956
        %1810 = vmatprep.subr.mxu0 %v949
        %1811 = vmatpush2.msra.mxu0 %v948
        %1812 = vmatprep.subr.mxu0 %v941
        %1813 = vmatpush2.msra.mxu0 %v940
        %1814 = vmatprep.subr.mxu0 %v933
        %1815 = vmatpush2.msra.mxu0 %v932
        %1816 = vmatprep.subr.mxu0 %v925
        %1817 = vmatpush2.msra.mxu0 %v924
        %1818 = vmatprep.subr.mxu0 %v917
        %1819 = vmatpush2.msra.mxu0 %v916
        %1820 = vmatprep.subr.mxu0 %v909
        %1821 = vmatpush2.msra.mxu0 %v908
        %1822 = vmatprep.subr.mxu0 %v901
        %1823 = vmatpush2.msra.mxu0 %v900
        %1824 = vmatprep.subr.mxu0 %v893
        %1825 = vmatpush2.msra.mxu0 %v892
        %1826 = vmatprep.mubr.f32.mxu0 %v1720
        %1827 = vmatmul.mubr.f32.gmra.mxu0 %v1719
        %v1828 = vpop.f32.mrf.mxu0
        %v1829 = vadd.f32 %v1725, %v1828
        %v1830 = vpop.f32.mrf.mxu0
        %v1831 = vadd.f32 %v1729, %v1830
        %1832 = vdwg.mxu0
        %1833 = vmatprep.subr.mxu0 %v887
        %1834 = vmatpush1.msra.mxu0 %v886
        %1835 = vmatprep.subr.mxu0 %v879
        %1836 = vmatpush1.msra.mxu0 %v878
        %1837 = vmatprep.subr.mxu0 %v871
        %1838 = vmatpush1.msra.mxu0 %v870
        %1839 = vmatprep.subr.mxu0 %v863
        %1840 = vmatpush1.msra.mxu0 %v862
        %1841 = vmatprep.subr.mxu0 %v855
        %1842 = vmatpush1.msra.mxu0 %v854
        %1843 = vmatprep.subr.mxu0 %v847
        %1844 = vmatpush1.msra.mxu0 %v846
        %1845 = vmatprep.subr.mxu0 %v839
        %1846 = vmatpush1.msra.mxu0 %v838
        %1847 = vmatprep.subr.mxu0 %v831
        %1848 = vmatpush1.msra.mxu0 %v830
        %1849 = vmatprep.subr.mxu0 %v823
        %1850 = vmatpush1.msra.mxu0 %v822
        %1851 = vmatprep.subr.mxu0 %v815
        %1852 = vmatpush1.msra.mxu0 %v814
        %1853 = vmatprep.subr.mxu0 %v807
        %1854 = vmatpush1.msra.mxu0 %v806
        %1855 = vmatprep.subr.mxu0 %v799
        %1856 = vmatpush1.msra.mxu0 %v798
        %1857 = vmatprep.subr.mxu0 %v791
        %1858 = vmatpush1.msra.mxu0 %v790
        %1859 = vmatprep.subr.mxu0 %v783
        %1860 = vmatpush1.msra.mxu0 %v782
        %1861 = vmatprep.subr.mxu0 %v775
        %1862 = vmatpush1.msra.mxu0 %v774
        %1863 = vmatprep.subr.mxu0 %v767
        %1864 = vmatpush1.msra.mxu0 %v766
        %1865 = vmatprep.subr.mxu0 %v1015
        %1866 = vmatpush2.msra.mxu0 %v1014
        %1867 = vmatprep.subr.mxu0 %v1007
        %1868 = vmatpush2.msra.mxu0 %v1006
        %1869 = vmatprep.subr.mxu0 %v999
        %1870 = vmatpush2.msra.mxu0 %v998
        %1871 = vmatprep.subr.mxu0 %v991
        %1872 = vmatpush2.msra.mxu0 %v990
        %1873 = vmatprep.subr.mxu0 %v983
        %1874 = vmatpush2.msra.mxu0 %v982
        %1875 = vmatprep.subr.mxu0 %v975
        %1876 = vmatpush2.msra.mxu0 %v974
        %1877 = vmatprep.subr.mxu0 %v967
        %1878 = vmatpush2.msra.mxu0 %v966
        %1879 = vmatprep.subr.mxu0 %v959
        %1880 = vmatpush2.msra.mxu0 %v958
        %1881 = vmatprep.subr.mxu0 %v951
        %1882 = vmatpush2.msra.mxu0 %v950
        %1883 = vmatprep.subr.mxu0 %v943
        %1884 = vmatpush2.msra.mxu0 %v942
        %1885 = vmatprep.subr.mxu0 %v935
        %1886 = vmatpush2.msra.mxu0 %v934
        %1887 = vmatprep.subr.mxu0 %v927
        %1888 = vmatpush2.msra.mxu0 %v926
        %1889 = vmatprep.subr.mxu0 %v919
        %1890 = vmatpush2.msra.mxu0 %v918
        %1891 = vmatprep.subr.mxu0 %v911
        %1892 = vmatpush2.msra.mxu0 %v910
        %1893 = vmatprep.subr.mxu0 %v903
        %1894 = vmatpush2.msra.mxu0 %v902
        %1895 = vmatprep.subr.mxu0 %v895
        %1896 = vmatpush2.msra.mxu0 %v894
        %1897 = vmatprep.mubr.f32.mxu0 %v1720
        %1898 = vmatmul.mubr.f32.gmra.mxu0 %v1719
        %v1899 = vpop.f32.mrf.mxu0
        %v1900 = vadd.f32 %v1733, %v1899
        %v1901 = vpop.f32.mrf.mxu0
        %v1902 = vadd.f32 %v1737, %v1901
        %1903 = vdwg.mxu0
        %1904 = vmatprep.subr.mxu0 %v889
        %1905 = vmatpush1.msra.mxu0 %v888
        %1906 = vmatprep.subr.mxu0 %v881
        %1907 = vmatpush1.msra.mxu0 %v880
        %1908 = vmatprep.subr.mxu0 %v873
        %1909 = vmatpush1.msra.mxu0 %v872
        %1910 = vmatprep.subr.mxu0 %v865
        %1911 = vmatpush1.msra.mxu0 %v864
        %1912 = vmatprep.subr.mxu0 %v857
        %1913 = vmatpush1.msra.mxu0 %v856
        %1914 = vmatprep.subr.mxu0 %v849
        %1915 = vmatpush1.msra.mxu0 %v848
        %1916 = vmatprep.subr.mxu0 %v841
        %1917 = vmatpush1.msra.mxu0 %v840
        %1918 = vmatprep.subr.mxu0 %v833
        %1919 = vmatpush1.msra.mxu0 %v832
        %1920 = vmatprep.subr.mxu0 %v825
        %1921 = vmatpush1.msra.mxu0 %v824
        %1922 = vmatprep.subr.mxu0 %v817
        %1923 = vmatpush1.msra.mxu0 %v816
        %1924 = vmatprep.subr.mxu0 %v809
        %1925 = vmatpush1.msra.mxu0 %v808
        %1926 = vmatprep.subr.mxu0 %v801
        %1927 = vmatpush1.msra.mxu0 %v800
        %1928 = vmatprep.subr.mxu0 %v793
        %1929 = vmatpush1.msra.mxu0 %v792
        %1930 = vmatprep.subr.mxu0 %v785
        %1931 = vmatpush1.msra.mxu0 %v784
        %1932 = vmatprep.subr.mxu0 %v777
        %1933 = vmatpush1.msra.mxu0 %v776
        %1934 = vmatprep.subr.mxu0 %v769
        %1935 = vmatpush1.msra.mxu0 %v768
        %1936 = vmatprep.subr.mxu0 %v1017
        %1937 = vmatpush2.msra.mxu0 %v1016
        %1938 = vmatprep.subr.mxu0 %v1009
        %1939 = vmatpush2.msra.mxu0 %v1008
        %1940 = vmatprep.subr.mxu0 %v1001
        %1941 = vmatpush2.msra.mxu0 %v1000
        %1942 = vmatprep.subr.mxu0 %v993
        %1943 = vmatpush2.msra.mxu0 %v992
        %1944 = vmatprep.subr.mxu0 %v985
        %1945 = vmatpush2.msra.mxu0 %v984
        %1946 = vmatprep.subr.mxu0 %v977
        %1947 = vmatpush2.msra.mxu0 %v976
        %1948 = vmatprep.subr.mxu0 %v969
        %1949 = vmatpush2.msra.mxu0 %v968
        %1950 = vmatprep.subr.mxu0 %v961
        %1951 = vmatpush2.msra.mxu0 %v960
        %1952 = vmatprep.subr.mxu0 %v953
        %1953 = vmatpush2.msra.mxu0 %v952
        %1954 = vmatprep.subr.mxu0 %v945
        %1955 = vmatpush2.msra.mxu0 %v944
        %1956 = vmatprep.subr.mxu0 %v937
        %1957 = vmatpush2.msra.mxu0 %v936
        %1958 = vmatprep.subr.mxu0 %v929
        %1959 = vmatpush2.msra.mxu0 %v928
        %1960 = vmatprep.subr.mxu0 %v921
        %1961 = vmatpush2.msra.mxu0 %v920
        %1962 = vmatprep.subr.mxu0 %v913
        %1963 = vmatpush2.msra.mxu0 %v912
        %1964 = vmatprep.subr.mxu0 %v905
        %1965 = vmatpush2.msra.mxu0 %v904
        %1966 = vmatprep.subr.mxu0 %v897
        %1967 = vmatpush2.msra.mxu0 %v896
        %1968 = vmatprep.mubr.f32.mxu0 %v1720
        %1969 = vmatmul.mubr.f32.gmra.mxu0 %v1719
        %v1970 = vpop.f32.mrf.mxu0
        %v1971 = vadd.f32 %v1741, %v1970
        %v1972 = vpop.f32.mrf.mxu0
        %v1973 = vadd.f32 %v1745, %v1972
        %1974 = vdwg.mxu0
        %1975 = vmatprep.subr.mxu0 %v891
        %1976 = vmatpush1.msra.mxu0 %v890
        %1977 = vmatprep.subr.mxu0 %v883
        %1978 = vmatpush1.msra.mxu0 %v882
        %1979 = vmatprep.subr.mxu0 %v875
        %1980 = vmatpush1.msra.mxu0 %v874
        %1981 = vmatprep.subr.mxu0 %v867
        %1982 = vmatpush1.msra.mxu0 %v866
        %1983 = vmatprep.subr.mxu0 %v859
        %1984 = vmatpush1.msra.mxu0 %v858
        %1985 = vmatprep.subr.mxu0 %v851
        %1986 = vmatpush1.msra.mxu0 %v850
        %1987 = vmatprep.subr.mxu0 %v843
        %1988 = vmatpush1.msra.mxu0 %v842
        %1989 = vmatprep.subr.mxu0 %v835
        %1990 = vmatpush1.msra.mxu0 %v834
        %1991 = vmatprep.subr.mxu0 %v827
        %1992 = vmatpush1.msra.mxu0 %v826
        %1993 = vmatprep.subr.mxu0 %v819
        %1994 = vmatpush1.msra.mxu0 %v818
        %1995 = vmatprep.subr.mxu0 %v811
        %1996 = vmatpush1.msra.mxu0 %v810
        %1997 = vmatprep.subr.mxu0 %v803
        %1998 = vmatpush1.msra.mxu0 %v802
        %1999 = vmatprep.subr.mxu0 %v795
        %2000 = vmatpush1.msra.mxu0 %v794
        %2001 = vmatprep.subr.mxu0 %v787
        %2002 = vmatpush1.msra.mxu0 %v786
        %2003 = vmatprep.subr.mxu0 %v779
        %2004 = vmatpush1.msra.mxu0 %v778
        %2005 = vmatprep.subr.mxu0 %v771
        %2006 = vmatpush1.msra.mxu0 %v770
        %2007 = vmatprep.subr.mxu0 %v1019
        %2008 = vmatpush2.msra.mxu0 %v1018
        %2009 = vmatprep.subr.mxu0 %v1011
        %2010 = vmatpush2.msra.mxu0 %v1010
        %2011 = vmatprep.subr.mxu0 %v1003
        %2012 = vmatpush2.msra.mxu0 %v1002
        %2013 = vmatprep.subr.mxu0 %v995
        %2014 = vmatpush2.msra.mxu0 %v994
        %2015 = vmatprep.subr.mxu0 %v987
        %2016 = vmatpush2.msra.mxu0 %v986
        %2017 = vmatprep.subr.mxu0 %v979
        %2018 = vmatpush2.msra.mxu0 %v978
        %2019 = vmatprep.subr.mxu0 %v971
        %2020 = vmatpush2.msra.mxu0 %v970
        %2021 = vmatprep.subr.mxu0 %v963
        %2022 = vmatpush2.msra.mxu0 %v962
        %2023 = vmatprep.subr.mxu0 %v955
        %2024 = vmatpush2.msra.mxu0 %v954
        %2025 = vmatprep.subr.mxu0 %v947
        %2026 = vmatpush2.msra.mxu0 %v946
        %2027 = vmatprep.subr.mxu0 %v939
        %2028 = vmatpush2.msra.mxu0 %v938
        %2029 = vmatprep.subr.mxu0 %v931
        %2030 = vmatpush2.msra.mxu0 %v930
        %2031 = vmatprep.subr.mxu0 %v923
        %2032 = vmatpush2.msra.mxu0 %v922
        %2033 = vmatprep.subr.mxu0 %v915
        %2034 = vmatpush2.msra.mxu0 %v914
        %2035 = vmatprep.subr.mxu0 %v907
        %2036 = vmatpush2.msra.mxu0 %v906
        %2037 = vmatprep.subr.mxu0 %v899
        %2038 = vmatpush2.msra.mxu0 %v898
        %2039 = vmatprep.mubr.f32.mxu0 %v1720
        %2040 = vmatmul.mubr.f32.gmra.mxu0 %v1719
        %v2041 = vpop.f32.mrf.mxu0
        %v2042 = vadd.f32 %v1749, %v2041
        %v2043 = vpop.f32.mrf.mxu0
        %v2044 = vadd.f32 %v1753, %v2043
        %2045 = vdwg.mxu0
        %v2046 = vxor.u32 %v1829, 2147483648
        %v2047 = vxor.u32 %v1831, 2147483648
        %v2048 = vmul.f32 %v2046, 1.442695
        %v2049 = vpow.pop %v2048
        %v2050 = vmul.f32 %v2047, 1.442695
        %v2051 = vpow.pop %v2050
        %v2052 = vadd.f32 %v2049, 1.0
        %v2053 = vadd.f32 %v2051, 1.0
        %v2054 = vrcp.pop %v2052
        %v2055 = vmul.f32 1.0, %v2054
        %v2056 = vrcp.pop %v2053
        %v2057 = vmul.f32 1.0, %v2056
        %v2058 = vxor.u32 %v1900, 2147483648
        %v2059 = vxor.u32 %v1902, 2147483648
        %v2060 = vmul.f32 %v2058, 1.442695
        %v2061 = vpow.pop %v2060
        %v2062 = vmul.f32 %v2059, 1.442695
        %v2063 = vpow.pop %v2062
        %v2064 = vadd.f32 %v2061, 1.0
        %v2065 = vadd.f32 %v2063, 1.0
        %v2066 = vrcp.pop %v2064
        %v2067 = vmul.f32 1.0, %v2066
        %v2068 = vrcp.pop %v2065
        %v2069 = vmul.f32 1.0, %v2068
        %v2070 = vtanh.pop %v1971
        %v2071 = vtanh.pop %v1973
        %v2072 = vxor.u32 %v2042, 2147483648
        %v2073 = vxor.u32 %v2044, 2147483648
        %v2074 = vmul.f32 %v2072, 1.442695
        %v2075 = vpow.pop %v2074
        %v2076 = vmul.f32 %v2073, 1.442695
        %v2077 = vpow.pop %v2076
        %v2078 = vadd.f32 %v2075, 1.0
        %v2079 = vadd.f32 %v2077, 1.0
        %v2080 = vrcp.pop %v2078
        %v2081 = vmul.f32 1.0, %v2080
        %v2082 = vrcp.pop %v2079
        %v2083 = vmul.f32 1.0, %v2082
        %v2084 = vmul.f32 %v2067, %v1715
        %v2085 = vmul.f32 %v2069, %v1716
        %v2086 = vmul.f32 %v2055, %v2070
        %v2087 = vmul.f32 %v2057, %v2071
        %v2088 = vadd.f32 %v2084, %v2086
        %v2089 = vadd.f32 %v2085, %v2087
        %v2090 = vtanh.pop %v2088
        %v2091 = vtanh.pop %v2089
        %v2092 = vmul.f32 %v2081, %v2090
        %v2093 = vmul.f32 %v2083, %v2091
        %v2095 = vlaneseq
        %v2096 = vshrl.u32 %v2095, 7
        %v2097 = vsub.s32 0, %v2096
        %v2098 = vrot.slane %v1054, %v2097
        %2100 = vmatprep.subr.mxu0 0.0
        %2101 = vmatpush1.msra.mxu0 %v1035
        %2102 = vmatprep.subr.mxu0 0.0
        %2103 = vmatpush1.msra.mxu0 %v1034
        %2104 = vmatprep.subr.mxu0 0.0
        %2105 = vmatpush1.msra.mxu0 %v1033
        %2106 = vmatprep.subr.mxu0 0.0
        %2107 = vmatpush1.msra.mxu0 %v1032
        %2108 = vmatprep.subr.mxu0 0.0
        %2109 = vmatpush1.msra.mxu0 %v1031
        %2110 = vmatprep.subr.mxu0 0.0
        %2111 = vmatpush1.msra.mxu0 %v1030
        %2112 = vmatprep.subr.mxu0 0.0
        %2113 = vmatpush1.msra.mxu0 %v1029
        %2114 = vmatprep.subr.mxu0 0.0
        %2115 = vmatpush1.msra.mxu0 %v1028
        %2116 = vmatprep.subr.mxu0 0.0
        %2117 = vmatpush1.msra.mxu0 %v1027
        %2118 = vmatprep.subr.mxu0 0.0
        %2119 = vmatpush1.msra.mxu0 %v1026
        %2120 = vmatprep.subr.mxu0 0.0
        %2121 = vmatpush1.msra.mxu0 %v1025
        %2122 = vmatprep.subr.mxu0 0.0
        %2123 = vmatpush1.msra.mxu0 %v1024
        %2124 = vmatprep.subr.mxu0 0.0
        %2125 = vmatpush1.msra.mxu0 %v1023
        %2126 = vmatprep.subr.mxu0 0.0
        %2127 = vmatpush1.msra.mxu0 %v1022
        %2128 = vmatprep.subr.mxu0 0.0
        %2129 = vmatpush1.msra.mxu0 %v1021
        %2130 = vmatprep.subr.mxu0 0.0
        %2131 = vmatpush1.msra.mxu0 %v1020
        %2132 = vmatprep.subr.mxu0 0.0
        %2133 = vmatpush2.msra.mxu0 %v1051
        %2134 = vmatprep.subr.mxu0 0.0
        %2135 = vmatpush2.msra.mxu0 %v1050
        %2136 = vmatprep.subr.mxu0 0.0
        %2137 = vmatpush2.msra.mxu0 %v1049
        %2138 = vmatprep.subr.mxu0 0.0
        %2139 = vmatpush2.msra.mxu0 %v1048
        %2140 = vmatprep.subr.mxu0 0.0
        %2141 = vmatpush2.msra.mxu0 %v1047
        %2142 = vmatprep.subr.mxu0 0.0
        %2143 = vmatpush2.msra.mxu0 %v1046
        %2144 = vmatprep.subr.mxu0 0.0
        %2145 = vmatpush2.msra.mxu0 %v1045
        %2146 = vmatprep.subr.mxu0 0.0
        %2147 = vmatpush2.msra.mxu0 %v1044
        %2148 = vmatprep.subr.mxu0 0.0
        %2149 = vmatpush2.msra.mxu0 %v1043
        %2150 = vmatprep.subr.mxu0 0.0
        %2151 = vmatpush2.msra.mxu0 %v1042
        %2152 = vmatprep.subr.mxu0 0.0
        %2153 = vmatpush2.msra.mxu0 %v1041
        %2154 = vmatprep.subr.mxu0 0.0
        %2155 = vmatpush2.msra.mxu0 %v1040
        %2156 = vmatprep.subr.mxu0 0.0
        %2157 = vmatpush2.msra.mxu0 %v1039
        %2158 = vmatprep.subr.mxu0 0.0
        %2159 = vmatpush2.msra.mxu0 %v1038
        %2160 = vmatprep.subr.mxu0 0.0
        %2161 = vmatpush2.msra.mxu0 %v1037
        %2162 = vmatprep.subr.mxu0 0.0
        %2163 = vmatpush2.msra.mxu0 %v1036
        %2164 = vmatprep.mubr.f32.mxu0 %v2093
        %2165 = vmatmul.mubr.f32.gmra.mxu0 %v2092
        %v2166 = vpop.f32.mrf.mxu0
        %v2167 = vadd.f32 %v2098, %v2166
        %v2168 = vpop.f32.mrf.mxu0
        %2169 = vdwg.mxu0
        %2170 = vst [vmem:[%s365] sm:$0xff] %v2167
        %s2171 = scalar_lea.vmem %s336, 8 [#allocation4]
        %v2172 = vld [vmem:[%s2171] sm:$0xff]
        %2173 = vmatprep.subr.mxu0 %v629
        %2174 = vmatpush1.msra.mxu0 %v628
        %2175 = vmatprep.subr.mxu0 %v621
        %2176 = vmatpush1.msra.mxu0 %v620
        %2177 = vmatprep.subr.mxu0 %v613
        %2178 = vmatpush1.msra.mxu0 %v612
        %2179 = vmatprep.subr.mxu0 %v605
        %2180 = vmatpush1.msra.mxu0 %v604
        %2181 = vmatprep.subr.mxu0 %v597
        %2182 = vmatpush1.msra.mxu0 %v596
        %2183 = vmatprep.subr.mxu0 %v589
        %2184 = vmatpush1.msra.mxu0 %v588
        %2185 = vmatprep.subr.mxu0 %v581
        %2186 = vmatpush1.msra.mxu0 %v580
        %2187 = vmatprep.subr.mxu0 %v573
        %2188 = vmatpush1.msra.mxu0 %v572
        %2189 = vmatprep.subr.mxu0 %v565
        %2190 = vmatpush1.msra.mxu0 %v564
        %2191 = vmatprep.subr.mxu0 %v557
        %2192 = vmatpush1.msra.mxu0 %v556
        %2193 = vmatprep.subr.mxu0 %v549
        %2194 = vmatpush1.msra.mxu0 %v548
        %2195 = vmatprep.subr.mxu0 %v541
        %2196 = vmatpush1.msra.mxu0 %v540
        %2197 = vmatprep.subr.mxu0 %v533
        %2198 = vmatpush1.msra.mxu0 %v532
        %2199 = vmatprep.subr.mxu0 %v525
        %2200 = vmatpush1.msra.mxu0 %v524
        %2201 = vmatprep.subr.mxu0 %v517
        %2202 = vmatpush1.msra.mxu0 %v516
        %2203 = vmatprep.subr.mxu0 %v509
        %2204 = vmatpush1.msra.mxu0 %v508
        %2205 = vmatprep.subr.mxu0 %v757
        %2206 = vmatpush2.msra.mxu0 %v756
        %2207 = vmatprep.subr.mxu0 %v749
        %2208 = vmatpush2.msra.mxu0 %v748
        %2209 = vmatprep.subr.mxu0 %v741
        %2210 = vmatpush2.msra.mxu0 %v740
        %2211 = vmatprep.subr.mxu0 %v733
        %2212 = vmatpush2.msra.mxu0 %v732
        %2213 = vmatprep.subr.mxu0 %v725
        %2214 = vmatpush2.msra.mxu0 %v724
        %2215 = vmatprep.subr.mxu0 %v717
        %2216 = vmatpush2.msra.mxu0 %v716
        %2217 = vmatprep.subr.mxu0 %v709
        %2218 = vmatpush2.msra.mxu0 %v708
        %2219 = vmatprep.subr.mxu0 %v701
        %2220 = vmatpush2.msra.mxu0 %v700
        %2221 = vmatprep.subr.mxu0 %v693
        %2222 = vmatpush2.msra.mxu0 %v692
        %2223 = vmatprep.subr.mxu0 %v685
        %2224 = vmatpush2.msra.mxu0 %v684
        %2225 = vmatprep.subr.mxu0 %v677
        %2226 = vmatpush2.msra.mxu0 %v676
        %2227 = vmatprep.subr.mxu0 %v669
        %2228 = vmatpush2.msra.mxu0 %v668
        %2229 = vmatprep.subr.mxu0 %v661
        %2230 = vmatpush2.msra.mxu0 %v660
        %2231 = vmatprep.subr.mxu0 %v653
        %2232 = vmatpush2.msra.mxu0 %v652
        %2233 = vmatprep.subr.mxu0 %v645
        %2234 = vmatpush2.msra.mxu0 %v644
        %2235 = vmatprep.subr.mxu0 %v637
        %2236 = vmatpush2.msra.mxu0 %v636
        %2237 = vmatprep.mubr.f32.mxu0 %v1720
        %2238 = vmatmul.mubr.f32.gmra.mxu0 %v1719
        %v2239 = vpop.f32.mrf.mxu0
        %v2240 = vadd.f32 0.0, %v2239
        %v2241 = vpop.f32.mrf.mxu0
        %v2242 = vadd.f32 0.0, %v2241
        %2243 = vdwg.mxu0
        %2244 = vmatprep.subr.mxu0 %v631
        %2245 = vmatpush1.msra.mxu0 %v630
        %2246 = vmatprep.subr.mxu0 %v623
        %2247 = vmatpush1.msra.mxu0 %v622
        %2248 = vmatprep.subr.mxu0 %v615
        %2249 = vmatpush1.msra.mxu0 %v614
        %2250 = vmatprep.subr.mxu0 %v607
        %2251 = vmatpush1.msra.mxu0 %v606
        %2252 = vmatprep.subr.mxu0 %v599
        %2253 = vmatpush1.msra.mxu0 %v598
        %2254 = vmatprep.subr.mxu0 %v591
        %2255 = vmatpush1.msra.mxu0 %v590
        %2256 = vmatprep.subr.mxu0 %v583
        %2257 = vmatpush1.msra.mxu0 %v582
        %2258 = vmatprep.subr.mxu0 %v575
        %2259 = vmatpush1.msra.mxu0 %v574
        %2260 = vmatprep.subr.mxu0 %v567
        %2261 = vmatpush1.msra.mxu0 %v566
        %2262 = vmatprep.subr.mxu0 %v559
        %2263 = vmatpush1.msra.mxu0 %v558
        %2264 = vmatprep.subr.mxu0 %v551
        %2265 = vmatpush1.msra.mxu0 %v550
        %2266 = vmatprep.subr.mxu0 %v543
        %2267 = vmatpush1.msra.mxu0 %v542
        %2268 = vmatprep.subr.mxu0 %v535
        %2269 = vmatpush1.msra.mxu0 %v534
        %2270 = vmatprep.subr.mxu0 %v527
        %2271 = vmatpush1.msra.mxu0 %v526
        %2272 = vmatprep.subr.mxu0 %v519
        %2273 = vmatpush1.msra.mxu0 %v518
        %2274 = vmatprep.subr.mxu0 %v511
        %2275 = vmatpush1.msra.mxu0 %v510
        %2276 = vmatprep.subr.mxu0 %v759
        %2277 = vmatpush2.msra.mxu0 %v758
        %2278 = vmatprep.subr.mxu0 %v751
        %2279 = vmatpush2.msra.mxu0 %v750
        %2280 = vmatprep.subr.mxu0 %v743
        %2281 = vmatpush2.msra.mxu0 %v742
        %2282 = vmatprep.subr.mxu0 %v735
        %2283 = vmatpush2.msra.mxu0 %v734
        %2284 = vmatprep.subr.mxu0 %v727
        %2285 = vmatpush2.msra.mxu0 %v726
        %2286 = vmatprep.subr.mxu0 %v719
        %2287 = vmatpush2.msra.mxu0 %v718
        %2288 = vmatprep.subr.mxu0 %v711
        %2289 = vmatpush2.msra.mxu0 %v710
        %2290 = vmatprep.subr.mxu0 %v703
        %2291 = vmatpush2.msra.mxu0 %v702
        %2292 = vmatprep.subr.mxu0 %v695
        %2293 = vmatpush2.msra.mxu0 %v694
        %2294 = vmatprep.subr.mxu0 %v687
        %2295 = vmatpush2.msra.mxu0 %v686
        %2296 = vmatprep.subr.mxu0 %v679
        %2297 = vmatpush2.msra.mxu0 %v678
        %2298 = vmatprep.subr.mxu0 %v671
        %2299 = vmatpush2.msra.mxu0 %v670
        %2300 = vmatprep.subr.mxu0 %v663
        %2301 = vmatpush2.msra.mxu0 %v662
        %2302 = vmatprep.subr.mxu0 %v655
        %2303 = vmatpush2.msra.mxu0 %v654
        %2304 = vmatprep.subr.mxu0 %v647
        %2305 = vmatpush2.msra.mxu0 %v646
        %2306 = vmatprep.subr.mxu0 %v639
        %2307 = vmatpush2.msra.mxu0 %v638
        %2308 = vmatprep.mubr.f32.mxu0 %v1720
        %2309 = vmatmul.mubr.f32.gmra.mxu0 %v1719
        %v2310 = vpop.f32.mrf.mxu0
        %v2311 = vadd.f32 0.0, %v2310
        %v2312 = vpop.f32.mrf.mxu0
        %v2313 = vadd.f32 0.0, %v2312
        %2314 = vdwg.mxu0
        %2315 = vmatprep.subr.mxu0 %v633
        %2316 = vmatpush1.msra.mxu0 %v632
        %2317 = vmatprep.subr.mxu0 %v625
        %2318 = vmatpush1.msra.mxu0 %v624
        %2319 = vmatprep.subr.mxu0 %v617
        %2320 = vmatpush1.msra.mxu0 %v616
        %2321 = vmatprep.subr.mxu0 %v609
        %2322 = vmatpush1.msra.mxu0 %v608
        %2323 = vmatprep.subr.mxu0 %v601
        %2324 = vmatpush1.msra.mxu0 %v600
        %2325 = vmatprep.subr.mxu0 %v593
        %2326 = vmatpush1.msra.mxu0 %v592
        %2327 = vmatprep.subr.mxu0 %v585
        %2328 = vmatpush1.msra.mxu0 %v584
        %2329 = vmatprep.subr.mxu0 %v577
        %2330 = vmatpush1.msra.mxu0 %v576
        %2331 = vmatprep.subr.mxu0 %v569
        %2332 = vmatpush1.msra.mxu0 %v568
        %2333 = vmatprep.subr.mxu0 %v561
        %2334 = vmatpush1.msra.mxu0 %v560
        %2335 = vmatprep.subr.mxu0 %v553
        %2336 = vmatpush1.msra.mxu0 %v552
        %2337 = vmatprep.subr.mxu0 %v545
        %2338 = vmatpush1.msra.mxu0 %v544
        %2339 = vmatprep.subr.mxu0 %v537
        %2340 = vmatpush1.msra.mxu0 %v536
        %2341 = vmatprep.subr.mxu0 %v529
        %2342 = vmatpush1.msra.mxu0 %v528
        %2343 = vmatprep.subr.mxu0 %v521
        %2344 = vmatpush1.msra.mxu0 %v520
        %2345 = vmatprep.subr.mxu0 %v513
        %2346 = vmatpush1.msra.mxu0 %v512
        %2347 = vmatprep.subr.mxu0 %v761
        %2348 = vmatpush2.msra.mxu0 %v760
        %2349 = vmatprep.subr.mxu0 %v753
        %2350 = vmatpush2.msra.mxu0 %v752
        %2351 = vmatprep.subr.mxu0 %v745
        %2352 = vmatpush2.msra.mxu0 %v744
        %2353 = vmatprep.subr.mxu0 %v737
        %2354 = vmatpush2.msra.mxu0 %v736
        %2355 = vmatprep.subr.mxu0 %v729
        %2356 = vmatpush2.msra.mxu0 %v728
        %2357 = vmatprep.subr.mxu0 %v721
        %2358 = vmatpush2.msra.mxu0 %v720
        %2359 = vmatprep.subr.mxu0 %v713
        %2360 = vmatpush2.msra.mxu0 %v712
        %2361 = vmatprep.subr.mxu0 %v705
        %2362 = vmatpush2.msra.mxu0 %v704
        %2363 = vmatprep.subr.mxu0 %v697
        %2364 = vmatpush2.msra.mxu0 %v696
        %2365 = vmatprep.subr.mxu0 %v689
        %2366 = vmatpush2.msra.mxu0 %v688
        %2367 = vmatprep.subr.mxu0 %v681
        %2368 = vmatpush2.msra.mxu0 %v680
        %2369 = vmatprep.subr.mxu0 %v673
        %2370 = vmatpush2.msra.mxu0 %v672
        %2371 = vmatprep.subr.mxu0 %v665
        %2372 = vmatpush2.msra.mxu0 %v664
        %2373 = vmatprep.subr.mxu0 %v657
        %2374 = vmatpush2.msra.mxu0 %v656
        %2375 = vmatprep.subr.mxu0 %v649
        %2376 = vmatpush2.msra.mxu0 %v648
        %2377 = vmatprep.subr.mxu0 %v641
        %2378 = vmatpush2.msra.mxu0 %v640
        %2379 = vmatprep.mubr.f32.mxu0 %v1720
        %2380 = vmatmul.mubr.f32.gmra.mxu0 %v1719
        %v2381 = vpop.f32.mrf.mxu0
        %v2382 = vadd.f32 0.0, %v2381
        %v2383 = vpop.f32.mrf.mxu0
        %v2384 = vadd.f32 0.0, %v2383
        %2385 = vdwg.mxu0
        %2386 = vmatprep.subr.mxu0 %v635
        %2387 = vmatpush1.msra.mxu0 %v634
        %2388 = vmatprep.subr.mxu0 %v627
        %2389 = vmatpush1.msra.mxu0 %v626
        %2390 = vmatprep.subr.mxu0 %v619
        %2391 = vmatpush1.msra.mxu0 %v618
        %2392 = vmatprep.subr.mxu0 %v611
        %2393 = vmatpush1.msra.mxu0 %v610
        %2394 = vmatprep.subr.mxu0 %v603
        %2395 = vmatpush1.msra.mxu0 %v602
        %2396 = vmatprep.subr.mxu0 %v595
        %2397 = vmatpush1.msra.mxu0 %v594
        %2398 = vmatprep.subr.mxu0 %v587
        %2399 = vmatpush1.msra.mxu0 %v586
        %2400 = vmatprep.subr.mxu0 %v579
        %2401 = vmatpush1.msra.mxu0 %v578
        %2402 = vmatprep.subr.mxu0 %v571
        %2403 = vmatpush1.msra.mxu0 %v570
        %2404 = vmatprep.subr.mxu0 %v563
        %2405 = vmatpush1.msra.mxu0 %v562
        %2406 = vmatprep.subr.mxu0 %v555
        %2407 = vmatpush1.msra.mxu0 %v554
        %2408 = vmatprep.subr.mxu0 %v547
        %2409 = vmatpush1.msra.mxu0 %v546
        %2410 = vmatprep.subr.mxu0 %v539
        %2411 = vmatpush1.msra.mxu0 %v538
        %2412 = vmatprep.subr.mxu0 %v531
        %2413 = vmatpush1.msra.mxu0 %v530
        %2414 = vmatprep.subr.mxu0 %v523
        %2415 = vmatpush1.msra.mxu0 %v522
        %2416 = vmatprep.subr.mxu0 %v515
        %2417 = vmatpush1.msra.mxu0 %v514
        %2418 = vmatprep.subr.mxu0 %v763
        %2419 = vmatpush2.msra.mxu0 %v762
        %2420 = vmatprep.subr.mxu0 %v755
        %2421 = vmatpush2.msra.mxu0 %v754
        %2422 = vmatprep.subr.mxu0 %v747
        %2423 = vmatpush2.msra.mxu0 %v746
        %2424 = vmatprep.subr.mxu0 %v739
        %2425 = vmatpush2.msra.mxu0 %v738
        %2426 = vmatprep.subr.mxu0 %v731
        %2427 = vmatpush2.msra.mxu0 %v730
        %2428 = vmatprep.subr.mxu0 %v723
        %2429 = vmatpush2.msra.mxu0 %v722
        %2430 = vmatprep.subr.mxu0 %v715
        %2431 = vmatpush2.msra.mxu0 %v714
        %2432 = vmatprep.subr.mxu0 %v707
        %2433 = vmatpush2.msra.mxu0 %v706
        %2434 = vmatprep.subr.mxu0 %v699
        %2435 = vmatpush2.msra.mxu0 %v698
        %2436 = vmatprep.subr.mxu0 %v691
        %2437 = vmatpush2.msra.mxu0 %v690
        %2438 = vmatprep.subr.mxu0 %v683
        %2439 = vmatpush2.msra.mxu0 %v682
        %2440 = vmatprep.subr.mxu0 %v675
        %2441 = vmatpush2.msra.mxu0 %v674
        %2442 = vmatprep.subr.mxu0 %v667
        %2443 = vmatpush2.msra.mxu0 %v666
        %2444 = vmatprep.subr.mxu0 %v659
        %2445 = vmatpush2.msra.mxu0 %v658
        %2446 = vmatprep.subr.mxu0 %v651
        %2447 = vmatpush2.msra.mxu0 %v650
        %2448 = vmatprep.subr.mxu0 %v643
        %2449 = vmatpush2.msra.mxu0 %v642
        %2450 = vmatprep.mubr.f32.mxu0 %v1720
        %2451 = vmatmul.mubr.f32.gmra.mxu0 %v1719
        %v2452 = vpop.f32.mrf.mxu0
        %v2453 = vadd.f32 0.0, %v2452
        %v2454 = vpop.f32.mrf.mxu0
        %v2455 = vadd.f32 0.0, %v2454
        %2456 = vdwg.mxu0
        %2457 = vmatprep.subr.mxu0 %v501
        %2458 = vmatpush1.msra.mxu0 %v500
        %2459 = vmatprep.subr.mxu0 %v493
        %2460 = vmatpush1.msra.mxu0 %v492
        %2461 = vmatprep.subr.mxu0 %v485
        %2462 = vmatpush1.msra.mxu0 %v484
        %2463 = vmatprep.subr.mxu0 %v477
        %2464 = vmatpush1.msra.mxu0 %v476
        %2465 = vmatprep.subr.mxu0 %v469
        %2466 = vmatpush1.msra.mxu0 %v468
        %2467 = vmatprep.subr.mxu0 %v461
        %2468 = vmatpush1.msra.mxu0 %v460
        %2469 = vmatprep.subr.mxu0 %v453
        %2470 = vmatpush1.msra.mxu0 %v452
        %2471 = vmatprep.subr.mxu0 %v445
        %2472 = vmatpush1.msra.mxu0 %v444
        %2473 = vmatprep.subr.mxu0 %v437
        %2474 = vmatpush1.msra.mxu0 %v436
        %2475 = vmatprep.subr.mxu0 %v429
        %2476 = vmatpush1.msra.mxu0 %v428
        %2477 = vmatprep.subr.mxu0 %v421
        %2478 = vmatpush1.msra.mxu0 %v420
        %2479 = vmatprep.subr.mxu0 %v413
        %2480 = vmatpush1.msra.mxu0 %v412
        %2481 = vmatprep.subr.mxu0 %v405
        %2482 = vmatpush1.msra.mxu0 %v404
        %2483 = vmatprep.subr.mxu0 %v397
        %2484 = vmatpush1.msra.mxu0 %v396
        %2485 = vmatprep.subr.mxu0 %v389
        %2486 = vmatpush1.msra.mxu0 %v388
        %2487 = vmatprep.subr.mxu0 %v381
        %2488 = vmatpush1.msra.mxu0 %v380
        %2489 = vmatprep.subr.mxu0 0.0
        %2490 = vmatpush2.msra.mxu0 0.0
        %2491 = vmatprep.subr.mxu0 0.0
        %2492 = vmatpush2.msra.mxu0 0.0
        %2493 = vmatprep.subr.mxu0 0.0
        %2494 = vmatpush2.msra.mxu0 0.0
        %2495 = vmatprep.subr.mxu0 0.0
        %2496 = vmatpush2.msra.mxu0 0.0
        %2497 = vmatprep.subr.mxu0 0.0
        %2498 = vmatpush2.msra.mxu0 0.0
        %2499 = vmatprep.subr.mxu0 0.0
        %2500 = vmatpush2.msra.mxu0 0.0
        %2501 = vmatprep.subr.mxu0 0.0
        %2502 = vmatpush2.msra.mxu0 0.0
        %2503 = vmatprep.subr.mxu0 0.0
        %2504 = vmatpush2.msra.mxu0 0.0
        %2505 = vmatprep.subr.mxu0 0.0
        %2506 = vmatpush2.msra.mxu0 0.0
        %2507 = vmatprep.subr.mxu0 0.0
        %2508 = vmatpush2.msra.mxu0 0.0
        %2509 = vmatprep.subr.mxu0 0.0
        %2510 = vmatpush2.msra.mxu0 0.0
        %2511 = vmatprep.subr.mxu0 0.0
        %2512 = vmatpush2.msra.mxu0 0.0
        %2513 = vmatprep.subr.mxu0 0.0
        %2514 = vmatpush2.msra.mxu0 0.0
        %2515 = vmatprep.subr.mxu0 0.0
        %2516 = vmatpush2.msra.mxu0 0.0
        %2517 = vmatprep.subr.mxu0 0.0
        %2518 = vmatpush2.msra.mxu0 0.0
        %2519 = vmatprep.subr.mxu0 0.0
        %2520 = vmatpush2.msra.mxu0 0.0
        %2521 = vmatprep.mubr.f32.mxu0 0.0
        %2522 = vmatmul.mubr.f32.gmra.mxu0 %v2172
        %v2523 = vpop.f32.mrf.mxu0
        %v2524 = vadd.f32 %v2240, %v2523
        %v2525 = vpop.f32.mrf.mxu0
        %v2526 = vadd.f32 %v2242, %v2525
        %2527 = vdwg.mxu0
        %2528 = vmatprep.subr.mxu0 %v503
        %2529 = vmatpush1.msra.mxu0 %v502
        %2530 = vmatprep.subr.mxu0 %v495
        %2531 = vmatpush1.msra.mxu0 %v494
        %2532 = vmatprep.subr.mxu0 %v487
        %2533 = vmatpush1.msra.mxu0 %v486
        %2534 = vmatprep.subr.mxu0 %v479
        %2535 = vmatpush1.msra.mxu0 %v478
        %2536 = vmatprep.subr.mxu0 %v471
        %2537 = vmatpush1.msra.mxu0 %v470
        %2538 = vmatprep.subr.mxu0 %v463
        %2539 = vmatpush1.msra.mxu0 %v462
        %2540 = vmatprep.subr.mxu0 %v455
        %2541 = vmatpush1.msra.mxu0 %v454
        %2542 = vmatprep.subr.mxu0 %v447
        %2543 = vmatpush1.msra.mxu0 %v446
        %2544 = vmatprep.subr.mxu0 %v439
        %2545 = vmatpush1.msra.mxu0 %v438
        %2546 = vmatprep.subr.mxu0 %v431
        %2547 = vmatpush1.msra.mxu0 %v430
        %2548 = vmatprep.subr.mxu0 %v423
        %2549 = vmatpush1.msra.mxu0 %v422
        %2550 = vmatprep.subr.mxu0 %v415
        %2551 = vmatpush1.msra.mxu0 %v414
        %2552 = vmatprep.subr.mxu0 %v407
        %2553 = vmatpush1.msra.mxu0 %v406
        %2554 = vmatprep.subr.mxu0 %v399
        %2555 = vmatpush1.msra.mxu0 %v398
        %2556 = vmatprep.subr.mxu0 %v391
        %2557 = vmatpush1.msra.mxu0 %v390
        %2558 = vmatprep.subr.mxu0 %v383
        %2559 = vmatpush1.msra.mxu0 %v382
        %2560 = vmatprep.subr.mxu0 0.0
        %2561 = vmatpush2.msra.mxu0 0.0
        %2562 = vmatprep.subr.mxu0 0.0
        %2563 = vmatpush2.msra.mxu0 0.0
        %2564 = vmatprep.subr.mxu0 0.0
        %2565 = vmatpush2.msra.mxu0 0.0
        %2566 = vmatprep.subr.mxu0 0.0
        %2567 = vmatpush2.msra.mxu0 0.0
        %2568 = vmatprep.subr.mxu0 0.0
        %2569 = vmatpush2.msra.mxu0 0.0
        %2570 = vmatprep.subr.mxu0 0.0
        %2571 = vmatpush2.msra.mxu0 0.0
        %2572 = vmatprep.subr.mxu0 0.0
        %2573 = vmatpush2.msra.mxu0 0.0
        %2574 = vmatprep.subr.mxu0 0.0
        %2575 = vmatpush2.msra.mxu0 0.0
        %2576 = vmatprep.subr.mxu0 0.0
        %2577 = vmatpush2.msra.mxu0 0.0
        %2578 = vmatprep.subr.mxu0 0.0
        %2579 = vmatpush2.msra.mxu0 0.0
        %2580 = vmatprep.subr.mxu0 0.0
        %2581 = vmatpush2.msra.mxu0 0.0
        %2582 = vmatprep.subr.mxu0 0.0
        %2583 = vmatpush2.msra.mxu0 0.0
        %2584 = vmatprep.subr.mxu0 0.0
        %2585 = vmatpush2.msra.mxu0 0.0
        %2586 = vmatprep.subr.mxu0 0.0
        %2587 = vmatpush2.msra.mxu0 0.0
        %2588 = vmatprep.subr.mxu0 0.0
        %2589 = vmatpush2.msra.mxu0 0.0
        %2590 = vmatprep.subr.mxu0 0.0
        %2591 = vmatpush2.msra.mxu0 0.0
        %2592 = vmatprep.mubr.f32.mxu0 0.0
        %2593 = vmatmul.mubr.f32.gmra.mxu0 %v2172
        %v2594 = vpop.f32.mrf.mxu0
        %v2595 = vadd.f32 %v2311, %v2594
        %v2596 = vpop.f32.mrf.mxu0
        %v2597 = vadd.f32 %v2313, %v2596
        %2598 = vdwg.mxu0
        %2599 = vmatprep.subr.mxu0 %v505
        %2600 = vmatpush1.msra.mxu0 %v504
        %2601 = vmatprep.subr.mxu0 %v497
        %2602 = vmatpush1.msra.mxu0 %v496
        %2603 = vmatprep.subr.mxu0 %v489
        %2604 = vmatpush1.msra.mxu0 %v488
        %2605 = vmatprep.subr.mxu0 %v481
        %2606 = vmatpush1.msra.mxu0 %v480
        %2607 = vmatprep.subr.mxu0 %v473
        %2608 = vmatpush1.msra.mxu0 %v472
        %2609 = vmatprep.subr.mxu0 %v465
        %2610 = vmatpush1.msra.mxu0 %v464
        %2611 = vmatprep.subr.mxu0 %v457
        %2612 = vmatpush1.msra.mxu0 %v456
        %2613 = vmatprep.subr.mxu0 %v449
        %2614 = vmatpush1.msra.mxu0 %v448
        %2615 = vmatprep.subr.mxu0 %v441
        %2616 = vmatpush1.msra.mxu0 %v440
        %2617 = vmatprep.subr.mxu0 %v433
        %2618 = vmatpush1.msra.mxu0 %v432
        %2619 = vmatprep.subr.mxu0 %v425
        %2620 = vmatpush1.msra.mxu0 %v424
        %2621 = vmatprep.subr.mxu0 %v417
        %2622 = vmatpush1.msra.mxu0 %v416
        %2623 = vmatprep.subr.mxu0 %v409
        %2624 = vmatpush1.msra.mxu0 %v408
        %2625 = vmatprep.subr.mxu0 %v401
        %2626 = vmatpush1.msra.mxu0 %v400
        %2627 = vmatprep.subr.mxu0 %v393
        %2628 = vmatpush1.msra.mxu0 %v392
        %2629 = vmatprep.subr.mxu0 %v385
        %2630 = vmatpush1.msra.mxu0 %v384
        %2631 = vmatprep.subr.mxu0 0.0
        %2632 = vmatpush2.msra.mxu0 0.0
        %2633 = vmatprep.subr.mxu0 0.0
        %2634 = vmatpush2.msra.mxu0 0.0
        %2635 = vmatprep.subr.mxu0 0.0
        %2636 = vmatpush2.msra.mxu0 0.0
        %2637 = vmatprep.subr.mxu0 0.0
        %2638 = vmatpush2.msra.mxu0 0.0
        %2639 = vmatprep.subr.mxu0 0.0
        %2640 = vmatpush2.msra.mxu0 0.0
        %2641 = vmatprep.subr.mxu0 0.0
        %2642 = vmatpush2.msra.mxu0 0.0
        %2643 = vmatprep.subr.mxu0 0.0
        %2644 = vmatpush2.msra.mxu0 0.0
        %2645 = vmatprep.subr.mxu0 0.0
        %2646 = vmatpush2.msra.mxu0 0.0
        %2647 = vmatprep.subr.mxu0 0.0
        %2648 = vmatpush2.msra.mxu0 0.0
        %2649 = vmatprep.subr.mxu0 0.0
        %2650 = vmatpush2.msra.mxu0 0.0
        %2651 = vmatprep.subr.mxu0 0.0
        %2652 = vmatpush2.msra.mxu0 0.0
        %2653 = vmatprep.subr.mxu0 0.0
        %2654 = vmatpush2.msra.mxu0 0.0
        %2655 = vmatprep.subr.mxu0 0.0
        %2656 = vmatpush2.msra.mxu0 0.0
        %2657 = vmatprep.subr.mxu0 0.0
        %2658 = vmatpush2.msra.mxu0 0.0
        %2659 = vmatprep.subr.mxu0 0.0
        %2660 = vmatpush2.msra.mxu0 0.0
        %2661 = vmatprep.subr.mxu0 0.0
        %2662 = vmatpush2.msra.mxu0 0.0
        %2663 = vmatprep.mubr.f32.mxu0 0.0
        %2664 = vmatmul.mubr.f32.gmra.mxu0 %v2172
        %v2665 = vpop.f32.mrf.mxu0
        %v2666 = vadd.f32 %v2382, %v2665
        %v2667 = vpop.f32.mrf.mxu0
        %v2668 = vadd.f32 %v2384, %v2667
        %2669 = vdwg.mxu0
        %2670 = vmatprep.subr.mxu0 %v507
        %2671 = vmatpush1.msra.mxu0 %v506
        %2672 = vmatprep.subr.mxu0 %v499
        %2673 = vmatpush1.msra.mxu0 %v498
        %2674 = vmatprep.subr.mxu0 %v491
        %2675 = vmatpush1.msra.mxu0 %v490
        %2676 = vmatprep.subr.mxu0 %v483
        %2677 = vmatpush1.msra.mxu0 %v482
        %2678 = vmatprep.subr.mxu0 %v475
        %2679 = vmatpush1.msra.mxu0 %v474
        %2680 = vmatprep.subr.mxu0 %v467
        %2681 = vmatpush1.msra.mxu0 %v466
        %2682 = vmatprep.subr.mxu0 %v459
        %2683 = vmatpush1.msra.mxu0 %v458
        %2684 = vmatprep.subr.mxu0 %v451
        %2685 = vmatpush1.msra.mxu0 %v450
        %2686 = vmatprep.subr.mxu0 %v443
        %2687 = vmatpush1.msra.mxu0 %v442
        %2688 = vmatprep.subr.mxu0 %v435
        %2689 = vmatpush1.msra.mxu0 %v434
        %2690 = vmatprep.subr.mxu0 %v427
        %2691 = vmatpush1.msra.mxu0 %v426
        %2692 = vmatprep.subr.mxu0 %v419
        %2693 = vmatpush1.msra.mxu0 %v418
        %2694 = vmatprep.subr.mxu0 %v411
        %2695 = vmatpush1.msra.mxu0 %v410
        %2696 = vmatprep.subr.mxu0 %v403
        %2697 = vmatpush1.msra.mxu0 %v402
        %2698 = vmatprep.subr.mxu0 %v395
        %2699 = vmatpush1.msra.mxu0 %v394
        %2700 = vmatprep.subr.mxu0 %v387
        %2701 = vmatpush1.msra.mxu0 %v386
        %2702 = vmatprep.subr.mxu0 0.0
        %2703 = vmatpush2.msra.mxu0 0.0
        %2704 = vmatprep.subr.mxu0 0.0
        %2705 = vmatpush2.msra.mxu0 0.0
        %2706 = vmatprep.subr.mxu0 0.0
        %2707 = vmatpush2.msra.mxu0 0.0
        %2708 = vmatprep.subr.mxu0 0.0
        %2709 = vmatpush2.msra.mxu0 0.0
        %2710 = vmatprep.subr.mxu0 0.0
        %2711 = vmatpush2.msra.mxu0 0.0
        %2712 = vmatprep.subr.mxu0 0.0
        %2713 = vmatpush2.msra.mxu0 0.0
        %2714 = vmatprep.subr.mxu0 0.0
        %2715 = vmatpush2.msra.mxu0 0.0
        %2716 = vmatprep.subr.mxu0 0.0
        %2717 = vmatpush2.msra.mxu0 0.0
        %2718 = vmatprep.subr.mxu0 0.0
        %2719 = vmatpush2.msra.mxu0 0.0
        %2720 = vmatprep.subr.mxu0 0.0
        %2721 = vmatpush2.msra.mxu0 0.0
        %2722 = vmatprep.subr.mxu0 0.0
        %2723 = vmatpush2.msra.mxu0 0.0
        %2724 = vmatprep.subr.mxu0 0.0
        %2725 = vmatpush2.msra.mxu0 0.0
        %2726 = vmatprep.subr.mxu0 0.0
        %2727 = vmatpush2.msra.mxu0 0.0
        %2728 = vmatprep.subr.mxu0 0.0
        %2729 = vmatpush2.msra.mxu0 0.0
        %2730 = vmatprep.subr.mxu0 0.0
        %2731 = vmatpush2.msra.mxu0 0.0
        %2732 = vmatprep.subr.mxu0 0.0
        %2733 = vmatpush2.msra.mxu0 0.0
        %2734 = vmatprep.mubr.f32.mxu0 0.0
        %2735 = vmatmul.mubr.f32.gmra.mxu0 %v2172
        %v2736 = vpop.f32.mrf.mxu0
        %v2737 = vadd.f32 %v2453, %v2736
        %v2738 = vpop.f32.mrf.mxu0
        %v2739 = vadd.f32 %v2455, %v2738
        %2740 = vdwg.mxu0
        %v2741 = vadd.f32 %v2524, %v1628
        %v2742 = vadd.f32 %v2526, %v1632
        %v2743 = vadd.f32 %v2595, %v1636
        %v2744 = vadd.f32 %v2597, %v1640
        %v2745 = vadd.f32 %v2666, %v1644
        %v2746 = vadd.f32 %v2668, %v1648
        %v2747 = vadd.f32 %v2737, %v1652
        %v2748 = vadd.f32 %v2739, %v1656
        %v2749 = vxor.u32 %v2741, 2147483648
        %v2750 = vxor.u32 %v2742, 2147483648
        %v2751 = vmul.f32 %v2749, 1.442695
        %v2752 = vpow.pop %v2751
        %v2753 = vmul.f32 %v2750, 1.442695
        %v2754 = vpow.pop %v2753
        %v2755 = vadd.f32 %v2752, 1.0
        %v2756 = vadd.f32 %v2754, 1.0
        %v2757 = vrcp.pop %v2755
        %v2758 = vmul.f32 1.0, %v2757
        %v2759 = vrcp.pop %v2756
        %v2760 = vmul.f32 1.0, %v2759
        %v2761 = vxor.u32 %v2743, 2147483648
        %v2762 = vxor.u32 %v2744, 2147483648
        %v2763 = vmul.f32 %v2761, 1.442695
        %v2764 = vpow.pop %v2763
        %v2765 = vmul.f32 %v2762, 1.442695
        %v2766 = vpow.pop %v2765
        %v2767 = vadd.f32 %v2764, 1.0
        %v2768 = vadd.f32 %v2766, 1.0
        %v2769 = vrcp.pop %v2767
        %v2770 = vmul.f32 1.0, %v2769
        %v2771 = vrcp.pop %v2768
        %v2772 = vmul.f32 1.0, %v2771
        %v2773 = vtanh.pop %v2745
        %v2774 = vtanh.pop %v2746
        %v2775 = vxor.u32 %v2747, 2147483648
        %v2776 = vxor.u32 %v2748, 2147483648
        %v2777 = vmul.f32 %v2775, 1.442695
        %v2778 = vpow.pop %v2777
        %v2779 = vmul.f32 %v2776, 1.442695
        %v2780 = vpow.pop %v2779
        %v2781 = vadd.f32 %v2778, 1.0
        %v2782 = vadd.f32 %v2780, 1.0
        %v2783 = vrcp.pop %v2781
        %v2784 = vmul.f32 1.0, %v2783
        %v2785 = vrcp.pop %v2782
        %v2786 = vmul.f32 1.0, %v2785
        %v2787 = vmul.f32 %v2770, %v1715
        %v2788 = vmul.f32 %v2772, %v1716
        %v2789 = vmul.f32 %v2758, %v2773
        %v2790 = vmul.f32 %v2760, %v2774
        %v2791 = vadd.f32 %v2787, %v2789
        %v2792 = vadd.f32 %v2788, %v2790
        %v2793 = vtanh.pop %v2791
        %v2794 = vtanh.pop %v2792
        %v2795 = vmul.f32 %v2784, %v2793
        %v2796 = vmul.f32 %v2786, %v2794
        %2797 = vmatprep.subr.mxu0 %v885
        %2798 = vmatpush1.msra.mxu0 %v884
        %2799 = vmatprep.subr.mxu0 %v877
        %2800 = vmatpush1.msra.mxu0 %v876
        %2801 = vmatprep.subr.mxu0 %v869
        %2802 = vmatpush1.msra.mxu0 %v868
        %2803 = vmatprep.subr.mxu0 %v861
        %2804 = vmatpush1.msra.mxu0 %v860
        %2805 = vmatprep.subr.mxu0 %v853
        %2806 = vmatpush1.msra.mxu0 %v852
        %2807 = vmatprep.subr.mxu0 %v845
        %2808 = vmatpush1.msra.mxu0 %v844
        %2809 = vmatprep.subr.mxu0 %v837
        %2810 = vmatpush1.msra.mxu0 %v836
        %2811 = vmatprep.subr.mxu0 %v829
        %2812 = vmatpush1.msra.mxu0 %v828
        %2813 = vmatprep.subr.mxu0 %v821
        %2814 = vmatpush1.msra.mxu0 %v820
        %2815 = vmatprep.subr.mxu0 %v813
        %2816 = vmatpush1.msra.mxu0 %v812
        %2817 = vmatprep.subr.mxu0 %v805
        %2818 = vmatpush1.msra.mxu0 %v804
        %2819 = vmatprep.subr.mxu0 %v797
        %2820 = vmatpush1.msra.mxu0 %v796
        %2821 = vmatprep.subr.mxu0 %v789
        %2822 = vmatpush1.msra.mxu0 %v788
        %2823 = vmatprep.subr.mxu0 %v781
        %2824 = vmatpush1.msra.mxu0 %v780
        %2825 = vmatprep.subr.mxu0 %v773
        %2826 = vmatpush1.msra.mxu0 %v772
        %2827 = vmatprep.subr.mxu0 %v765
        %2828 = vmatpush1.msra.mxu0 %v764
        %2829 = vmatprep.subr.mxu0 %v1013
        %2830 = vmatpush2.msra.mxu0 %v1012
        %2831 = vmatprep.subr.mxu0 %v1005
        %2832 = vmatpush2.msra.mxu0 %v1004
        %2833 = vmatprep.subr.mxu0 %v997
        %2834 = vmatpush2.msra.mxu0 %v996
        %2835 = vmatprep.subr.mxu0 %v989
        %2836 = vmatpush2.msra.mxu0 %v988
        %2837 = vmatprep.subr.mxu0 %v981
        %2838 = vmatpush2.msra.mxu0 %v980
        %2839 = vmatprep.subr.mxu0 %v973
        %2840 = vmatpush2.msra.mxu0 %v972
        %2841 = vmatprep.subr.mxu0 %v965
        %2842 = vmatpush2.msra.mxu0 %v964
        %2843 = vmatprep.subr.mxu0 %v957
        %2844 = vmatpush2.msra.mxu0 %v956
        %2845 = vmatprep.subr.mxu0 %v949
        %2846 = vmatpush2.msra.mxu0 %v948
        %2847 = vmatprep.subr.mxu0 %v941
        %2848 = vmatpush2.msra.mxu0 %v940
        %2849 = vmatprep.subr.mxu0 %v933
        %2850 = vmatpush2.msra.mxu0 %v932
        %2851 = vmatprep.subr.mxu0 %v925
        %2852 = vmatpush2.msra.mxu0 %v924
        %2853 = vmatprep.subr.mxu0 %v917
        %2854 = vmatpush2.msra.mxu0 %v916
        %2855 = vmatprep.subr.mxu0 %v909
        %2856 = vmatpush2.msra.mxu0 %v908
        %2857 = vmatprep.subr.mxu0 %v901
        %2858 = vmatpush2.msra.mxu0 %v900
        %2859 = vmatprep.subr.mxu0 %v893
        %2860 = vmatpush2.msra.mxu0 %v892
        %2861 = vmatprep.mubr.f32.mxu0 %v2796
        %2862 = vmatmul.mubr.f32.gmra.mxu0 %v2795
        %v2863 = vpop.f32.mrf.mxu0
        %v2864 = vadd.f32 %v1725, %v2863
        %v2865 = vpop.f32.mrf.mxu0
        %v2866 = vadd.f32 %v1729, %v2865
        %2867 = vdwg.mxu0
        %2868 = vmatprep.subr.mxu0 %v887
        %2869 = vmatpush1.msra.mxu0 %v886
        %2870 = vmatprep.subr.mxu0 %v879
        %2871 = vmatpush1.msra.mxu0 %v878
        %2872 = vmatprep.subr.mxu0 %v871
        %2873 = vmatpush1.msra.mxu0 %v870
        %2874 = vmatprep.subr.mxu0 %v863
        %2875 = vmatpush1.msra.mxu0 %v862
        %2876 = vmatprep.subr.mxu0 %v855
        %2877 = vmatpush1.msra.mxu0 %v854
        %2878 = vmatprep.subr.mxu0 %v847
        %2879 = vmatpush1.msra.mxu0 %v846
        %2880 = vmatprep.subr.mxu0 %v839
        %2881 = vmatpush1.msra.mxu0 %v838
        %2882 = vmatprep.subr.mxu0 %v831
        %2883 = vmatpush1.msra.mxu0 %v830
        %2884 = vmatprep.subr.mxu0 %v823
        %2885 = vmatpush1.msra.mxu0 %v822
        %2886 = vmatprep.subr.mxu0 %v815
        %2887 = vmatpush1.msra.mxu0 %v814
        %2888 = vmatprep.subr.mxu0 %v807
        %2889 = vmatpush1.msra.mxu0 %v806
        %2890 = vmatprep.subr.mxu0 %v799
        %2891 = vmatpush1.msra.mxu0 %v798
        %2892 = vmatprep.subr.mxu0 %v791
        %2893 = vmatpush1.msra.mxu0 %v790
        %2894 = vmatprep.subr.mxu0 %v783
        %2895 = vmatpush1.msra.mxu0 %v782
        %2896 = vmatprep.subr.mxu0 %v775
        %2897 = vmatpush1.msra.mxu0 %v774
        %2898 = vmatprep.subr.mxu0 %v767
        %2899 = vmatpush1.msra.mxu0 %v766
        %2900 = vmatprep.subr.mxu0 %v1015
        %2901 = vmatpush2.msra.mxu0 %v1014
        %2902 = vmatprep.subr.mxu0 %v1007
        %2903 = vmatpush2.msra.mxu0 %v1006
        %2904 = vmatprep.subr.mxu0 %v999
        %2905 = vmatpush2.msra.mxu0 %v998
        %2906 = vmatprep.subr.mxu0 %v991
        %2907 = vmatpush2.msra.mxu0 %v990
        %2908 = vmatprep.subr.mxu0 %v983
        %2909 = vmatpush2.msra.mxu0 %v982
        %2910 = vmatprep.subr.mxu0 %v975
        %2911 = vmatpush2.msra.mxu0 %v974
        %2912 = vmatprep.subr.mxu0 %v967
        %2913 = vmatpush2.msra.mxu0 %v966
        %2914 = vmatprep.subr.mxu0 %v959
        %2915 = vmatpush2.msra.mxu0 %v958
        %2916 = vmatprep.subr.mxu0 %v951
        %2917 = vmatpush2.msra.mxu0 %v950
        %2918 = vmatprep.subr.mxu0 %v943
        %2919 = vmatpush2.msra.mxu0 %v942
        %2920 = vmatprep.subr.mxu0 %v935
        %2921 = vmatpush2.msra.mxu0 %v934
        %2922 = vmatprep.subr.mxu0 %v927
        %2923 = vmatpush2.msra.mxu0 %v926
        %2924 = vmatprep.subr.mxu0 %v919
        %2925 = vmatpush2.msra.mxu0 %v918
        %2926 = vmatprep.subr.mxu0 %v911
        %2927 = vmatpush2.msra.mxu0 %v910
        %2928 = vmatprep.subr.mxu0 %v903
        %2929 = vmatpush2.msra.mxu0 %v902
        %2930 = vmatprep.subr.mxu0 %v895
        %2931 = vmatpush2.msra.mxu0 %v894
        %2932 = vmatprep.mubr.f32.mxu0 %v2796
        %2933 = vmatmul.mubr.f32.gmra.mxu0 %v2795
        %v2934 = vpop.f32.mrf.mxu0
        %v2935 = vadd.f32 %v1733, %v2934
        %v2936 = vpop.f32.mrf.mxu0
        %v2937 = vadd.f32 %v1737, %v2936
        %2938 = vdwg.mxu0
        %2939 = vmatprep.subr.mxu0 %v889
        %2940 = vmatpush1.msra.mxu0 %v888
        %2941 = vmatprep.subr.mxu0 %v881
        %2942 = vmatpush1.msra.mxu0 %v880
        %2943 = vmatprep.subr.mxu0 %v873
        %2944 = vmatpush1.msra.mxu0 %v872
        %2945 = vmatprep.subr.mxu0 %v865
        %2946 = vmatpush1.msra.mxu0 %v864
        %2947 = vmatprep.subr.mxu0 %v857
        %2948 = vmatpush1.msra.mxu0 %v856
        %2949 = vmatprep.subr.mxu0 %v849
        %2950 = vmatpush1.msra.mxu0 %v848
        %2951 = vmatprep.subr.mxu0 %v841
        %2952 = vmatpush1.msra.mxu0 %v840
        %2953 = vmatprep.subr.mxu0 %v833
        %2954 = vmatpush1.msra.mxu0 %v832
        %2955 = vmatprep.subr.mxu0 %v825
        %2956 = vmatpush1.msra.mxu0 %v824
        %2957 = vmatprep.subr.mxu0 %v817
        %2958 = vmatpush1.msra.mxu0 %v816
        %2959 = vmatprep.subr.mxu0 %v809
        %2960 = vmatpush1.msra.mxu0 %v808
        %2961 = vmatprep.subr.mxu0 %v801
        %2962 = vmatpush1.msra.mxu0 %v800
        %2963 = vmatprep.subr.mxu0 %v793
        %2964 = vmatpush1.msra.mxu0 %v792
        %2965 = vmatprep.subr.mxu0 %v785
        %2966 = vmatpush1.msra.mxu0 %v784
        %2967 = vmatprep.subr.mxu0 %v777
        %2968 = vmatpush1.msra.mxu0 %v776
        %2969 = vmatprep.subr.mxu0 %v769
        %2970 = vmatpush1.msra.mxu0 %v768
        %2971 = vmatprep.subr.mxu0 %v1017
        %2972 = vmatpush2.msra.mxu0 %v1016
        %2973 = vmatprep.subr.mxu0 %v1009
        %2974 = vmatpush2.msra.mxu0 %v1008
        %2975 = vmatprep.subr.mxu0 %v1001
        %2976 = vmatpush2.msra.mxu0 %v1000
        %2977 = vmatprep.subr.mxu0 %v993
        %2978 = vmatpush2.msra.mxu0 %v992
        %2979 = vmatprep.subr.mxu0 %v985
        %2980 = vmatpush2.msra.mxu0 %v984
        %2981 = vmatprep.subr.mxu0 %v977
        %2982 = vmatpush2.msra.mxu0 %v976
        %2983 = vmatprep.subr.mxu0 %v969
        %2984 = vmatpush2.msra.mxu0 %v968
        %2985 = vmatprep.subr.mxu0 %v961
        %2986 = vmatpush2.msra.mxu0 %v960
        %2987 = vmatprep.subr.mxu0 %v953
        %2988 = vmatpush2.msra.mxu0 %v952
        %2989 = vmatprep.subr.mxu0 %v945
        %2990 = vmatpush2.msra.mxu0 %v944
        %2991 = vmatprep.subr.mxu0 %v937
        %2992 = vmatpush2.msra.mxu0 %v936
        %2993 = vmatprep.subr.mxu0 %v929
        %2994 = vmatpush2.msra.mxu0 %v928
        %2995 = vmatprep.subr.mxu0 %v921
        %2996 = vmatpush2.msra.mxu0 %v920
        %2997 = vmatprep.subr.mxu0 %v913
        %2998 = vmatpush2.msra.mxu0 %v912
        %2999 = vmatprep.subr.mxu0 %v905
        %3000 = vmatpush2.msra.mxu0 %v904
        %3001 = vmatprep.subr.mxu0 %v897
        %3002 = vmatpush2.msra.mxu0 %v896
        %3003 = vmatprep.mubr.f32.mxu0 %v2796
        %3004 = vmatmul.mubr.f32.gmra.mxu0 %v2795
        %v3005 = vpop.f32.mrf.mxu0
        %v3006 = vadd.f32 %v1741, %v3005
        %v3007 = vpop.f32.mrf.mxu0
        %v3008 = vadd.f32 %v1745, %v3007
        %3009 = vdwg.mxu0
        %3010 = vmatprep.subr.mxu0 %v891
        %3011 = vmatpush1.msra.mxu0 %v890
        %3012 = vmatprep.subr.mxu0 %v883
        %3013 = vmatpush1.msra.mxu0 %v882
        %3014 = vmatprep.subr.mxu0 %v875
        %3015 = vmatpush1.msra.mxu0 %v874
        %3016 = vmatprep.subr.mxu0 %v867
        %3017 = vmatpush1.msra.mxu0 %v866
        %3018 = vmatprep.subr.mxu0 %v859
        %3019 = vmatpush1.msra.mxu0 %v858
        %3020 = vmatprep.subr.mxu0 %v851
        %3021 = vmatpush1.msra.mxu0 %v850
        %3022 = vmatprep.subr.mxu0 %v843
        %3023 = vmatpush1.msra.mxu0 %v842
        %3024 = vmatprep.subr.mxu0 %v835
        %3025 = vmatpush1.msra.mxu0 %v834
        %3026 = vmatprep.subr.mxu0 %v827
        %3027 = vmatpush1.msra.mxu0 %v826
        %3028 = vmatprep.subr.mxu0 %v819
        %3029 = vmatpush1.msra.mxu0 %v818
        %3030 = vmatprep.subr.mxu0 %v811
        %3031 = vmatpush1.msra.mxu0 %v810
        %3032 = vmatprep.subr.mxu0 %v803
        %3033 = vmatpush1.msra.mxu0 %v802
        %3034 = vmatprep.subr.mxu0 %v795
        %3035 = vmatpush1.msra.mxu0 %v794
        %3036 = vmatprep.subr.mxu0 %v787
        %3037 = vmatpush1.msra.mxu0 %v786
        %3038 = vmatprep.subr.mxu0 %v779
        %3039 = vmatpush1.msra.mxu0 %v778
        %3040 = vmatprep.subr.mxu0 %v771
        %3041 = vmatpush1.msra.mxu0 %v770
        %3042 = vmatprep.subr.mxu0 %v1019
        %3043 = vmatpush2.msra.mxu0 %v1018
        %3044 = vmatprep.subr.mxu0 %v1011
        %3045 = vmatpush2.msra.mxu0 %v1010
        %3046 = vmatprep.subr.mxu0 %v1003
        %3047 = vmatpush2.msra.mxu0 %v1002
        %3048 = vmatprep.subr.mxu0 %v995
        %3049 = vmatpush2.msra.mxu0 %v994
        %3050 = vmatprep.subr.mxu0 %v987
        %3051 = vmatpush2.msra.mxu0 %v986
        %3052 = vmatprep.subr.mxu0 %v979
        %3053 = vmatpush2.msra.mxu0 %v978
        %3054 = vmatprep.subr.mxu0 %v971
        %3055 = vmatpush2.msra.mxu0 %v970
        %3056 = vmatprep.subr.mxu0 %v963
        %3057 = vmatpush2.msra.mxu0 %v962
        %3058 = vmatprep.subr.mxu0 %v955
        %3059 = vmatpush2.msra.mxu0 %v954
        %3060 = vmatprep.subr.mxu0 %v947
        %3061 = vmatpush2.msra.mxu0 %v946
        %3062 = vmatprep.subr.mxu0 %v939
        %3063 = vmatpush2.msra.mxu0 %v938
        %3064 = vmatprep.subr.mxu0 %v931
        %3065 = vmatpush2.msra.mxu0 %v930
        %3066 = vmatprep.subr.mxu0 %v923
        %3067 = vmatpush2.msra.mxu0 %v922
        %3068 = vmatprep.subr.mxu0 %v915
        %3069 = vmatpush2.msra.mxu0 %v914
        %3070 = vmatprep.subr.mxu0 %v907
        %3071 = vmatpush2.msra.mxu0 %v906
        %3072 = vmatprep.subr.mxu0 %v899
        %3073 = vmatpush2.msra.mxu0 %v898
        %3074 = vmatprep.mubr.f32.mxu0 %v2796
        %3075 = vmatmul.mubr.f32.gmra.mxu0 %v2795
        %v3076 = vpop.f32.mrf.mxu0
        %v3077 = vadd.f32 %v1749, %v3076
        %v3078 = vpop.f32.mrf.mxu0
        %v3079 = vadd.f32 %v1753, %v3078
        %3080 = vdwg.mxu0
        %v3081 = vxor.u32 %v2864, 2147483648
        %v3082 = vxor.u32 %v2866, 2147483648
        %v3083 = vmul.f32 %v3081, 1.442695
        %v3084 = vpow.pop %v3083
        %v3085 = vmul.f32 %v3082, 1.442695
        %v3086 = vpow.pop %v3085
        %v3087 = vadd.f32 %v3084, 1.0
        %v3088 = vadd.f32 %v3086, 1.0
        %v3089 = vrcp.pop %v3087
        %v3090 = vmul.f32 1.0, %v3089
        %v3091 = vrcp.pop %v3088
        %v3092 = vmul.f32 1.0, %v3091
        %v3093 = vxor.u32 %v2935, 2147483648
        %v3094 = vxor.u32 %v2937, 2147483648
        %v3095 = vmul.f32 %v3093, 1.442695
        %v3096 = vpow.pop %v3095
        %v3097 = vmul.f32 %v3094, 1.442695
        %v3098 = vpow.pop %v3097
        %v3099 = vadd.f32 %v3096, 1.0
        %v3100 = vadd.f32 %v3098, 1.0
        %v3101 = vrcp.pop %v3099
        %v3102 = vmul.f32 1.0, %v3101
        %v3103 = vrcp.pop %v3100
        %v3104 = vmul.f32 1.0, %v3103
        %v3105 = vtanh.pop %v3006
        %v3106 = vtanh.pop %v3008
        %v3107 = vxor.u32 %v3077, 2147483648
        %v3108 = vxor.u32 %v3079, 2147483648
        %v3109 = vmul.f32 %v3107, 1.442695
        %v3110 = vpow.pop %v3109
        %v3111 = vmul.f32 %v3108, 1.442695
        %v3112 = vpow.pop %v3111
        %v3113 = vadd.f32 %v3110, 1.0
        %v3114 = vadd.f32 %v3112, 1.0
        %v3115 = vrcp.pop %v3113
        %v3116 = vmul.f32 1.0, %v3115
        %v3117 = vrcp.pop %v3114
        %v3118 = vmul.f32 1.0, %v3117
        %v3119 = vmul.f32 %v3102, %v2791
        %v3120 = vmul.f32 %v3104, %v2792
        %v3121 = vmul.f32 %v3090, %v3105
        %v3122 = vmul.f32 %v3092, %v3106
        %v3123 = vadd.f32 %v3119, %v3121
        %v3124 = vadd.f32 %v3120, %v3122
        %v3125 = vtanh.pop %v3123
        %v3126 = vtanh.pop %v3124
        %v3127 = vmul.f32 %v3116, %v3125
        %v3128 = vmul.f32 %v3118, %v3126
        %3129 = vmatprep.subr.mxu0 0.0
        %3130 = vmatpush1.msra.mxu0 %v1035
        %3131 = vmatprep.subr.mxu0 0.0
        %3132 = vmatpush1.msra.mxu0 %v1034
        %3133 = vmatprep.subr.mxu0 0.0
        %3134 = vmatpush1.msra.mxu0 %v1033
        %3135 = vmatprep.subr.mxu0 0.0
        %3136 = vmatpush1.msra.mxu0 %v1032
        %3137 = vmatprep.subr.mxu0 0.0
        %3138 = vmatpush1.msra.mxu0 %v1031
        %3139 = vmatprep.subr.mxu0 0.0
        %3140 = vmatpush1.msra.mxu0 %v1030
        %3141 = vmatprep.subr.mxu0 0.0
        %3142 = vmatpush1.msra.mxu0 %v1029
        %3143 = vmatprep.subr.mxu0 0.0
        %3144 = vmatpush1.msra.mxu0 %v1028
        %3145 = vmatprep.subr.mxu0 0.0
        %3146 = vmatpush1.msra.mxu0 %v1027
        %3147 = vmatprep.subr.mxu0 0.0
        %3148 = vmatpush1.msra.mxu0 %v1026
        %3149 = vmatprep.subr.mxu0 0.0
        %3150 = vmatpush1.msra.mxu0 %v1025
        %3151 = vmatprep.subr.mxu0 0.0
        %3152 = vmatpush1.msra.mxu0 %v1024
        %3153 = vmatprep.subr.mxu0 0.0
        %3154 = vmatpush1.msra.mxu0 %v1023
        %3155 = vmatprep.subr.mxu0 0.0
        %3156 = vmatpush1.msra.mxu0 %v1022
        %3157 = vmatprep.subr.mxu0 0.0
        %3158 = vmatpush1.msra.mxu0 %v1021
        %3159 = vmatprep.subr.mxu0 0.0
        %3160 = vmatpush1.msra.mxu0 %v1020
        %3161 = vmatprep.subr.mxu0 0.0
        %3162 = vmatpush2.msra.mxu0 %v1051
        %3163 = vmatprep.subr.mxu0 0.0
        %3164 = vmatpush2.msra.mxu0 %v1050
        %3165 = vmatprep.subr.mxu0 0.0
        %3166 = vmatpush2.msra.mxu0 %v1049
        %3167 = vmatprep.subr.mxu0 0.0
        %3168 = vmatpush2.msra.mxu0 %v1048
        %3169 = vmatprep.subr.mxu0 0.0
        %3170 = vmatpush2.msra.mxu0 %v1047
        %3171 = vmatprep.subr.mxu0 0.0
        %3172 = vmatpush2.msra.mxu0 %v1046
        %3173 = vmatprep.subr.mxu0 0.0
        %3174 = vmatpush2.msra.mxu0 %v1045
        %3175 = vmatprep.subr.mxu0 0.0
        %3176 = vmatpush2.msra.mxu0 %v1044
        %3177 = vmatprep.subr.mxu0 0.0
        %3178 = vmatpush2.msra.mxu0 %v1043
        %3179 = vmatprep.subr.mxu0 0.0
        %3180 = vmatpush2.msra.mxu0 %v1042
        %3181 = vmatprep.subr.mxu0 0.0
        %3182 = vmatpush2.msra.mxu0 %v1041
        %3183 = vmatprep.subr.mxu0 0.0
        %3184 = vmatpush2.msra.mxu0 %v1040
        %3185 = vmatprep.subr.mxu0 0.0
        %3186 = vmatpush2.msra.mxu0 %v1039
        %3187 = vmatprep.subr.mxu0 0.0
        %3188 = vmatpush2.msra.mxu0 %v1038
        %3189 = vmatprep.subr.mxu0 0.0
        %3190 = vmatpush2.msra.mxu0 %v1037
        %3191 = vmatprep.subr.mxu0 0.0
        %3192 = vmatpush2.msra.mxu0 %v1036
        %3193 = vmatprep.mubr.f32.mxu0 %v3128
        %3194 = vmatmul.mubr.f32.gmra.mxu0 %v3127
        %v3195 = vpop.f32.mrf.mxu0
        %v3196 = vadd.f32 %v2098, %v3195
        %v3197 = vpop.f32.mrf.mxu0
        %3198 = vdwg.mxu0
        %s3199 = scalar_lea.vmem %s365, 8 [#allocation5]
        %3200 = vst [vmem:[%s3199] sm:$0xff] %v3196
        %s3201 = scalar_lea.vmem %s336, 16 [#allocation4]
        %v3202 = vld [vmem:[%s3201] sm:$0xff]
        %3203 = vmatprep.subr.mxu0 %v629
        %3204 = vmatpush1.msra.mxu0 %v628
        %3205 = vmatprep.subr.mxu0 %v621
        %3206 = vmatpush1.msra.mxu0 %v620
        %3207 = vmatprep.subr.mxu0 %v613
        %3208 = vmatpush1.msra.mxu0 %v612
        %3209 = vmatprep.subr.mxu0 %v605
        %3210 = vmatpush1.msra.mxu0 %v604
        %3211 = vmatprep.subr.mxu0 %v597
        %3212 = vmatpush1.msra.mxu0 %v596
        %3213 = vmatprep.subr.mxu0 %v589
        %3214 = vmatpush1.msra.mxu0 %v588
        %3215 = vmatprep.subr.mxu0 %v581
        %3216 = vmatpush1.msra.mxu0 %v580
        %3217 = vmatprep.subr.mxu0 %v573
        %3218 = vmatpush1.msra.mxu0 %v572
        %3219 = vmatprep.subr.mxu0 %v565
        %3220 = vmatpush1.msra.mxu0 %v564
        %3221 = vmatprep.subr.mxu0 %v557
        %3222 = vmatpush1.msra.mxu0 %v556
        %3223 = vmatprep.subr.mxu0 %v549
        %3224 = vmatpush1.msra.mxu0 %v548
        %3225 = vmatprep.subr.mxu0 %v541
        %3226 = vmatpush1.msra.mxu0 %v540
        %3227 = vmatprep.subr.mxu0 %v533
        %3228 = vmatpush1.msra.mxu0 %v532
        %3229 = vmatprep.subr.mxu0 %v525
        %3230 = vmatpush1.msra.mxu0 %v524
        %3231 = vmatprep.subr.mxu0 %v517
        %3232 = vmatpush1.msra.mxu0 %v516
        %3233 = vmatprep.subr.mxu0 %v509
        %3234 = vmatpush1.msra.mxu0 %v508
        %3235 = vmatprep.subr.mxu0 %v757
        %3236 = vmatpush2.msra.mxu0 %v756
        %3237 = vmatprep.subr.mxu0 %v749
        %3238 = vmatpush2.msra.mxu0 %v748
        %3239 = vmatprep.subr.mxu0 %v741
        %3240 = vmatpush2.msra.mxu0 %v740
        %3241 = vmatprep.subr.mxu0 %v733
        %3242 = vmatpush2.msra.mxu0 %v732
        %3243 = vmatprep.subr.mxu0 %v725
        %3244 = vmatpush2.msra.mxu0 %v724
        %3245 = vmatprep.subr.mxu0 %v717
        %3246 = vmatpush2.msra.mxu0 %v716
        %3247 = vmatprep.subr.mxu0 %v709
        %3248 = vmatpush2.msra.mxu0 %v708
        %3249 = vmatprep.subr.mxu0 %v701
        %3250 = vmatpush2.msra.mxu0 %v700
        %3251 = vmatprep.subr.mxu0 %v693
        %3252 = vmatpush2.msra.mxu0 %v692
        %3253 = vmatprep.subr.mxu0 %v685
        %3254 = vmatpush2.msra.mxu0 %v684
        %3255 = vmatprep.subr.mxu0 %v677
        %3256 = vmatpush2.msra.mxu0 %v676
        %3257 = vmatprep.subr.mxu0 %v669
        %3258 = vmatpush2.msra.mxu0 %v668
        %3259 = vmatprep.subr.mxu0 %v661
        %3260 = vmatpush2.msra.mxu0 %v660
        %3261 = vmatprep.subr.mxu0 %v653
        %3262 = vmatpush2.msra.mxu0 %v652
        %3263 = vmatprep.subr.mxu0 %v645
        %3264 = vmatpush2.msra.mxu0 %v644
        %3265 = vmatprep.subr.mxu0 %v637
        %3266 = vmatpush2.msra.mxu0 %v636
        %3267 = vmatprep.mubr.f32.mxu0 %v2796
        %3268 = vmatmul.mubr.f32.gmra.mxu0 %v2795
        %v3269 = vpop.f32.mrf.mxu0
        %v3270 = vadd.f32 0.0, %v3269
        %v3271 = vpop.f32.mrf.mxu0
        %v3272 = vadd.f32 0.0, %v3271
        %3273 = vdwg.mxu0
        %3274 = vmatprep.subr.mxu0 %v631
        %3275 = vmatpush1.msra.mxu0 %v630
        %3276 = vmatprep.subr.mxu0 %v623
        %3277 = vmatpush1.msra.mxu0 %v622
        %3278 = vmatprep.subr.mxu0 %v615
        %3279 = vmatpush1.msra.mxu0 %v614
        %3280 = vmatprep.subr.mxu0 %v607
        %3281 = vmatpush1.msra.mxu0 %v606
        %3282 = vmatprep.subr.mxu0 %v599
        %3283 = vmatpush1.msra.mxu0 %v598
        %3284 = vmatprep.subr.mxu0 %v591
        %3285 = vmatpush1.msra.mxu0 %v590
        %3286 = vmatprep.subr.mxu0 %v583
        %3287 = vmatpush1.msra.mxu0 %v582
        %3288 = vmatprep.subr.mxu0 %v575
        %3289 = vmatpush1.msra.mxu0 %v574
        %3290 = vmatprep.subr.mxu0 %v567
        %3291 = vmatpush1.msra.mxu0 %v566
        %3292 = vmatprep.subr.mxu0 %v559
        %3293 = vmatpush1.msra.mxu0 %v558
        %3294 = vmatprep.subr.mxu0 %v551
        %3295 = vmatpush1.msra.mxu0 %v550
        %3296 = vmatprep.subr.mxu0 %v543
        %3297 = vmatpush1.msra.mxu0 %v542
        %3298 = vmatprep.subr.mxu0 %v535
        %3299 = vmatpush1.msra.mxu0 %v534
        %3300 = vmatprep.subr.mxu0 %v527
        %3301 = vmatpush1.msra.mxu0 %v526
        %3302 = vmatprep.subr.mxu0 %v519
        %3303 = vmatpush1.msra.mxu0 %v518
        %3304 = vmatprep.subr.mxu0 %v511
        %3305 = vmatpush1.msra.mxu0 %v510
        %3306 = vmatprep.subr.mxu0 %v759
        %3307 = vmatpush2.msra.mxu0 %v758
        %3308 = vmatprep.subr.mxu0 %v751
        %3309 = vmatpush2.msra.mxu0 %v750
        %3310 = vmatprep.subr.mxu0 %v743
        %3311 = vmatpush2.msra.mxu0 %v742
        %3312 = vmatprep.subr.mxu0 %v735
        %3313 = vmatpush2.msra.mxu0 %v734
        %3314 = vmatprep.subr.mxu0 %v727
        %3315 = vmatpush2.msra.mxu0 %v726
        %3316 = vmatprep.subr.mxu0 %v719
        %3317 = vmatpush2.msra.mxu0 %v718
        %3318 = vmatprep.subr.mxu0 %v711
        %3319 = vmatpush2.msra.mxu0 %v710
        %3320 = vmatprep.subr.mxu0 %v703
        %3321 = vmatpush2.msra.mxu0 %v702
        %3322 = vmatprep.subr.mxu0 %v695
        %3323 = vmatpush2.msra.mxu0 %v694
        %3324 = vmatprep.subr.mxu0 %v687
        %3325 = vmatpush2.msra.mxu0 %v686
        %3326 = vmatprep.subr.mxu0 %v679
        %3327 = vmatpush2.msra.mxu0 %v678
        %3328 = vmatprep.subr.mxu0 %v671
        %3329 = vmatpush2.msra.mxu0 %v670
        %3330 = vmatprep.subr.mxu0 %v663
        %3331 = vmatpush2.msra.mxu0 %v662
        %3332 = vmatprep.subr.mxu0 %v655
        %3333 = vmatpush2.msra.mxu0 %v654
        %3334 = vmatprep.subr.mxu0 %v647
        %3335 = vmatpush2.msra.mxu0 %v646
        %3336 = vmatprep.subr.mxu0 %v639
        %3337 = vmatpush2.msra.mxu0 %v638
        %3338 = vmatprep.mubr.f32.mxu0 %v2796
        %3339 = vmatmul.mubr.f32.gmra.mxu0 %v2795
        %v3340 = vpop.f32.mrf.mxu0
        %v3341 = vadd.f32 0.0, %v3340
        %v3342 = vpop.f32.mrf.mxu0
        %v3343 = vadd.f32 0.0, %v3342
        %3344 = vdwg.mxu0
        %3345 = vmatprep.subr.mxu0 %v633
        %3346 = vmatpush1.msra.mxu0 %v632
        %3347 = vmatprep.subr.mxu0 %v625
        %3348 = vmatpush1.msra.mxu0 %v624
        %3349 = vmatprep.subr.mxu0 %v617
        %3350 = vmatpush1.msra.mxu0 %v616
        %3351 = vmatprep.subr.mxu0 %v609
        %3352 = vmatpush1.msra.mxu0 %v608
        %3353 = vmatprep.subr.mxu0 %v601
        %3354 = vmatpush1.msra.mxu0 %v600
        %3355 = vmatprep.subr.mxu0 %v593
        %3356 = vmatpush1.msra.mxu0 %v592
        %3357 = vmatprep.subr.mxu0 %v585
        %3358 = vmatpush1.msra.mxu0 %v584
        %3359 = vmatprep.subr.mxu0 %v577
        %3360 = vmatpush1.msra.mxu0 %v576
        %3361 = vmatprep.subr.mxu0 %v569
        %3362 = vmatpush1.msra.mxu0 %v568
        %3363 = vmatprep.subr.mxu0 %v561
        %3364 = vmatpush1.msra.mxu0 %v560
        %3365 = vmatprep.subr.mxu0 %v553
        %3366 = vmatpush1.msra.mxu0 %v552
        %3367 = vmatprep.subr.mxu0 %v545
        %3368 = vmatpush1.msra.mxu0 %v544
        %3369 = vmatprep.subr.mxu0 %v537
        %3370 = vmatpush1.msra.mxu0 %v536
        %3371 = vmatprep.subr.mxu0 %v529
        %3372 = vmatpush1.msra.mxu0 %v528
        %3373 = vmatprep.subr.mxu0 %v521
        %3374 = vmatpush1.msra.mxu0 %v520
        %3375 = vmatprep.subr.mxu0 %v513
        %3376 = vmatpush1.msra.mxu0 %v512
        %3377 = vmatprep.subr.mxu0 %v761
        %3378 = vmatpush2.msra.mxu0 %v760
        %3379 = vmatprep.subr.mxu0 %v753
        %3380 = vmatpush2.msra.mxu0 %v752
        %3381 = vmatprep.subr.mxu0 %v745
        %3382 = vmatpush2.msra.mxu0 %v744
        %3383 = vmatprep.subr.mxu0 %v737
        %3384 = vmatpush2.msra.mxu0 %v736
        %3385 = vmatprep.subr.mxu0 %v729
        %3386 = vmatpush2.msra.mxu0 %v728
        %3387 = vmatprep.subr.mxu0 %v721
        %3388 = vmatpush2.msra.mxu0 %v720
        %3389 = vmatprep.subr.mxu0 %v713
        %3390 = vmatpush2.msra.mxu0 %v712
        %3391 = vmatprep.subr.mxu0 %v705
        %3392 = vmatpush2.msra.mxu0 %v704
        %3393 = vmatprep.subr.mxu0 %v697
        %3394 = vmatpush2.msra.mxu0 %v696
        %3395 = vmatprep.subr.mxu0 %v689
        %3396 = vmatpush2.msra.mxu0 %v688
        %3397 = vmatprep.subr.mxu0 %v681
        %3398 = vmatpush2.msra.mxu0 %v680
        %3399 = vmatprep.subr.mxu0 %v673
        %3400 = vmatpush2.msra.mxu0 %v672
        %3401 = vmatprep.subr.mxu0 %v665
        %3402 = vmatpush2.msra.mxu0 %v664
        %3403 = vmatprep.subr.mxu0 %v657
        %3404 = vmatpush2.msra.mxu0 %v656
        %3405 = vmatprep.subr.mxu0 %v649
        %3406 = vmatpush2.msra.mxu0 %v648
        %3407 = vmatprep.subr.mxu0 %v641
        %3408 = vmatpush2.msra.mxu0 %v640
        %3409 = vmatprep.mubr.f32.mxu0 %v2796
        %3410 = vmatmul.mubr.f32.gmra.mxu0 %v2795
        %v3411 = vpop.f32.mrf.mxu0
        %v3412 = vadd.f32 0.0, %v3411
        %v3413 = vpop.f32.mrf.mxu0
        %v3414 = vadd.f32 0.0, %v3413
        %3415 = vdwg.mxu0
        %3416 = vmatprep.subr.mxu0 %v635
        %3417 = vmatpush1.msra.mxu0 %v634
        %3418 = vmatprep.subr.mxu0 %v627
        %3419 = vmatpush1.msra.mxu0 %v626
        %3420 = vmatprep.subr.mxu0 %v619
        %3421 = vmatpush1.msra.mxu0 %v618
        %3422 = vmatprep.subr.mxu0 %v611
        %3423 = vmatpush1.msra.mxu0 %v610
        %3424 = vmatprep.subr.mxu0 %v603
        %3425 = vmatpush1.msra.mxu0 %v602
        %3426 = vmatprep.subr.mxu0 %v595
        %3427 = vmatpush1.msra.mxu0 %v594
        %3428 = vmatprep.subr.mxu0 %v587
        %3429 = vmatpush1.msra.mxu0 %v586
        %3430 = vmatprep.subr.mxu0 %v579
        %3431 = vmatpush1.msra.mxu0 %v578
        %3432 = vmatprep.subr.mxu0 %v571
        %3433 = vmatpush1.msra.mxu0 %v570
        %3434 = vmatprep.subr.mxu0 %v563
        %3435 = vmatpush1.msra.mxu0 %v562
        %3436 = vmatprep.subr.mxu0 %v555
        %3437 = vmatpush1.msra.mxu0 %v554
        %3438 = vmatprep.subr.mxu0 %v547
        %3439 = vmatpush1.msra.mxu0 %v546
        %3440 = vmatprep.subr.mxu0 %v539
        %3441 = vmatpush1.msra.mxu0 %v538
        %3442 = vmatprep.subr.mxu0 %v531
        %3443 = vmatpush1.msra.mxu0 %v530
        %3444 = vmatprep.subr.mxu0 %v523
        %3445 = vmatpush1.msra.mxu0 %v522
        %3446 = vmatprep.subr.mxu0 %v515
        %3447 = vmatpush1.msra.mxu0 %v514
        %3448 = vmatprep.subr.mxu0 %v763
        %3449 = vmatpush2.msra.mxu0 %v762
        %3450 = vmatprep.subr.mxu0 %v755
        %3451 = vmatpush2.msra.mxu0 %v754
        %3452 = vmatprep.subr.mxu0 %v747
        %3453 = vmatpush2.msra.mxu0 %v746
        %3454 = vmatprep.subr.mxu0 %v739
        %3455 = vmatpush2.msra.mxu0 %v738
        %3456 = vmatprep.subr.mxu0 %v731
        %3457 = vmatpush2.msra.mxu0 %v730
        %3458 = vmatprep.subr.mxu0 %v723
        %3459 = vmatpush2.msra.mxu0 %v722
        %3460 = vmatprep.subr.mxu0 %v715
        %3461 = vmatpush2.msra.mxu0 %v714
        %3462 = vmatprep.subr.mxu0 %v707
        %3463 = vmatpush2.msra.mxu0 %v706
        %3464 = vmatprep.subr.mxu0 %v699
        %3465 = vmatpush2.msra.mxu0 %v698
        %3466 = vmatprep.subr.mxu0 %v691
        %3467 = vmatpush2.msra.mxu0 %v690
        %3468 = vmatprep.subr.mxu0 %v683
        %3469 = vmatpush2.msra.mxu0 %v682
        %3470 = vmatprep.subr.mxu0 %v675
        %3471 = vmatpush2.msra.mxu0 %v674
        %3472 = vmatprep.subr.mxu0 %v667
        %3473 = vmatpush2.msra.mxu0 %v666
        %3474 = vmatprep.subr.mxu0 %v659
        %3475 = vmatpush2.msra.mxu0 %v658
        %3476 = vmatprep.subr.mxu0 %v651
        %3477 = vmatpush2.msra.mxu0 %v650
        %3478 = vmatprep.subr.mxu0 %v643
        %3479 = vmatpush2.msra.mxu0 %v642
        %3480 = vmatprep.mubr.f32.mxu0 %v2796
        %3481 = vmatmul.mubr.f32.gmra.mxu0 %v2795
        %v3482 = vpop.f32.mrf.mxu0
        %v3483 = vadd.f32 0.0, %v3482
        %v3484 = vpop.f32.mrf.mxu0
        %v3485 = vadd.f32 0.0, %v3484
        %3486 = vdwg.mxu0
        %3487 = vmatprep.subr.mxu0 %v501
        %3488 = vmatpush1.msra.mxu0 %v500
        %3489 = vmatprep.subr.mxu0 %v493
        %3490 = vmatpush1.msra.mxu0 %v492
        %3491 = vmatprep.subr.mxu0 %v485
        %3492 = vmatpush1.msra.mxu0 %v484
        %3493 = vmatprep.subr.mxu0 %v477
        %3494 = vmatpush1.msra.mxu0 %v476
        %3495 = vmatprep.subr.mxu0 %v469
        %3496 = vmatpush1.msra.mxu0 %v468
        %3497 = vmatprep.subr.mxu0 %v461
        %3498 = vmatpush1.msra.mxu0 %v460
        %3499 = vmatprep.subr.mxu0 %v453
        %3500 = vmatpush1.msra.mxu0 %v452
        %3501 = vmatprep.subr.mxu0 %v445
        %3502 = vmatpush1.msra.mxu0 %v444
        %3503 = vmatprep.subr.mxu0 %v437
        %3504 = vmatpush1.msra.mxu0 %v436
        %3505 = vmatprep.subr.mxu0 %v429
        %3506 = vmatpush1.msra.mxu0 %v428
        %3507 = vmatprep.subr.mxu0 %v421
        %3508 = vmatpush1.msra.mxu0 %v420
        %3509 = vmatprep.subr.mxu0 %v413
        %3510 = vmatpush1.msra.mxu0 %v412
        %3511 = vmatprep.subr.mxu0 %v405
        %3512 = vmatpush1.msra.mxu0 %v404
        %3513 = vmatprep.subr.mxu0 %v397
        %3514 = vmatpush1.msra.mxu0 %v396
        %3515 = vmatprep.subr.mxu0 %v389
        %3516 = vmatpush1.msra.mxu0 %v388
        %3517 = vmatprep.subr.mxu0 %v381
        %3518 = vmatpush1.msra.mxu0 %v380
        %3519 = vmatprep.subr.mxu0 0.0
        %3520 = vmatpush2.msra.mxu0 0.0
        %3521 = vmatprep.subr.mxu0 0.0
        %3522 = vmatpush2.msra.mxu0 0.0
        %3523 = vmatprep.subr.mxu0 0.0
        %3524 = vmatpush2.msra.mxu0 0.0
        %3525 = vmatprep.subr.mxu0 0.0
        %3526 = vmatpush2.msra.mxu0 0.0
        %3527 = vmatprep.subr.mxu0 0.0
        %3528 = vmatpush2.msra.mxu0 0.0
        %3529 = vmatprep.subr.mxu0 0.0
        %3530 = vmatpush2.msra.mxu0 0.0
        %3531 = vmatprep.subr.mxu0 0.0
        %3532 = vmatpush2.msra.mxu0 0.0
        %3533 = vmatprep.subr.mxu0 0.0
        %3534 = vmatpush2.msra.mxu0 0.0
        %3535 = vmatprep.subr.mxu0 0.0
        %3536 = vmatpush2.msra.mxu0 0.0
        %3537 = vmatprep.subr.mxu0 0.0
        %3538 = vmatpush2.msra.mxu0 0.0
        %3539 = vmatprep.subr.mxu0 0.0
        %3540 = vmatpush2.msra.mxu0 0.0
        %3541 = vmatprep.subr.mxu0 0.0
        %3542 = vmatpush2.msra.mxu0 0.0
        %3543 = vmatprep.subr.mxu0 0.0
        %3544 = vmatpush2.msra.mxu0 0.0
        %3545 = vmatprep.subr.mxu0 0.0
        %3546 = vmatpush2.msra.mxu0 0.0
        %3547 = vmatprep.subr.mxu0 0.0
        %3548 = vmatpush2.msra.mxu0 0.0
        %3549 = vmatprep.subr.mxu0 0.0
        %3550 = vmatpush2.msra.mxu0 0.0
        %3551 = vmatprep.mubr.f32.mxu0 0.0
        %3552 = vmatmul.mubr.f32.gmra.mxu0 %v3202
        %v3553 = vpop.f32.mrf.mxu0
        %v3554 = vadd.f32 %v3270, %v3553
        %v3555 = vpop.f32.mrf.mxu0
        %v3556 = vadd.f32 %v3272, %v3555
        %3557 = vdwg.mxu0
        %3558 = vmatprep.subr.mxu0 %v503
        %3559 = vmatpush1.msra.mxu0 %v502
        %3560 = vmatprep.subr.mxu0 %v495
        %3561 = vmatpush1.msra.mxu0 %v494
        %3562 = vmatprep.subr.mxu0 %v487
        %3563 = vmatpush1.msra.mxu0 %v486
        %3564 = vmatprep.subr.mxu0 %v479
        %3565 = vmatpush1.msra.mxu0 %v478
        %3566 = vmatprep.subr.mxu0 %v471
        %3567 = vmatpush1.msra.mxu0 %v470
        %3568 = vmatprep.subr.mxu0 %v463
        %3569 = vmatpush1.msra.mxu0 %v462
        %3570 = vmatprep.subr.mxu0 %v455
        %3571 = vmatpush1.msra.mxu0 %v454
        %3572 = vmatprep.subr.mxu0 %v447
        %3573 = vmatpush1.msra.mxu0 %v446
        %3574 = vmatprep.subr.mxu0 %v439
        %3575 = vmatpush1.msra.mxu0 %v438
        %3576 = vmatprep.subr.mxu0 %v431
        %3577 = vmatpush1.msra.mxu0 %v430
        %3578 = vmatprep.subr.mxu0 %v423
        %3579 = vmatpush1.msra.mxu0 %v422
        %3580 = vmatprep.subr.mxu0 %v415
        %3581 = vmatpush1.msra.mxu0 %v414
        %3582 = vmatprep.subr.mxu0 %v407
        %3583 = vmatpush1.msra.mxu0 %v406
        %3584 = vmatprep.subr.mxu0 %v399
        %3585 = vmatpush1.msra.mxu0 %v398
        %3586 = vmatprep.subr.mxu0 %v391
        %3587 = vmatpush1.msra.mxu0 %v390
        %3588 = vmatprep.subr.mxu0 %v383
        %3589 = vmatpush1.msra.mxu0 %v382
        %3590 = vmatprep.subr.mxu0 0.0
        %3591 = vmatpush2.msra.mxu0 0.0
        %3592 = vmatprep.subr.mxu0 0.0
        %3593 = vmatpush2.msra.mxu0 0.0
        %3594 = vmatprep.subr.mxu0 0.0
        %3595 = vmatpush2.msra.mxu0 0.0
        %3596 = vmatprep.subr.mxu0 0.0
        %3597 = vmatpush2.msra.mxu0 0.0
        %3598 = vmatprep.subr.mxu0 0.0
        %3599 = vmatpush2.msra.mxu0 0.0
        %3600 = vmatprep.subr.mxu0 0.0
        %3601 = vmatpush2.msra.mxu0 0.0
        %3602 = vmatprep.subr.mxu0 0.0
        %3603 = vmatpush2.msra.mxu0 0.0
        %3604 = vmatprep.subr.mxu0 0.0
        %3605 = vmatpush2.msra.mxu0 0.0
        %3606 = vmatprep.subr.mxu0 0.0
        %3607 = vmatpush2.msra.mxu0 0.0
        %3608 = vmatprep.subr.mxu0 0.0
        %3609 = vmatpush2.msra.mxu0 0.0
        %3610 = vmatprep.subr.mxu0 0.0
        %3611 = vmatpush2.msra.mxu0 0.0
        %3612 = vmatprep.subr.mxu0 0.0
        %3613 = vmatpush2.msra.mxu0 0.0
        %3614 = vmatprep.subr.mxu0 0.0
        %3615 = vmatpush2.msra.mxu0 0.0
        %3616 = vmatprep.subr.mxu0 0.0
        %3617 = vmatpush2.msra.mxu0 0.0
        %3618 = vmatprep.subr.mxu0 0.0
        %3619 = vmatpush2.msra.mxu0 0.0
        %3620 = vmatprep.subr.mxu0 0.0
        %3621 = vmatpush2.msra.mxu0 0.0
        %3622 = vmatprep.mubr.f32.mxu0 0.0
        %3623 = vmatmul.mubr.f32.gmra.mxu0 %v3202
        %v3624 = vpop.f32.mrf.mxu0
        %v3625 = vadd.f32 %v3341, %v3624
        %v3626 = vpop.f32.mrf.mxu0
        %v3627 = vadd.f32 %v3343, %v3626
        %3628 = vdwg.mxu0
        %3629 = vmatprep.subr.mxu0 %v505
        %3630 = vmatpush1.msra.mxu0 %v504
        %3631 = vmatprep.subr.mxu0 %v497
        %3632 = vmatpush1.msra.mxu0 %v496
        %3633 = vmatprep.subr.mxu0 %v489
        %3634 = vmatpush1.msra.mxu0 %v488
        %3635 = vmatprep.subr.mxu0 %v481
        %3636 = vmatpush1.msra.mxu0 %v480
        %3637 = vmatprep.subr.mxu0 %v473
        %3638 = vmatpush1.msra.mxu0 %v472
        %3639 = vmatprep.subr.mxu0 %v465
        %3640 = vmatpush1.msra.mxu0 %v464
        %3641 = vmatprep.subr.mxu0 %v457
        %3642 = vmatpush1.msra.mxu0 %v456
        %3643 = vmatprep.subr.mxu0 %v449
        %3644 = vmatpush1.msra.mxu0 %v448
        %3645 = vmatprep.subr.mxu0 %v441
        %3646 = vmatpush1.msra.mxu0 %v440
        %3647 = vmatprep.subr.mxu0 %v433
        %3648 = vmatpush1.msra.mxu0 %v432
        %3649 = vmatprep.subr.mxu0 %v425
        %3650 = vmatpush1.msra.mxu0 %v424
        %3651 = vmatprep.subr.mxu0 %v417
        %3652 = vmatpush1.msra.mxu0 %v416
        %3653 = vmatprep.subr.mxu0 %v409
        %3654 = vmatpush1.msra.mxu0 %v408
        %3655 = vmatprep.subr.mxu0 %v401
        %3656 = vmatpush1.msra.mxu0 %v400
        %3657 = vmatprep.subr.mxu0 %v393
        %3658 = vmatpush1.msra.mxu0 %v392
        %3659 = vmatprep.subr.mxu0 %v385
        %3660 = vmatpush1.msra.mxu0 %v384
        %3661 = vmatprep.subr.mxu0 0.0
        %3662 = vmatpush2.msra.mxu0 0.0
        %3663 = vmatprep.subr.mxu0 0.0
        %3664 = vmatpush2.msra.mxu0 0.0
        %3665 = vmatprep.subr.mxu0 0.0
        %3666 = vmatpush2.msra.mxu0 0.0
        %3667 = vmatprep.subr.mxu0 0.0
        %3668 = vmatpush2.msra.mxu0 0.0
        %3669 = vmatprep.subr.mxu0 0.0
        %3670 = vmatpush2.msra.mxu0 0.0
        %3671 = vmatprep.subr.mxu0 0.0
        %3672 = vmatpush2.msra.mxu0 0.0
        %3673 = vmatprep.subr.mxu0 0.0
        %3674 = vmatpush2.msra.mxu0 0.0
        %3675 = vmatprep.subr.mxu0 0.0
        %3676 = vmatpush2.msra.mxu0 0.0
        %3677 = vmatprep.subr.mxu0 0.0
        %3678 = vmatpush2.msra.mxu0 0.0
        %3679 = vmatprep.subr.mxu0 0.0
        %3680 = vmatpush2.msra.mxu0 0.0
        %3681 = vmatprep.subr.mxu0 0.0
        %3682 = vmatpush2.msra.mxu0 0.0
        %3683 = vmatprep.subr.mxu0 0.0
        %3684 = vmatpush2.msra.mxu0 0.0
        %3685 = vmatprep.subr.mxu0 0.0
        %3686 = vmatpush2.msra.mxu0 0.0
        %3687 = vmatprep.subr.mxu0 0.0
        %3688 = vmatpush2.msra.mxu0 0.0
        %3689 = vmatprep.subr.mxu0 0.0
        %3690 = vmatpush2.msra.mxu0 0.0
        %3691 = vmatprep.subr.mxu0 0.0
        %3692 = vmatpush2.msra.mxu0 0.0
        %3693 = vmatprep.mubr.f32.mxu0 0.0
        %3694 = vmatmul.mubr.f32.gmra.mxu0 %v3202
        %v3695 = vpop.f32.mrf.mxu0
        %v3696 = vadd.f32 %v3412, %v3695
        %v3697 = vpop.f32.mrf.mxu0
        %v3698 = vadd.f32 %v3414, %v3697
        %3699 = vdwg.mxu0
        %3700 = vmatprep.subr.mxu0 %v507
        %3701 = vmatpush1.msra.mxu0 %v506
        %3702 = vmatprep.subr.mxu0 %v499
        %3703 = vmatpush1.msra.mxu0 %v498
        %3704 = vmatprep.subr.mxu0 %v491
        %3705 = vmatpush1.msra.mxu0 %v490
        %3706 = vmatprep.subr.mxu0 %v483
        %3707 = vmatpush1.msra.mxu0 %v482
        %3708 = vmatprep.subr.mxu0 %v475
        %3709 = vmatpush1.msra.mxu0 %v474
        %3710 = vmatprep.subr.mxu0 %v467
        %3711 = vmatpush1.msra.mxu0 %v466
        %3712 = vmatprep.subr.mxu0 %v459
        %3713 = vmatpush1.msra.mxu0 %v458
        %3714 = vmatprep.subr.mxu0 %v451
        %3715 = vmatpush1.msra.mxu0 %v450
        %3716 = vmatprep.subr.mxu0 %v443
        %3717 = vmatpush1.msra.mxu0 %v442
        %3718 = vmatprep.subr.mxu0 %v435
        %3719 = vmatpush1.msra.mxu0 %v434
        %3720 = vmatprep.subr.mxu0 %v427
        %3721 = vmatpush1.msra.mxu0 %v426
        %3722 = vmatprep.subr.mxu0 %v419
        %3723 = vmatpush1.msra.mxu0 %v418
        %3724 = vmatprep.subr.mxu0 %v411
        %3725 = vmatpush1.msra.mxu0 %v410
        %3726 = vmatprep.subr.mxu0 %v403
        %3727 = vmatpush1.msra.mxu0 %v402
        %3728 = vmatprep.subr.mxu0 %v395
        %3729 = vmatpush1.msra.mxu0 %v394
        %3730 = vmatprep.subr.mxu0 %v387
        %3731 = vmatpush1.msra.mxu0 %v386
        %3732 = vmatprep.subr.mxu0 0.0
        %3733 = vmatpush2.msra.mxu0 0.0
        %3734 = vmatprep.subr.mxu0 0.0
        %3735 = vmatpush2.msra.mxu0 0.0
        %3736 = vmatprep.subr.mxu0 0.0
        %3737 = vmatpush2.msra.mxu0 0.0
        %3738 = vmatprep.subr.mxu0 0.0
        %3739 = vmatpush2.msra.mxu0 0.0
        %3740 = vmatprep.subr.mxu0 0.0
        %3741 = vmatpush2.msra.mxu0 0.0
        %3742 = vmatprep.subr.mxu0 0.0
        %3743 = vmatpush2.msra.mxu0 0.0
        %3744 = vmatprep.subr.mxu0 0.0
        %3745 = vmatpush2.msra.mxu0 0.0
        %3746 = vmatprep.subr.mxu0 0.0
        %3747 = vmatpush2.msra.mxu0 0.0
        %3748 = vmatprep.subr.mxu0 0.0
        %3749 = vmatpush2.msra.mxu0 0.0
        %3750 = vmatprep.subr.mxu0 0.0
        %3751 = vmatpush2.msra.mxu0 0.0
        %3752 = vmatprep.subr.mxu0 0.0
        %3753 = vmatpush2.msra.mxu0 0.0
        %3754 = vmatprep.subr.mxu0 0.0
        %3755 = vmatpush2.msra.mxu0 0.0
        %3756 = vmatprep.subr.mxu0 0.0
        %3757 = vmatpush2.msra.mxu0 0.0
        %3758 = vmatprep.subr.mxu0 0.0
        %3759 = vmatpush2.msra.mxu0 0.0
        %3760 = vmatprep.subr.mxu0 0.0
        %3761 = vmatpush2.msra.mxu0 0.0
        %3762 = vmatprep.subr.mxu0 0.0
        %3763 = vmatpush2.msra.mxu0 0.0
        %3764 = vmatprep.mubr.f32.mxu0 0.0
        %3765 = vmatmul.mubr.f32.gmra.mxu0 %v3202
        %v3766 = vpop.f32.mrf.mxu0
        %v3767 = vadd.f32 %v3483, %v3766
        %v3768 = vpop.f32.mrf.mxu0
        %v3769 = vadd.f32 %v3485, %v3768
        %3770 = vdwg.mxu0
        %v3771 = vadd.f32 %v3554, %v1628
        %v3772 = vadd.f32 %v3556, %v1632
        %v3773 = vadd.f32 %v3625, %v1636
        %v3774 = vadd.f32 %v3627, %v1640
        %v3775 = vadd.f32 %v3696, %v1644
        %v3776 = vadd.f32 %v3698, %v1648
        %v3777 = vadd.f32 %v3767, %v1652
        %v3778 = vadd.f32 %v3769, %v1656
        %v3779 = vxor.u32 %v3771, 2147483648
        %v3780 = vxor.u32 %v3772, 2147483648
        %v3781 = vmul.f32 %v3779, 1.442695
        %v3782 = vpow.pop %v3781
        %v3783 = vmul.f32 %v3780, 1.442695
        %v3784 = vpow.pop %v3783
        %v3785 = vadd.f32 %v3782, 1.0
        %v3786 = vadd.f32 %v3784, 1.0
        %v3787 = vrcp.pop %v3785
        %v3788 = vmul.f32 1.0, %v3787
        %v3789 = vrcp.pop %v3786
        %v3790 = vmul.f32 1.0, %v3789
        %v3791 = vxor.u32 %v3773, 2147483648
        %v3792 = vxor.u32 %v3774, 2147483648
        %v3793 = vmul.f32 %v3791, 1.442695
        %v3794 = vpow.pop %v3793
        %v3795 = vmul.f32 %v3792, 1.442695
        %v3796 = vpow.pop %v3795
        %v3797 = vadd.f32 %v3794, 1.0
        %v3798 = vadd.f32 %v3796, 1.0
        %v3799 = vrcp.pop %v3797
        %v3800 = vmul.f32 1.0, %v3799
        %v3801 = vrcp.pop %v3798
        %v3802 = vmul.f32 1.0, %v3801
        %v3803 = vtanh.pop %v3775
        %v3804 = vtanh.pop %v3776
        %v3805 = vxor.u32 %v3777, 2147483648
        %v3806 = vxor.u32 %v3778, 2147483648
        %v3807 = vmul.f32 %v3805, 1.442695
        %v3808 = vpow.pop %v3807
        %v3809 = vmul.f32 %v3806, 1.442695
        %v3810 = vpow.pop %v3809
        %v3811 = vadd.f32 %v3808, 1.0
        %v3812 = vadd.f32 %v3810, 1.0
        %v3813 = vrcp.pop %v3811
        %v3814 = vmul.f32 1.0, %v3813
        %v3815 = vrcp.pop %v3812
        %v3816 = vmul.f32 1.0, %v3815
        %v3817 = vmul.f32 %v3800, %v2791
        %v3818 = vmul.f32 %v3802, %v2792
        %v3819 = vmul.f32 %v3788, %v3803
        %v3820 = vmul.f32 %v3790, %v3804
        %v3821 = vadd.f32 %v3817, %v3819
        %v3822 = vadd.f32 %v3818, %v3820
        %v3823 = vtanh.pop %v3821
        %v3824 = vtanh.pop %v3822
        %v3825 = vmul.f32 %v3814, %v3823
        %v3826 = vmul.f32 %v3816, %v3824
        %3827 = vmatprep.subr.mxu0 %v885
        %3828 = vmatpush1.msra.mxu0 %v884
        %3829 = vmatprep.subr.mxu0 %v877
        %3830 = vmatpush1.msra.mxu0 %v876
        %3831 = vmatprep.subr.mxu0 %v869
        %3832 = vmatpush1.msra.mxu0 %v868
        %3833 = vmatprep.subr.mxu0 %v861
        %3834 = vmatpush1.msra.mxu0 %v860
        %3835 = vmatprep.subr.mxu0 %v853
        %3836 = vmatpush1.msra.mxu0 %v852
        %3837 = vmatprep.subr.mxu0 %v845
        %3838 = vmatpush1.msra.mxu0 %v844
        %3839 = vmatprep.subr.mxu0 %v837
        %3840 = vmatpush1.msra.mxu0 %v836
        %3841 = vmatprep.subr.mxu0 %v829
        %3842 = vmatpush1.msra.mxu0 %v828
        %3843 = vmatprep.subr.mxu0 %v821
        %3844 = vmatpush1.msra.mxu0 %v820
        %3845 = vmatprep.subr.mxu0 %v813
        %3846 = vmatpush1.msra.mxu0 %v812
        %3847 = vmatprep.subr.mxu0 %v805
        %3848 = vmatpush1.msra.mxu0 %v804
        %3849 = vmatprep.subr.mxu0 %v797
        %3850 = vmatpush1.msra.mxu0 %v796
        %3851 = vmatprep.subr.mxu0 %v789
        %3852 = vmatpush1.msra.mxu0 %v788
        %3853 = vmatprep.subr.mxu0 %v781
        %3854 = vmatpush1.msra.mxu0 %v780
        %3855 = vmatprep.subr.mxu0 %v773
        %3856 = vmatpush1.msra.mxu0 %v772
        %3857 = vmatprep.subr.mxu0 %v765
        %3858 = vmatpush1.msra.mxu0 %v764
        %3859 = vmatprep.subr.mxu0 %v1013
        %3860 = vmatpush2.msra.mxu0 %v1012
        %3861 = vmatprep.subr.mxu0 %v1005
        %3862 = vmatpush2.msra.mxu0 %v1004
        %3863 = vmatprep.subr.mxu0 %v997
        %3864 = vmatpush2.msra.mxu0 %v996
        %3865 = vmatprep.subr.mxu0 %v989
        %3866 = vmatpush2.msra.mxu0 %v988
        %3867 = vmatprep.subr.mxu0 %v981
        %3868 = vmatpush2.msra.mxu0 %v980
        %3869 = vmatprep.subr.mxu0 %v973
        %3870 = vmatpush2.msra.mxu0 %v972
        %3871 = vmatprep.subr.mxu0 %v965
        %3872 = vmatpush2.msra.mxu0 %v964
        %3873 = vmatprep.subr.mxu0 %v957
        %3874 = vmatpush2.msra.mxu0 %v956
        %3875 = vmatprep.subr.mxu0 %v949
        %3876 = vmatpush2.msra.mxu0 %v948
        %3877 = vmatprep.subr.mxu0 %v941
        %3878 = vmatpush2.msra.mxu0 %v940
        %3879 = vmatprep.subr.mxu0 %v933
        %3880 = vmatpush2.msra.mxu0 %v932
        %3881 = vmatprep.subr.mxu0 %v925
        %3882 = vmatpush2.msra.mxu0 %v924
        %3883 = vmatprep.subr.mxu0 %v917
        %3884 = vmatpush2.msra.mxu0 %v916
        %3885 = vmatprep.subr.mxu0 %v909
        %3886 = vmatpush2.msra.mxu0 %v908
        %3887 = vmatprep.subr.mxu0 %v901
        %3888 = vmatpush2.msra.mxu0 %v900
        %3889 = vmatprep.subr.mxu0 %v893
        %3890 = vmatpush2.msra.mxu0 %v892
        %3891 = vmatprep.mubr.f32.mxu0 %v3826
        %3892 = vmatmul.mubr.f32.gmra.mxu0 %v3825
        %v3893 = vpop.f32.mrf.mxu0
        %v3894 = vadd.f32 %v1725, %v3893
        %v3895 = vpop.f32.mrf.mxu0
        %v3896 = vadd.f32 %v1729, %v3895
        %3897 = vdwg.mxu0
        %3898 = vmatprep.subr.mxu0 %v887
        %3899 = vmatpush1.msra.mxu0 %v886
        %3900 = vmatprep.subr.mxu0 %v879
        %3901 = vmatpush1.msra.mxu0 %v878
        %3902 = vmatprep.subr.mxu0 %v871
        %3903 = vmatpush1.msra.mxu0 %v870
        %3904 = vmatprep.subr.mxu0 %v863
        %3905 = vmatpush1.msra.mxu0 %v862
        %3906 = vmatprep.subr.mxu0 %v855
        %3907 = vmatpush1.msra.mxu0 %v854
        %3908 = vmatprep.subr.mxu0 %v847
        %3909 = vmatpush1.msra.mxu0 %v846
        %3910 = vmatprep.subr.mxu0 %v839
        %3911 = vmatpush1.msra.mxu0 %v838
        %3912 = vmatprep.subr.mxu0 %v831
        %3913 = vmatpush1.msra.mxu0 %v830
        %3914 = vmatprep.subr.mxu0 %v823
        %3915 = vmatpush1.msra.mxu0 %v822
        %3916 = vmatprep.subr.mxu0 %v815
        %3917 = vmatpush1.msra.mxu0 %v814
        %3918 = vmatprep.subr.mxu0 %v807
        %3919 = vmatpush1.msra.mxu0 %v806
        %3920 = vmatprep.subr.mxu0 %v799
        %3921 = vmatpush1.msra.mxu0 %v798
        %3922 = vmatprep.subr.mxu0 %v791
        %3923 = vmatpush1.msra.mxu0 %v790
        %3924 = vmatprep.subr.mxu0 %v783
        %3925 = vmatpush1.msra.mxu0 %v782
        %3926 = vmatprep.subr.mxu0 %v775
        %3927 = vmatpush1.msra.mxu0 %v774
        %3928 = vmatprep.subr.mxu0 %v767
        %3929 = vmatpush1.msra.mxu0 %v766
        %3930 = vmatprep.subr.mxu0 %v1015
        %3931 = vmatpush2.msra.mxu0 %v1014
        %3932 = vmatprep.subr.mxu0 %v1007
        %3933 = vmatpush2.msra.mxu0 %v1006
        %3934 = vmatprep.subr.mxu0 %v999
        %3935 = vmatpush2.msra.mxu0 %v998
        %3936 = vmatprep.subr.mxu0 %v991
        %3937 = vmatpush2.msra.mxu0 %v990
        %3938 = vmatprep.subr.mxu0 %v983
        %3939 = vmatpush2.msra.mxu0 %v982
        %3940 = vmatprep.subr.mxu0 %v975
        %3941 = vmatpush2.msra.mxu0 %v974
        %3942 = vmatprep.subr.mxu0 %v967
        %3943 = vmatpush2.msra.mxu0 %v966
        %3944 = vmatprep.subr.mxu0 %v959
        %3945 = vmatpush2.msra.mxu0 %v958
        %3946 = vmatprep.subr.mxu0 %v951
        %3947 = vmatpush2.msra.mxu0 %v950
        %3948 = vmatprep.subr.mxu0 %v943
        %3949 = vmatpush2.msra.mxu0 %v942
        %3950 = vmatprep.subr.mxu0 %v935
        %3951 = vmatpush2.msra.mxu0 %v934
        %3952 = vmatprep.subr.mxu0 %v927
        %3953 = vmatpush2.msra.mxu0 %v926
        %3954 = vmatprep.subr.mxu0 %v919
        %3955 = vmatpush2.msra.mxu0 %v918
        %3956 = vmatprep.subr.mxu0 %v911
        %3957 = vmatpush2.msra.mxu0 %v910
        %3958 = vmatprep.subr.mxu0 %v903
        %3959 = vmatpush2.msra.mxu0 %v902
        %3960 = vmatprep.subr.mxu0 %v895
        %3961 = vmatpush2.msra.mxu0 %v894
        %3962 = vmatprep.mubr.f32.mxu0 %v3826
        %3963 = vmatmul.mubr.f32.gmra.mxu0 %v3825
        %v3964 = vpop.f32.mrf.mxu0
        %v3965 = vadd.f32 %v1733, %v3964
        %v3966 = vpop.f32.mrf.mxu0
        %v3967 = vadd.f32 %v1737, %v3966
        %3968 = vdwg.mxu0
        %3969 = vmatprep.subr.mxu0 %v889
        %3970 = vmatpush1.msra.mxu0 %v888
        %3971 = vmatprep.subr.mxu0 %v881
        %3972 = vmatpush1.msra.mxu0 %v880
        %3973 = vmatprep.subr.mxu0 %v873
        %3974 = vmatpush1.msra.mxu0 %v872
        %3975 = vmatprep.subr.mxu0 %v865
        %3976 = vmatpush1.msra.mxu0 %v864
        %3977 = vmatprep.subr.mxu0 %v857
        %3978 = vmatpush1.msra.mxu0 %v856
        %3979 = vmatprep.subr.mxu0 %v849
        %3980 = vmatpush1.msra.mxu0 %v848
        %3981 = vmatprep.subr.mxu0 %v841
        %3982 = vmatpush1.msra.mxu0 %v840
        %3983 = vmatprep.subr.mxu0 %v833
        %3984 = vmatpush1.msra.mxu0 %v832
        %3985 = vmatprep.subr.mxu0 %v825
        %3986 = vmatpush1.msra.mxu0 %v824
        %3987 = vmatprep.subr.mxu0 %v817
        %3988 = vmatpush1.msra.mxu0 %v816
        %3989 = vmatprep.subr.mxu0 %v809
        %3990 = vmatpush1.msra.mxu0 %v808
        %3991 = vmatprep.subr.mxu0 %v801
        %3992 = vmatpush1.msra.mxu0 %v800
        %3993 = vmatprep.subr.mxu0 %v793
        %3994 = vmatpush1.msra.mxu0 %v792
        %3995 = vmatprep.subr.mxu0 %v785
        %3996 = vmatpush1.msra.mxu0 %v784
        %3997 = vmatprep.subr.mxu0 %v777
        %3998 = vmatpush1.msra.mxu0 %v776
        %3999 = vmatprep.subr.mxu0 %v769
        %4000 = vmatpush1.msra.mxu0 %v768
        %4001 = vmatprep.subr.mxu0 %v1017
        %4002 = vmatpush2.msra.mxu0 %v1016
        %4003 = vmatprep.subr.mxu0 %v1009
        %4004 = vmatpush2.msra.mxu0 %v1008
        %4005 = vmatprep.subr.mxu0 %v1001
        %4006 = vmatpush2.msra.mxu0 %v1000
        %4007 = vmatprep.subr.mxu0 %v993
        %4008 = vmatpush2.msra.mxu0 %v992
        %4009 = vmatprep.subr.mxu0 %v985
        %4010 = vmatpush2.msra.mxu0 %v984
        %4011 = vmatprep.subr.mxu0 %v977
        %4012 = vmatpush2.msra.mxu0 %v976
        %4013 = vmatprep.subr.mxu0 %v969
        %4014 = vmatpush2.msra.mxu0 %v968
        %4015 = vmatprep.subr.mxu0 %v961
        %4016 = vmatpush2.msra.mxu0 %v960
        %4017 = vmatprep.subr.mxu0 %v953
        %4018 = vmatpush2.msra.mxu0 %v952
        %4019 = vmatprep.subr.mxu0 %v945
        %4020 = vmatpush2.msra.mxu0 %v944
        %4021 = vmatprep.subr.mxu0 %v937
        %4022 = vmatpush2.msra.mxu0 %v936
        %4023 = vmatprep.subr.mxu0 %v929
        %4024 = vmatpush2.msra.mxu0 %v928
        %4025 = vmatprep.subr.mxu0 %v921
        %4026 = vmatpush2.msra.mxu0 %v920
        %4027 = vmatprep.subr.mxu0 %v913
        %4028 = vmatpush2.msra.mxu0 %v912
        %4029 = vmatprep.subr.mxu0 %v905
        %4030 = vmatpush2.msra.mxu0 %v904
        %4031 = vmatprep.subr.mxu0 %v897
        %4032 = vmatpush2.msra.mxu0 %v896
        %4033 = vmatprep.mubr.f32.mxu0 %v3826
        %4034 = vmatmul.mubr.f32.gmra.mxu0 %v3825
        %v4035 = vpop.f32.mrf.mxu0
        %v4036 = vadd.f32 %v1741, %v4035
        %v4037 = vpop.f32.mrf.mxu0
        %v4038 = vadd.f32 %v1745, %v4037
        %4039 = vdwg.mxu0
        %4040 = vmatprep.subr.mxu0 %v891
        %4041 = vmatpush1.msra.mxu0 %v890
        %4042 = vmatprep.subr.mxu0 %v883
        %4043 = vmatpush1.msra.mxu0 %v882
        %4044 = vmatprep.subr.mxu0 %v875
        %4045 = vmatpush1.msra.mxu0 %v874
        %4046 = vmatprep.subr.mxu0 %v867
        %4047 = vmatpush1.msra.mxu0 %v866
        %4048 = vmatprep.subr.mxu0 %v859
        %4049 = vmatpush1.msra.mxu0 %v858
        %4050 = vmatprep.subr.mxu0 %v851
        %4051 = vmatpush1.msra.mxu0 %v850
        %4052 = vmatprep.subr.mxu0 %v843
        %4053 = vmatpush1.msra.mxu0 %v842
        %4054 = vmatprep.subr.mxu0 %v835
        %4055 = vmatpush1.msra.mxu0 %v834
        %4056 = vmatprep.subr.mxu0 %v827
        %4057 = vmatpush1.msra.mxu0 %v826
        %4058 = vmatprep.subr.mxu0 %v819
        %4059 = vmatpush1.msra.mxu0 %v818
        %4060 = vmatprep.subr.mxu0 %v811
        %4061 = vmatpush1.msra.mxu0 %v810
        %4062 = vmatprep.subr.mxu0 %v803
        %4063 = vmatpush1.msra.mxu0 %v802
        %4064 = vmatprep.subr.mxu0 %v795
        %4065 = vmatpush1.msra.mxu0 %v794
        %4066 = vmatprep.subr.mxu0 %v787
        %4067 = vmatpush1.msra.mxu0 %v786
        %4068 = vmatprep.subr.mxu0 %v779
        %4069 = vmatpush1.msra.mxu0 %v778
        %4070 = vmatprep.subr.mxu0 %v771
        %4071 = vmatpush1.msra.mxu0 %v770
        %4072 = vmatprep.subr.mxu0 %v1019
        %4073 = vmatpush2.msra.mxu0 %v1018
        %4074 = vmatprep.subr.mxu0 %v1011
        %4075 = vmatpush2.msra.mxu0 %v1010
        %4076 = vmatprep.subr.mxu0 %v1003
        %4077 = vmatpush2.msra.mxu0 %v1002
        %4078 = vmatprep.subr.mxu0 %v995
        %4079 = vmatpush2.msra.mxu0 %v994
        %4080 = vmatprep.subr.mxu0 %v987
        %4081 = vmatpush2.msra.mxu0 %v986
        %4082 = vmatprep.subr.mxu0 %v979
        %4083 = vmatpush2.msra.mxu0 %v978
        %4084 = vmatprep.subr.mxu0 %v971
        %4085 = vmatpush2.msra.mxu0 %v970
        %4086 = vmatprep.subr.mxu0 %v963
        %4087 = vmatpush2.msra.mxu0 %v962
        %4088 = vmatprep.subr.mxu0 %v955
        %4089 = vmatpush2.msra.mxu0 %v954
        %4090 = vmatprep.subr.mxu0 %v947
        %4091 = vmatpush2.msra.mxu0 %v946
        %4092 = vmatprep.subr.mxu0 %v939
        %4093 = vmatpush2.msra.mxu0 %v938
        %4094 = vmatprep.subr.mxu0 %v931
        %4095 = vmatpush2.msra.mxu0 %v930
        %4096 = vmatprep.subr.mxu0 %v923
        %4097 = vmatpush2.msra.mxu0 %v922
        %4098 = vmatprep.subr.mxu0 %v915
        %4099 = vmatpush2.msra.mxu0 %v914
        %4100 = vmatprep.subr.mxu0 %v907
        %4101 = vmatpush2.msra.mxu0 %v906
        %4102 = vmatprep.subr.mxu0 %v899
        %4103 = vmatpush2.msra.mxu0 %v898
        %4104 = vmatprep.mubr.f32.mxu0 %v3826
        %4105 = vmatmul.mubr.f32.gmra.mxu0 %v3825
        %v4106 = vpop.f32.mrf.mxu0
        %v4107 = vadd.f32 %v1749, %v4106
        %v4108 = vpop.f32.mrf.mxu0
        %v4109 = vadd.f32 %v1753, %v4108
        %4110 = vdwg.mxu0
        %v4111 = vxor.u32 %v3894, 2147483648
        %v4112 = vxor.u32 %v3896, 2147483648
        %v4113 = vmul.f32 %v4111, 1.442695
        %v4114 = vpow.pop %v4113
        %v4115 = vmul.f32 %v4112, 1.442695
        %v4116 = vpow.pop %v4115
        %v4117 = vadd.f32 %v4114, 1.0
        %v4118 = vadd.f32 %v4116, 1.0
        %v4119 = vrcp.pop %v4117
        %v4120 = vmul.f32 1.0, %v4119
        %v4121 = vrcp.pop %v4118
        %v4122 = vmul.f32 1.0, %v4121
        %v4123 = vxor.u32 %v3965, 2147483648
        %v4124 = vxor.u32 %v3967, 2147483648
        %v4125 = vmul.f32 %v4123, 1.442695
        %v4126 = vpow.pop %v4125
        %v4127 = vmul.f32 %v4124, 1.442695
        %v4128 = vpow.pop %v4127
        %v4129 = vadd.f32 %v4126, 1.0
        %v4130 = vadd.f32 %v4128, 1.0
        %v4131 = vrcp.pop %v4129
        %v4132 = vmul.f32 1.0, %v4131
        %v4133 = vrcp.pop %v4130
        %v4134 = vmul.f32 1.0, %v4133
        %v4135 = vtanh.pop %v4036
        %v4136 = vtanh.pop %v4038
        %v4137 = vxor.u32 %v4107, 2147483648
        %v4138 = vxor.u32 %v4109, 2147483648
        %v4139 = vmul.f32 %v4137, 1.442695
        %v4140 = vpow.pop %v4139
        %v4141 = vmul.f32 %v4138, 1.442695
        %v4142 = vpow.pop %v4141
        %v4143 = vadd.f32 %v4140, 1.0
        %v4144 = vadd.f32 %v4142, 1.0
        %v4145 = vrcp.pop %v4143
        %v4146 = vmul.f32 1.0, %v4145
        %v4147 = vrcp.pop %v4144
        %v4148 = vmul.f32 1.0, %v4147
        %v4149 = vmul.f32 %v4132, %v3821
        %v4150 = vmul.f32 %v4134, %v3822
        %v4151 = vmul.f32 %v4120, %v4135
        %v4152 = vmul.f32 %v4122, %v4136
        %v4153 = vadd.f32 %v4149, %v4151
        %v4154 = vadd.f32 %v4150, %v4152
        %v4155 = vtanh.pop %v4153
        %v4156 = vtanh.pop %v4154
        %v4157 = vmul.f32 %v4146, %v4155
        %v4158 = vmul.f32 %v4148, %v4156
        %4159 = vmatprep.subr.mxu0 0.0
        %4160 = vmatpush1.msra.mxu0 %v1035
        %4161 = vmatprep.subr.mxu0 0.0
        %4162 = vmatpush1.msra.mxu0 %v1034
        %4163 = vmatprep.subr.mxu0 0.0
        %4164 = vmatpush1.msra.mxu0 %v1033
        %4165 = vmatprep.subr.mxu0 0.0
        %4166 = vmatpush1.msra.mxu0 %v1032
        %4167 = vmatprep.subr.mxu0 0.0
        %4168 = vmatpush1.msra.mxu0 %v1031
        %4169 = vmatprep.subr.mxu0 0.0
        %4170 = vmatpush1.msra.mxu0 %v1030
        %4171 = vmatprep.subr.mxu0 0.0
        %4172 = vmatpush1.msra.mxu0 %v1029
        %4173 = vmatprep.subr.mxu0 0.0
        %4174 = vmatpush1.msra.mxu0 %v1028
        %4175 = vmatprep.subr.mxu0 0.0
        %4176 = vmatpush1.msra.mxu0 %v1027
        %4177 = vmatprep.subr.mxu0 0.0
        %4178 = vmatpush1.msra.mxu0 %v1026
        %4179 = vmatprep.subr.mxu0 0.0
        %4180 = vmatpush1.msra.mxu0 %v1025
        %4181 = vmatprep.subr.mxu0 0.0
        %4182 = vmatpush1.msra.mxu0 %v1024
        %4183 = vmatprep.subr.mxu0 0.0
        %4184 = vmatpush1.msra.mxu0 %v1023
        %4185 = vmatprep.subr.mxu0 0.0
        %4186 = vmatpush1.msra.mxu0 %v1022
        %4187 = vmatprep.subr.mxu0 0.0
        %4188 = vmatpush1.msra.mxu0 %v1021
        %4189 = vmatprep.subr.mxu0 0.0
        %4190 = vmatpush1.msra.mxu0 %v1020
        %4191 = vmatprep.subr.mxu0 0.0
        %4192 = vmatpush2.msra.mxu0 %v1051
        %4193 = vmatprep.subr.mxu0 0.0
        %4194 = vmatpush2.msra.mxu0 %v1050
        %4195 = vmatprep.subr.mxu0 0.0
        %4196 = vmatpush2.msra.mxu0 %v1049
        %4197 = vmatprep.subr.mxu0 0.0
        %4198 = vmatpush2.msra.mxu0 %v1048
        %4199 = vmatprep.subr.mxu0 0.0
        %4200 = vmatpush2.msra.mxu0 %v1047
        %4201 = vmatprep.subr.mxu0 0.0
        %4202 = vmatpush2.msra.mxu0 %v1046
        %4203 = vmatprep.subr.mxu0 0.0
        %4204 = vmatpush2.msra.mxu0 %v1045
        %4205 = vmatprep.subr.mxu0 0.0
        %4206 = vmatpush2.msra.mxu0 %v1044
        %4207 = vmatprep.subr.mxu0 0.0
        %4208 = vmatpush2.msra.mxu0 %v1043
        %4209 = vmatprep.subr.mxu0 0.0
        %4210 = vmatpush2.msra.mxu0 %v1042
        %4211 = vmatprep.subr.mxu0 0.0
        %4212 = vmatpush2.msra.mxu0 %v1041
        %4213 = vmatprep.subr.mxu0 0.0
        %4214 = vmatpush2.msra.mxu0 %v1040
        %4215 = vmatprep.subr.mxu0 0.0
        %4216 = vmatpush2.msra.mxu0 %v1039
        %4217 = vmatprep.subr.mxu0 0.0
        %4218 = vmatpush2.msra.mxu0 %v1038
        %4219 = vmatprep.subr.mxu0 0.0
        %4220 = vmatpush2.msra.mxu0 %v1037
        %4221 = vmatprep.subr.mxu0 0.0
        %4222 = vmatpush2.msra.mxu0 %v1036
        %4223 = vmatprep.mubr.f32.mxu0 %v4158
        %4224 = vmatmul.mubr.f32.gmra.mxu0 %v4157
        %v4225 = vpop.f32.mrf.mxu0
        %v4226 = vadd.f32 %v2098, %v4225
        %v4227 = vpop.f32.mrf.mxu0
        %4228 = vdwg.mxu0
        %s4229 = scalar_lea.vmem %s365, 16 [#allocation5]
        %4230 = vst [vmem:[%s4229] sm:$0xff] %v4226
        %s4231 = scalar_lea.vmem %s336, 24 [#allocation4]
        %v4232 = vld [vmem:[%s4231] sm:$0xff]
        %4233 = vmatprep.subr.mxu0 %v629
        %4234 = vmatpush1.msra.mxu0 %v628
        %4235 = vmatprep.subr.mxu0 %v621
        %4236 = vmatpush1.msra.mxu0 %v620
        %4237 = vmatprep.subr.mxu0 %v613
        %4238 = vmatpush1.msra.mxu0 %v612
        %4239 = vmatprep.subr.mxu0 %v605
        %4240 = vmatpush1.msra.mxu0 %v604
        %4241 = vmatprep.subr.mxu0 %v597
        %4242 = vmatpush1.msra.mxu0 %v596
        %4243 = vmatprep.subr.mxu0 %v589
        %4244 = vmatpush1.msra.mxu0 %v588
        %4245 = vmatprep.subr.mxu0 %v581
        %4246 = vmatpush1.msra.mxu0 %v580
        %4247 = vmatprep.subr.mxu0 %v573
        %4248 = vmatpush1.msra.mxu0 %v572
        %4249 = vmatprep.subr.mxu0 %v565
        %4250 = vmatpush1.msra.mxu0 %v564
        %4251 = vmatprep.subr.mxu0 %v557
        %4252 = vmatpush1.msra.mxu0 %v556
        %4253 = vmatprep.subr.mxu0 %v549
        %4254 = vmatpush1.msra.mxu0 %v548
        %4255 = vmatprep.subr.mxu0 %v541
        %4256 = vmatpush1.msra.mxu0 %v540
        %4257 = vmatprep.subr.mxu0 %v533
        %4258 = vmatpush1.msra.mxu0 %v532
        %4259 = vmatprep.subr.mxu0 %v525
        %4260 = vmatpush1.msra.mxu0 %v524
        %4261 = vmatprep.subr.mxu0 %v517
        %4262 = vmatpush1.msra.mxu0 %v516
        %4263 = vmatprep.subr.mxu0 %v509
        %4264 = vmatpush1.msra.mxu0 %v508
        %4265 = vmatprep.subr.mxu0 %v757
        %4266 = vmatpush2.msra.mxu0 %v756
        %4267 = vmatprep.subr.mxu0 %v749
        %4268 = vmatpush2.msra.mxu0 %v748
        %4269 = vmatprep.subr.mxu0 %v741
        %4270 = vmatpush2.msra.mxu0 %v740
        %4271 = vmatprep.subr.mxu0 %v733
        %4272 = vmatpush2.msra.mxu0 %v732
        %4273 = vmatprep.subr.mxu0 %v725
        %4274 = vmatpush2.msra.mxu0 %v724
        %4275 = vmatprep.subr.mxu0 %v717
        %4276 = vmatpush2.msra.mxu0 %v716
        %4277 = vmatprep.subr.mxu0 %v709
        %4278 = vmatpush2.msra.mxu0 %v708
        %4279 = vmatprep.subr.mxu0 %v701
        %4280 = vmatpush2.msra.mxu0 %v700
        %4281 = vmatprep.subr.mxu0 %v693
        %4282 = vmatpush2.msra.mxu0 %v692
        %4283 = vmatprep.subr.mxu0 %v685
        %4284 = vmatpush2.msra.mxu0 %v684
        %4285 = vmatprep.subr.mxu0 %v677
        %4286 = vmatpush2.msra.mxu0 %v676
        %4287 = vmatprep.subr.mxu0 %v669
        %4288 = vmatpush2.msra.mxu0 %v668
        %4289 = vmatprep.subr.mxu0 %v661
        %4290 = vmatpush2.msra.mxu0 %v660
        %4291 = vmatprep.subr.mxu0 %v653
        %4292 = vmatpush2.msra.mxu0 %v652
        %4293 = vmatprep.subr.mxu0 %v645
        %4294 = vmatpush2.msra.mxu0 %v644
        %4295 = vmatprep.subr.mxu0 %v637
        %4296 = vmatpush2.msra.mxu0 %v636
        %4297 = vmatprep.mubr.f32.mxu0 %v3826
        %4298 = vmatmul.mubr.f32.gmra.mxu0 %v3825
        %v4299 = vpop.f32.mrf.mxu0
        %v4300 = vadd.f32 0.0, %v4299
        %v4301 = vpop.f32.mrf.mxu0
        %v4302 = vadd.f32 0.0, %v4301
        %4303 = vdwg.mxu0
        %4304 = vmatprep.subr.mxu0 %v631
        %4305 = vmatpush1.msra.mxu0 %v630
        %4306 = vmatprep.subr.mxu0 %v623
        %4307 = vmatpush1.msra.mxu0 %v622
        %4308 = vmatprep.subr.mxu0 %v615
        %4309 = vmatpush1.msra.mxu0 %v614
        %4310 = vmatprep.subr.mxu0 %v607
        %4311 = vmatpush1.msra.mxu0 %v606
        %4312 = vmatprep.subr.mxu0 %v599
        %4313 = vmatpush1.msra.mxu0 %v598
        %4314 = vmatprep.subr.mxu0 %v591
        %4315 = vmatpush1.msra.mxu0 %v590
        %4316 = vmatprep.subr.mxu0 %v583
        %4317 = vmatpush1.msra.mxu0 %v582
        %4318 = vmatprep.subr.mxu0 %v575
        %4319 = vmatpush1.msra.mxu0 %v574
        %4320 = vmatprep.subr.mxu0 %v567
        %4321 = vmatpush1.msra.mxu0 %v566
        %4322 = vmatprep.subr.mxu0 %v559
        %4323 = vmatpush1.msra.mxu0 %v558
        %4324 = vmatprep.subr.mxu0 %v551
        %4325 = vmatpush1.msra.mxu0 %v550
        %4326 = vmatprep.subr.mxu0 %v543
        %4327 = vmatpush1.msra.mxu0 %v542
        %4328 = vmatprep.subr.mxu0 %v535
        %4329 = vmatpush1.msra.mxu0 %v534
        %4330 = vmatprep.subr.mxu0 %v527
        %4331 = vmatpush1.msra.mxu0 %v526
        %4332 = vmatprep.subr.mxu0 %v519
        %4333 = vmatpush1.msra.mxu0 %v518
        %4334 = vmatprep.subr.mxu0 %v511
        %4335 = vmatpush1.msra.mxu0 %v510
        %4336 = vmatprep.subr.mxu0 %v759
        %4337 = vmatpush2.msra.mxu0 %v758
        %4338 = vmatprep.subr.mxu0 %v751
        %4339 = vmatpush2.msra.mxu0 %v750
        %4340 = vmatprep.subr.mxu0 %v743
        %4341 = vmatpush2.msra.mxu0 %v742
        %4342 = vmatprep.subr.mxu0 %v735
        %4343 = vmatpush2.msra.mxu0 %v734
        %4344 = vmatprep.subr.mxu0 %v727
        %4345 = vmatpush2.msra.mxu0 %v726
        %4346 = vmatprep.subr.mxu0 %v719
        %4347 = vmatpush2.msra.mxu0 %v718
        %4348 = vmatprep.subr.mxu0 %v711
        %4349 = vmatpush2.msra.mxu0 %v710
        %4350 = vmatprep.subr.mxu0 %v703
        %4351 = vmatpush2.msra.mxu0 %v702
        %4352 = vmatprep.subr.mxu0 %v695
        %4353 = vmatpush2.msra.mxu0 %v694
        %4354 = vmatprep.subr.mxu0 %v687
        %4355 = vmatpush2.msra.mxu0 %v686
        %4356 = vmatprep.subr.mxu0 %v679
        %4357 = vmatpush2.msra.mxu0 %v678
        %4358 = vmatprep.subr.mxu0 %v671
        %4359 = vmatpush2.msra.mxu0 %v670
        %4360 = vmatprep.subr.mxu0 %v663
        %4361 = vmatpush2.msra.mxu0 %v662
        %4362 = vmatprep.subr.mxu0 %v655
        %4363 = vmatpush2.msra.mxu0 %v654
        %4364 = vmatprep.subr.mxu0 %v647
        %4365 = vmatpush2.msra.mxu0 %v646
        %4366 = vmatprep.subr.mxu0 %v639
        %4367 = vmatpush2.msra.mxu0 %v638
        %4368 = vmatprep.mubr.f32.mxu0 %v3826
        %4369 = vmatmul.mubr.f32.gmra.mxu0 %v3825
        %v4370 = vpop.f32.mrf.mxu0
        %v4371 = vadd.f32 0.0, %v4370
        %v4372 = vpop.f32.mrf.mxu0
        %v4373 = vadd.f32 0.0, %v4372
        %4374 = vdwg.mxu0
        %4375 = vmatprep.subr.mxu0 %v633
        %4376 = vmatpush1.msra.mxu0 %v632
        %4377 = vmatprep.subr.mxu0 %v625
        %4378 = vmatpush1.msra.mxu0 %v624
        %4379 = vmatprep.subr.mxu0 %v617
        %4380 = vmatpush1.msra.mxu0 %v616
        %4381 = vmatprep.subr.mxu0 %v609
        %4382 = vmatpush1.msra.mxu0 %v608
        %4383 = vmatprep.subr.mxu0 %v601
        %4384 = vmatpush1.msra.mxu0 %v600
        %4385 = vmatprep.subr.mxu0 %v593
        %4386 = vmatpush1.msra.mxu0 %v592
        %4387 = vmatprep.subr.mxu0 %v585
        %4388 = vmatpush1.msra.mxu0 %v584
        %4389 = vmatprep.subr.mxu0 %v577
        %4390 = vmatpush1.msra.mxu0 %v576
        %4391 = vmatprep.subr.mxu0 %v569
        %4392 = vmatpush1.msra.mxu0 %v568
        %4393 = vmatprep.subr.mxu0 %v561
        %4394 = vmatpush1.msra.mxu0 %v560
        %4395 = vmatprep.subr.mxu0 %v553
        %4396 = vmatpush1.msra.mxu0 %v552
        %4397 = vmatprep.subr.mxu0 %v545
        %4398 = vmatpush1.msra.mxu0 %v544
        %4399 = vmatprep.subr.mxu0 %v537
        %4400 = vmatpush1.msra.mxu0 %v536
        %4401 = vmatprep.subr.mxu0 %v529
        %4402 = vmatpush1.msra.mxu0 %v528
        %4403 = vmatprep.subr.mxu0 %v521
        %4404 = vmatpush1.msra.mxu0 %v520
        %4405 = vmatprep.subr.mxu0 %v513
        %4406 = vmatpush1.msra.mxu0 %v512
        %4407 = vmatprep.subr.mxu0 %v761
        %4408 = vmatpush2.msra.mxu0 %v760
        %4409 = vmatprep.subr.mxu0 %v753
        %4410 = vmatpush2.msra.mxu0 %v752
        %4411 = vmatprep.subr.mxu0 %v745
        %4412 = vmatpush2.msra.mxu0 %v744
        %4413 = vmatprep.subr.mxu0 %v737
        %4414 = vmatpush2.msra.mxu0 %v736
        %4415 = vmatprep.subr.mxu0 %v729
        %4416 = vmatpush2.msra.mxu0 %v728
        %4417 = vmatprep.subr.mxu0 %v721
        %4418 = vmatpush2.msra.mxu0 %v720
        %4419 = vmatprep.subr.mxu0 %v713
        %4420 = vmatpush2.msra.mxu0 %v712
        %4421 = vmatprep.subr.mxu0 %v705
        %4422 = vmatpush2.msra.mxu0 %v704
        %4423 = vmatprep.subr.mxu0 %v697
        %4424 = vmatpush2.msra.mxu0 %v696
        %4425 = vmatprep.subr.mxu0 %v689
        %4426 = vmatpush2.msra.mxu0 %v688
        %4427 = vmatprep.subr.mxu0 %v681
        %4428 = vmatpush2.msra.mxu0 %v680
        %4429 = vmatprep.subr.mxu0 %v673
        %4430 = vmatpush2.msra.mxu0 %v672
        %4431 = vmatprep.subr.mxu0 %v665
        %4432 = vmatpush2.msra.mxu0 %v664
        %4433 = vmatprep.subr.mxu0 %v657
        %4434 = vmatpush2.msra.mxu0 %v656
        %4435 = vmatprep.subr.mxu0 %v649
        %4436 = vmatpush2.msra.mxu0 %v648
        %4437 = vmatprep.subr.mxu0 %v641
        %4438 = vmatpush2.msra.mxu0 %v640
        %4439 = vmatprep.mubr.f32.mxu0 %v3826
        %4440 = vmatmul.mubr.f32.gmra.mxu0 %v3825
        %v4441 = vpop.f32.mrf.mxu0
        %v4442 = vadd.f32 0.0, %v4441
        %v4443 = vpop.f32.mrf.mxu0
        %v4444 = vadd.f32 0.0, %v4443
        %4445 = vdwg.mxu0
        %4446 = vmatprep.subr.mxu0 %v635
        %4447 = vmatpush1.msra.mxu0 %v634
        %4448 = vmatprep.subr.mxu0 %v627
        %4449 = vmatpush1.msra.mxu0 %v626
        %4450 = vmatprep.subr.mxu0 %v619
        %4451 = vmatpush1.msra.mxu0 %v618
        %4452 = vmatprep.subr.mxu0 %v611
        %4453 = vmatpush1.msra.mxu0 %v610
        %4454 = vmatprep.subr.mxu0 %v603
        %4455 = vmatpush1.msra.mxu0 %v602
        %4456 = vmatprep.subr.mxu0 %v595
        %4457 = vmatpush1.msra.mxu0 %v594
        %4458 = vmatprep.subr.mxu0 %v587
        %4459 = vmatpush1.msra.mxu0 %v586
        %4460 = vmatprep.subr.mxu0 %v579
        %4461 = vmatpush1.msra.mxu0 %v578
        %4462 = vmatprep.subr.mxu0 %v571
        %4463 = vmatpush1.msra.mxu0 %v570
        %4464 = vmatprep.subr.mxu0 %v563
        %4465 = vmatpush1.msra.mxu0 %v562
        %4466 = vmatprep.subr.mxu0 %v555
        %4467 = vmatpush1.msra.mxu0 %v554
        %4468 = vmatprep.subr.mxu0 %v547
        %4469 = vmatpush1.msra.mxu0 %v546
        %4470 = vmatprep.subr.mxu0 %v539
        %4471 = vmatpush1.msra.mxu0 %v538
        %4472 = vmatprep.subr.mxu0 %v531
        %4473 = vmatpush1.msra.mxu0 %v530
        %4474 = vmatprep.subr.mxu0 %v523
        %4475 = vmatpush1.msra.mxu0 %v522
        %4476 = vmatprep.subr.mxu0 %v515
        %4477 = vmatpush1.msra.mxu0 %v514
        %4478 = vmatprep.subr.mxu0 %v763
        %4479 = vmatpush2.msra.mxu0 %v762
        %4480 = vmatprep.subr.mxu0 %v755
        %4481 = vmatpush2.msra.mxu0 %v754
        %4482 = vmatprep.subr.mxu0 %v747
        %4483 = vmatpush2.msra.mxu0 %v746
        %4484 = vmatprep.subr.mxu0 %v739
        %4485 = vmatpush2.msra.mxu0 %v738
        %4486 = vmatprep.subr.mxu0 %v731
        %4487 = vmatpush2.msra.mxu0 %v730
        %4488 = vmatprep.subr.mxu0 %v723
        %4489 = vmatpush2.msra.mxu0 %v722
        %4490 = vmatprep.subr.mxu0 %v715
        %4491 = vmatpush2.msra.mxu0 %v714
        %4492 = vmatprep.subr.mxu0 %v707
        %4493 = vmatpush2.msra.mxu0 %v706
        %4494 = vmatprep.subr.mxu0 %v699
        %4495 = vmatpush2.msra.mxu0 %v698
        %4496 = vmatprep.subr.mxu0 %v691
        %4497 = vmatpush2.msra.mxu0 %v690
        %4498 = vmatprep.subr.mxu0 %v683
        %4499 = vmatpush2.msra.mxu0 %v682
        %4500 = vmatprep.subr.mxu0 %v675
        %4501 = vmatpush2.msra.mxu0 %v674
        %4502 = vmatprep.subr.mxu0 %v667
        %4503 = vmatpush2.msra.mxu0 %v666
        %4504 = vmatprep.subr.mxu0 %v659
        %4505 = vmatpush2.msra.mxu0 %v658
        %4506 = vmatprep.subr.mxu0 %v651
        %4507 = vmatpush2.msra.mxu0 %v650
        %4508 = vmatprep.subr.mxu0 %v643
        %4509 = vmatpush2.msra.mxu0 %v642
        %4510 = vmatprep.mubr.f32.mxu0 %v3826
        %4511 = vmatmul.mubr.f32.gmra.mxu0 %v3825
        %v4512 = vpop.f32.mrf.mxu0
        %v4513 = vadd.f32 0.0, %v4512
        %v4514 = vpop.f32.mrf.mxu0
        %v4515 = vadd.f32 0.0, %v4514
        %4516 = vdwg.mxu0
        %4517 = vmatprep.subr.mxu0 %v501
        %4518 = vmatpush1.msra.mxu0 %v500
        %4519 = vmatprep.subr.mxu0 %v493
        %4520 = vmatpush1.msra.mxu0 %v492
        %4521 = vmatprep.subr.mxu0 %v485
        %4522 = vmatpush1.msra.mxu0 %v484
        %4523 = vmatprep.subr.mxu0 %v477
        %4524 = vmatpush1.msra.mxu0 %v476
        %4525 = vmatprep.subr.mxu0 %v469
        %4526 = vmatpush1.msra.mxu0 %v468
        %4527 = vmatprep.subr.mxu0 %v461
        %4528 = vmatpush1.msra.mxu0 %v460
        %4529 = vmatprep.subr.mxu0 %v453
        %4530 = vmatpush1.msra.mxu0 %v452
        %4531 = vmatprep.subr.mxu0 %v445
        %4532 = vmatpush1.msra.mxu0 %v444
        %4533 = vmatprep.subr.mxu0 %v437
        %4534 = vmatpush1.msra.mxu0 %v436
        %4535 = vmatprep.subr.mxu0 %v429
        %4536 = vmatpush1.msra.mxu0 %v428
        %4537 = vmatprep.subr.mxu0 %v421
        %4538 = vmatpush1.msra.mxu0 %v420
        %4539 = vmatprep.subr.mxu0 %v413
        %4540 = vmatpush1.msra.mxu0 %v412
        %4541 = vmatprep.subr.mxu0 %v405
        %4542 = vmatpush1.msra.mxu0 %v404
        %4543 = vmatprep.subr.mxu0 %v397
        %4544 = vmatpush1.msra.mxu0 %v396
        %4545 = vmatprep.subr.mxu0 %v389
        %4546 = vmatpush1.msra.mxu0 %v388
        %4547 = vmatprep.subr.mxu0 %v381
        %4548 = vmatpush1.msra.mxu0 %v380
        %4549 = vmatprep.subr.mxu0 0.0
        %4550 = vmatpush2.msra.mxu0 0.0
        %4551 = vmatprep.subr.mxu0 0.0
        %4552 = vmatpush2.msra.mxu0 0.0
        %4553 = vmatprep.subr.mxu0 0.0
        %4554 = vmatpush2.msra.mxu0 0.0
        %4555 = vmatprep.subr.mxu0 0.0
        %4556 = vmatpush2.msra.mxu0 0.0
        %4557 = vmatprep.subr.mxu0 0.0
        %4558 = vmatpush2.msra.mxu0 0.0
        %4559 = vmatprep.subr.mxu0 0.0
        %4560 = vmatpush2.msra.mxu0 0.0
        %4561 = vmatprep.subr.mxu0 0.0
        %4562 = vmatpush2.msra.mxu0 0.0
        %4563 = vmatprep.subr.mxu0 0.0
        %4564 = vmatpush2.msra.mxu0 0.0
        %4565 = vmatprep.subr.mxu0 0.0
        %4566 = vmatpush2.msra.mxu0 0.0
        %4567 = vmatprep.subr.mxu0 0.0
        %4568 = vmatpush2.msra.mxu0 0.0
        %4569 = vmatprep.subr.mxu0 0.0
        %4570 = vmatpush2.msra.mxu0 0.0
        %4571 = vmatprep.subr.mxu0 0.0
        %4572 = vmatpush2.msra.mxu0 0.0
        %4573 = vmatprep.subr.mxu0 0.0
        %4574 = vmatpush2.msra.mxu0 0.0
        %4575 = vmatprep.subr.mxu0 0.0
        %4576 = vmatpush2.msra.mxu0 0.0
        %4577 = vmatprep.subr.mxu0 0.0
        %4578 = vmatpush2.msra.mxu0 0.0
        %4579 = vmatprep.subr.mxu0 0.0
        %4580 = vmatpush2.msra.mxu0 0.0
        %4581 = vmatprep.mubr.f32.mxu0 0.0
        %4582 = vmatmul.mubr.f32.gmra.mxu0 %v4232
        %v4583 = vpop.f32.mrf.mxu0
        %v4584 = vadd.f32 %v4300, %v4583
        %v4585 = vpop.f32.mrf.mxu0
        %v4586 = vadd.f32 %v4302, %v4585
        %4587 = vdwg.mxu0
        %4588 = vmatprep.subr.mxu0 %v503
        %4589 = vmatpush1.msra.mxu0 %v502
        %4590 = vmatprep.subr.mxu0 %v495
        %4591 = vmatpush1.msra.mxu0 %v494
        %4592 = vmatprep.subr.mxu0 %v487
        %4593 = vmatpush1.msra.mxu0 %v486
        %4594 = vmatprep.subr.mxu0 %v479
        %4595 = vmatpush1.msra.mxu0 %v478
        %4596 = vmatprep.subr.mxu0 %v471
        %4597 = vmatpush1.msra.mxu0 %v470
        %4598 = vmatprep.subr.mxu0 %v463
        %4599 = vmatpush1.msra.mxu0 %v462
        %4600 = vmatprep.subr.mxu0 %v455
        %4601 = vmatpush1.msra.mxu0 %v454
        %4602 = vmatprep.subr.mxu0 %v447
        %4603 = vmatpush1.msra.mxu0 %v446
        %4604 = vmatprep.subr.mxu0 %v439
        %4605 = vmatpush1.msra.mxu0 %v438
        %4606 = vmatprep.subr.mxu0 %v431
        %4607 = vmatpush1.msra.mxu0 %v430
        %4608 = vmatprep.subr.mxu0 %v423
        %4609 = vmatpush1.msra.mxu0 %v422
        %4610 = vmatprep.subr.mxu0 %v415
        %4611 = vmatpush1.msra.mxu0 %v414
        %4612 = vmatprep.subr.mxu0 %v407
        %4613 = vmatpush1.msra.mxu0 %v406
        %4614 = vmatprep.subr.mxu0 %v399
        %4615 = vmatpush1.msra.mxu0 %v398
        %4616 = vmatprep.subr.mxu0 %v391
        %4617 = vmatpush1.msra.mxu0 %v390
        %4618 = vmatprep.subr.mxu0 %v383
        %4619 = vmatpush1.msra.mxu0 %v382
        %4620 = vmatprep.subr.mxu0 0.0
        %4621 = vmatpush2.msra.mxu0 0.0
        %4622 = vmatprep.subr.mxu0 0.0
        %4623 = vmatpush2.msra.mxu0 0.0
        %4624 = vmatprep.subr.mxu0 0.0
        %4625 = vmatpush2.msra.mxu0 0.0
        %4626 = vmatprep.subr.mxu0 0.0
        %4627 = vmatpush2.msra.mxu0 0.0
        %4628 = vmatprep.subr.mxu0 0.0
        %4629 = vmatpush2.msra.mxu0 0.0
        %4630 = vmatprep.subr.mxu0 0.0
        %4631 = vmatpush2.msra.mxu0 0.0
        %4632 = vmatprep.subr.mxu0 0.0
        %4633 = vmatpush2.msra.mxu0 0.0
        %4634 = vmatprep.subr.mxu0 0.0
        %4635 = vmatpush2.msra.mxu0 0.0
        %4636 = vmatprep.subr.mxu0 0.0
        %4637 = vmatpush2.msra.mxu0 0.0
        %4638 = vmatprep.subr.mxu0 0.0
        %4639 = vmatpush2.msra.mxu0 0.0
        %4640 = vmatprep.subr.mxu0 0.0
        %4641 = vmatpush2.msra.mxu0 0.0
        %4642 = vmatprep.subr.mxu0 0.0
        %4643 = vmatpush2.msra.mxu0 0.0
        %4644 = vmatprep.subr.mxu0 0.0
        %4645 = vmatpush2.msra.mxu0 0.0
        %4646 = vmatprep.subr.mxu0 0.0
        %4647 = vmatpush2.msra.mxu0 0.0
        %4648 = vmatprep.subr.mxu0 0.0
        %4649 = vmatpush2.msra.mxu0 0.0
        %4650 = vmatprep.subr.mxu0 0.0
        %4651 = vmatpush2.msra.mxu0 0.0
        %4652 = vmatprep.mubr.f32.mxu0 0.0
        %4653 = vmatmul.mubr.f32.gmra.mxu0 %v4232
        %v4654 = vpop.f32.mrf.mxu0
        %v4655 = vadd.f32 %v4371, %v4654
        %v4656 = vpop.f32.mrf.mxu0
        %v4657 = vadd.f32 %v4373, %v4656
        %4658 = vdwg.mxu0
        %4659 = vmatprep.subr.mxu0 %v505
        %4660 = vmatpush1.msra.mxu0 %v504
        %4661 = vmatprep.subr.mxu0 %v497
        %4662 = vmatpush1.msra.mxu0 %v496
        %4663 = vmatprep.subr.mxu0 %v489
        %4664 = vmatpush1.msra.mxu0 %v488
        %4665 = vmatprep.subr.mxu0 %v481
        %4666 = vmatpush1.msra.mxu0 %v480
        %4667 = vmatprep.subr.mxu0 %v473
        %4668 = vmatpush1.msra.mxu0 %v472
        %4669 = vmatprep.subr.mxu0 %v465
        %4670 = vmatpush1.msra.mxu0 %v464
        %4671 = vmatprep.subr.mxu0 %v457
        %4672 = vmatpush1.msra.mxu0 %v456
        %4673 = vmatprep.subr.mxu0 %v449
        %4674 = vmatpush1.msra.mxu0 %v448
        %4675 = vmatprep.subr.mxu0 %v441
        %4676 = vmatpush1.msra.mxu0 %v440
        %4677 = vmatprep.subr.mxu0 %v433
        %4678 = vmatpush1.msra.mxu0 %v432
        %4679 = vmatprep.subr.mxu0 %v425
        %4680 = vmatpush1.msra.mxu0 %v424
        %4681 = vmatprep.subr.mxu0 %v417
        %4682 = vmatpush1.msra.mxu0 %v416
        %4683 = vmatprep.subr.mxu0 %v409
        %4684 = vmatpush1.msra.mxu0 %v408
        %4685 = vmatprep.subr.mxu0 %v401
        %4686 = vmatpush1.msra.mxu0 %v400
        %4687 = vmatprep.subr.mxu0 %v393
        %4688 = vmatpush1.msra.mxu0 %v392
        %4689 = vmatprep.subr.mxu0 %v385
        %4690 = vmatpush1.msra.mxu0 %v384
        %4691 = vmatprep.subr.mxu0 0.0
        %4692 = vmatpush2.msra.mxu0 0.0
        %4693 = vmatprep.subr.mxu0 0.0
        %4694 = vmatpush2.msra.mxu0 0.0
        %4695 = vmatprep.subr.mxu0 0.0
        %4696 = vmatpush2.msra.mxu0 0.0
        %4697 = vmatprep.subr.mxu0 0.0
        %4698 = vmatpush2.msra.mxu0 0.0
        %4699 = vmatprep.subr.mxu0 0.0
        %4700 = vmatpush2.msra.mxu0 0.0
        %4701 = vmatprep.subr.mxu0 0.0
        %4702 = vmatpush2.msra.mxu0 0.0
        %4703 = vmatprep.subr.mxu0 0.0
        %4704 = vmatpush2.msra.mxu0 0.0
        %4705 = vmatprep.subr.mxu0 0.0
        %4706 = vmatpush2.msra.mxu0 0.0
        %4707 = vmatprep.subr.mxu0 0.0
        %4708 = vmatpush2.msra.mxu0 0.0
        %4709 = vmatprep.subr.mxu0 0.0
        %4710 = vmatpush2.msra.mxu0 0.0
        %4711 = vmatprep.subr.mxu0 0.0
        %4712 = vmatpush2.msra.mxu0 0.0
        %4713 = vmatprep.subr.mxu0 0.0
        %4714 = vmatpush2.msra.mxu0 0.0
        %4715 = vmatprep.subr.mxu0 0.0
        %4716 = vmatpush2.msra.mxu0 0.0
        %4717 = vmatprep.subr.mxu0 0.0
        %4718 = vmatpush2.msra.mxu0 0.0
        %4719 = vmatprep.subr.mxu0 0.0
        %4720 = vmatpush2.msra.mxu0 0.0
        %4721 = vmatprep.subr.mxu0 0.0
        %4722 = vmatpush2.msra.mxu0 0.0
        %4723 = vmatprep.mubr.f32.mxu0 0.0
        %4724 = vmatmul.mubr.f32.gmra.mxu0 %v4232
        %v4725 = vpop.f32.mrf.mxu0
        %v4726 = vadd.f32 %v4442, %v4725
        %v4727 = vpop.f32.mrf.mxu0
        %v4728 = vadd.f32 %v4444, %v4727
        %4729 = vdwg.mxu0
        %4730 = vmatprep.subr.mxu0 %v507
        %4731 = vmatpush1.msra.mxu0 %v506
        %4732 = vmatprep.subr.mxu0 %v499
        %4733 = vmatpush1.msra.mxu0 %v498
        %4734 = vmatprep.subr.mxu0 %v491
        %4735 = vmatpush1.msra.mxu0 %v490
        %4736 = vmatprep.subr.mxu0 %v483
        %4737 = vmatpush1.msra.mxu0 %v482
        %4738 = vmatprep.subr.mxu0 %v475
        %4739 = vmatpush1.msra.mxu0 %v474
        %4740 = vmatprep.subr.mxu0 %v467
        %4741 = vmatpush1.msra.mxu0 %v466
        %4742 = vmatprep.subr.mxu0 %v459
        %4743 = vmatpush1.msra.mxu0 %v458
        %4744 = vmatprep.subr.mxu0 %v451
        %4745 = vmatpush1.msra.mxu0 %v450
        %4746 = vmatprep.subr.mxu0 %v443
        %4747 = vmatpush1.msra.mxu0 %v442
        %4748 = vmatprep.subr.mxu0 %v435
        %4749 = vmatpush1.msra.mxu0 %v434
        %4750 = vmatprep.subr.mxu0 %v427
        %4751 = vmatpush1.msra.mxu0 %v426
        %4752 = vmatprep.subr.mxu0 %v419
        %4753 = vmatpush1.msra.mxu0 %v418
        %4754 = vmatprep.subr.mxu0 %v411
        %4755 = vmatpush1.msra.mxu0 %v410
        %4756 = vmatprep.subr.mxu0 %v403
        %4757 = vmatpush1.msra.mxu0 %v402
        %4758 = vmatprep.subr.mxu0 %v395
        %4759 = vmatpush1.msra.mxu0 %v394
        %4760 = vmatprep.subr.mxu0 %v387
        %4761 = vmatpush1.msra.mxu0 %v386
        %4762 = vmatprep.subr.mxu0 0.0
        %4763 = vmatpush2.msra.mxu0 0.0
        %4764 = vmatprep.subr.mxu0 0.0
        %4765 = vmatpush2.msra.mxu0 0.0
        %4766 = vmatprep.subr.mxu0 0.0
        %4767 = vmatpush2.msra.mxu0 0.0
        %4768 = vmatprep.subr.mxu0 0.0
        %4769 = vmatpush2.msra.mxu0 0.0
        %4770 = vmatprep.subr.mxu0 0.0
        %4771 = vmatpush2.msra.mxu0 0.0
        %4772 = vmatprep.subr.mxu0 0.0
        %4773 = vmatpush2.msra.mxu0 0.0
        %4774 = vmatprep.subr.mxu0 0.0
        %4775 = vmatpush2.msra.mxu0 0.0
        %4776 = vmatprep.subr.mxu0 0.0
        %4777 = vmatpush2.msra.mxu0 0.0
        %4778 = vmatprep.subr.mxu0 0.0
        %4779 = vmatpush2.msra.mxu0 0.0
        %4780 = vmatprep.subr.mxu0 0.0
        %4781 = vmatpush2.msra.mxu0 0.0
        %4782 = vmatprep.subr.mxu0 0.0
        %4783 = vmatpush2.msra.mxu0 0.0
        %4784 = vmatprep.subr.mxu0 0.0
        %4785 = vmatpush2.msra.mxu0 0.0
        %4786 = vmatprep.subr.mxu0 0.0
        %4787 = vmatpush2.msra.mxu0 0.0
        %4788 = vmatprep.subr.mxu0 0.0
        %4789 = vmatpush2.msra.mxu0 0.0
        %4790 = vmatprep.subr.mxu0 0.0
        %4791 = vmatpush2.msra.mxu0 0.0
        %4792 = vmatprep.subr.mxu0 0.0
        %4793 = vmatpush2.msra.mxu0 0.0
        %4794 = vmatprep.mubr.f32.mxu0 0.0
        %4795 = vmatmul.mubr.f32.gmra.mxu0 %v4232
        %v4796 = vpop.f32.mrf.mxu0
        %v4797 = vadd.f32 %v4513, %v4796
        %v4798 = vpop.f32.mrf.mxu0
        %v4799 = vadd.f32 %v4515, %v4798
        %4800 = vdwg.mxu0
        %v4801 = vadd.f32 %v4584, %v1628
        %v4802 = vadd.f32 %v4586, %v1632
        %v4803 = vadd.f32 %v4655, %v1636
        %v4804 = vadd.f32 %v4657, %v1640
        %v4805 = vadd.f32 %v4726, %v1644
        %v4806 = vadd.f32 %v4728, %v1648
        %v4807 = vadd.f32 %v4797, %v1652
        %v4808 = vadd.f32 %v4799, %v1656
        %v4809 = vxor.u32 %v4801, 2147483648
        %v4810 = vxor.u32 %v4802, 2147483648
        %v4811 = vmul.f32 %v4809, 1.442695
        %v4812 = vpow.pop %v4811
        %v4813 = vmul.f32 %v4810, 1.442695
        %v4814 = vpow.pop %v4813
        %v4815 = vadd.f32 %v4812, 1.0
        %v4816 = vadd.f32 %v4814, 1.0
        %v4817 = vrcp.pop %v4815
        %v4818 = vmul.f32 1.0, %v4817
        %v4819 = vrcp.pop %v4816
        %v4820 = vmul.f32 1.0, %v4819
        %v4821 = vxor.u32 %v4803, 2147483648
        %v4822 = vxor.u32 %v4804, 2147483648
        %v4823 = vmul.f32 %v4821, 1.442695
        %v4824 = vpow.pop %v4823
        %v4825 = vmul.f32 %v4822, 1.442695
        %v4826 = vpow.pop %v4825
        %v4827 = vadd.f32 %v4824, 1.0
        %v4828 = vadd.f32 %v4826, 1.0
        %v4829 = vrcp.pop %v4827
        %v4830 = vmul.f32 1.0, %v4829
        %v4831 = vrcp.pop %v4828
        %v4832 = vmul.f32 1.0, %v4831
        %v4833 = vtanh.pop %v4805
        %v4834 = vtanh.pop %v4806
        %v4835 = vxor.u32 %v4807, 2147483648
        %v4836 = vxor.u32 %v4808, 2147483648
        %v4837 = vmul.f32 %v4835, 1.442695
        %v4838 = vpow.pop %v4837
        %v4839 = vmul.f32 %v4836, 1.442695
        %v4840 = vpow.pop %v4839
        %v4841 = vadd.f32 %v4838, 1.0
        %v4842 = vadd.f32 %v4840, 1.0
        %v4843 = vrcp.pop %v4841
        %v4844 = vmul.f32 1.0, %v4843
        %v4845 = vrcp.pop %v4842
        %v4846 = vmul.f32 1.0, %v4845
        %v4847 = vmul.f32 %v4830, %v3821
        %v4848 = vmul.f32 %v4832, %v3822
        %v4849 = vmul.f32 %v4818, %v4833
        %v4850 = vmul.f32 %v4820, %v4834
        %v4851 = vadd.f32 %v4847, %v4849
        %v4852 = vadd.f32 %v4848, %v4850
        %v4853 = vtanh.pop %v4851
        %v4854 = vtanh.pop %v4852
        %v4855 = vmul.f32 %v4844, %v4853
        %v4856 = vmul.f32 %v4846, %v4854
        %4857 = vmatprep.subr.mxu0 %v885
        %4858 = vmatpush1.msra.mxu0 %v884
        %4859 = vmatprep.subr.mxu0 %v877
        %4860 = vmatpush1.msra.mxu0 %v876
        %4861 = vmatprep.subr.mxu0 %v869
        %4862 = vmatpush1.msra.mxu0 %v868
        %4863 = vmatprep.subr.mxu0 %v861
        %4864 = vmatpush1.msra.mxu0 %v860
        %4865 = vmatprep.subr.mxu0 %v853
        %4866 = vmatpush1.msra.mxu0 %v852
        %4867 = vmatprep.subr.mxu0 %v845
        %4868 = vmatpush1.msra.mxu0 %v844
        %4869 = vmatprep.subr.mxu0 %v837
        %4870 = vmatpush1.msra.mxu0 %v836
        %4871 = vmatprep.subr.mxu0 %v829
        %4872 = vmatpush1.msra.mxu0 %v828
        %4873 = vmatprep.subr.mxu0 %v821
        %4874 = vmatpush1.msra.mxu0 %v820
        %4875 = vmatprep.subr.mxu0 %v813
        %4876 = vmatpush1.msra.mxu0 %v812
        %4877 = vmatprep.subr.mxu0 %v805
        %4878 = vmatpush1.msra.mxu0 %v804
        %4879 = vmatprep.subr.mxu0 %v797
        %4880 = vmatpush1.msra.mxu0 %v796
        %4881 = vmatprep.subr.mxu0 %v789
        %4882 = vmatpush1.msra.mxu0 %v788
        %4883 = vmatprep.subr.mxu0 %v781
        %4884 = vmatpush1.msra.mxu0 %v780
        %4885 = vmatprep.subr.mxu0 %v773
        %4886 = vmatpush1.msra.mxu0 %v772
        %4887 = vmatprep.subr.mxu0 %v765
        %4888 = vmatpush1.msra.mxu0 %v764
        %4889 = vmatprep.subr.mxu0 %v1013
        %4890 = vmatpush2.msra.mxu0 %v1012
        %4891 = vmatprep.subr.mxu0 %v1005
        %4892 = vmatpush2.msra.mxu0 %v1004
        %4893 = vmatprep.subr.mxu0 %v997
        %4894 = vmatpush2.msra.mxu0 %v996
        %4895 = vmatprep.subr.mxu0 %v989
        %4896 = vmatpush2.msra.mxu0 %v988
        %4897 = vmatprep.subr.mxu0 %v981
        %4898 = vmatpush2.msra.mxu0 %v980
        %4899 = vmatprep.subr.mxu0 %v973
        %4900 = vmatpush2.msra.mxu0 %v972
        %4901 = vmatprep.subr.mxu0 %v965
        %4902 = vmatpush2.msra.mxu0 %v964
        %4903 = vmatprep.subr.mxu0 %v957
        %4904 = vmatpush2.msra.mxu0 %v956
        %4905 = vmatprep.subr.mxu0 %v949
        %4906 = vmatpush2.msra.mxu0 %v948
        %4907 = vmatprep.subr.mxu0 %v941
        %4908 = vmatpush2.msra.mxu0 %v940
        %4909 = vmatprep.subr.mxu0 %v933
        %4910 = vmatpush2.msra.mxu0 %v932
        %4911 = vmatprep.subr.mxu0 %v925
        %4912 = vmatpush2.msra.mxu0 %v924
        %4913 = vmatprep.subr.mxu0 %v917
        %4914 = vmatpush2.msra.mxu0 %v916
        %4915 = vmatprep.subr.mxu0 %v909
        %4916 = vmatpush2.msra.mxu0 %v908
        %4917 = vmatprep.subr.mxu0 %v901
        %4918 = vmatpush2.msra.mxu0 %v900
        %4919 = vmatprep.subr.mxu0 %v893
        %4920 = vmatpush2.msra.mxu0 %v892
        %4921 = vmatprep.mubr.f32.mxu0 %v4856
        %4922 = vmatmul.mubr.f32.gmra.mxu0 %v4855
        %v4923 = vpop.f32.mrf.mxu0
        %v4924 = vadd.f32 %v1725, %v4923
        %v4925 = vpop.f32.mrf.mxu0
        %v4926 = vadd.f32 %v1729, %v4925
        %4927 = vdwg.mxu0
        %4928 = vmatprep.subr.mxu0 %v887
        %4929 = vmatpush1.msra.mxu0 %v886
        %4930 = vmatprep.subr.mxu0 %v879
        %4931 = vmatpush1.msra.mxu0 %v878
        %4932 = vmatprep.subr.mxu0 %v871
        %4933 = vmatpush1.msra.mxu0 %v870
        %4934 = vmatprep.subr.mxu0 %v863
        %4935 = vmatpush1.msra.mxu0 %v862
        %4936 = vmatprep.subr.mxu0 %v855
        %4937 = vmatpush1.msra.mxu0 %v854
        %4938 = vmatprep.subr.mxu0 %v847
        %4939 = vmatpush1.msra.mxu0 %v846
        %4940 = vmatprep.subr.mxu0 %v839
        %4941 = vmatpush1.msra.mxu0 %v838
        %4942 = vmatprep.subr.mxu0 %v831
        %4943 = vmatpush1.msra.mxu0 %v830
        %4944 = vmatprep.subr.mxu0 %v823
        %4945 = vmatpush1.msra.mxu0 %v822
        %4946 = vmatprep.subr.mxu0 %v815
        %4947 = vmatpush1.msra.mxu0 %v814
        %4948 = vmatprep.subr.mxu0 %v807
        %4949 = vmatpush1.msra.mxu0 %v806
        %4950 = vmatprep.subr.mxu0 %v799
        %4951 = vmatpush1.msra.mxu0 %v798
        %4952 = vmatprep.subr.mxu0 %v791
        %4953 = vmatpush1.msra.mxu0 %v790
        %4954 = vmatprep.subr.mxu0 %v783
        %4955 = vmatpush1.msra.mxu0 %v782
        %4956 = vmatprep.subr.mxu0 %v775
        %4957 = vmatpush1.msra.mxu0 %v774
        %4958 = vmatprep.subr.mxu0 %v767
        %4959 = vmatpush1.msra.mxu0 %v766
        %4960 = vmatprep.subr.mxu0 %v1015
        %4961 = vmatpush2.msra.mxu0 %v1014
        %4962 = vmatprep.subr.mxu0 %v1007
        %4963 = vmatpush2.msra.mxu0 %v1006
        %4964 = vmatprep.subr.mxu0 %v999
        %4965 = vmatpush2.msra.mxu0 %v998
        %4966 = vmatprep.subr.mxu0 %v991
        %4967 = vmatpush2.msra.mxu0 %v990
        %4968 = vmatprep.subr.mxu0 %v983
        %4969 = vmatpush2.msra.mxu0 %v982
        %4970 = vmatprep.subr.mxu0 %v975
        %4971 = vmatpush2.msra.mxu0 %v974
        %4972 = vmatprep.subr.mxu0 %v967
        %4973 = vmatpush2.msra.mxu0 %v966
        %4974 = vmatprep.subr.mxu0 %v959
        %4975 = vmatpush2.msra.mxu0 %v958
        %4976 = vmatprep.subr.mxu0 %v951
        %4977 = vmatpush2.msra.mxu0 %v950
        %4978 = vmatprep.subr.mxu0 %v943
        %4979 = vmatpush2.msra.mxu0 %v942
        %4980 = vmatprep.subr.mxu0 %v935
        %4981 = vmatpush2.msra.mxu0 %v934
        %4982 = vmatprep.subr.mxu0 %v927
        %4983 = vmatpush2.msra.mxu0 %v926
        %4984 = vmatprep.subr.mxu0 %v919
        %4985 = vmatpush2.msra.mxu0 %v918
        %4986 = vmatprep.subr.mxu0 %v911
        %4987 = vmatpush2.msra.mxu0 %v910
        %4988 = vmatprep.subr.mxu0 %v903
        %4989 = vmatpush2.msra.mxu0 %v902
        %4990 = vmatprep.subr.mxu0 %v895
        %4991 = vmatpush2.msra.mxu0 %v894
        %4992 = vmatprep.mubr.f32.mxu0 %v4856
        %4993 = vmatmul.mubr.f32.gmra.mxu0 %v4855
        %v4994 = vpop.f32.mrf.mxu0
        %v4995 = vadd.f32 %v1733, %v4994
        %v4996 = vpop.f32.mrf.mxu0
        %v4997 = vadd.f32 %v1737, %v4996
        %4998 = vdwg.mxu0
        %4999 = vmatprep.subr.mxu0 %v889
        %5000 = vmatpush1.msra.mxu0 %v888
        %5001 = vmatprep.subr.mxu0 %v881
        %5002 = vmatpush1.msra.mxu0 %v880
        %5003 = vmatprep.subr.mxu0 %v873
        %5004 = vmatpush1.msra.mxu0 %v872
        %5005 = vmatprep.subr.mxu0 %v865
        %5006 = vmatpush1.msra.mxu0 %v864
        %5007 = vmatprep.subr.mxu0 %v857
        %5008 = vmatpush1.msra.mxu0 %v856
        %5009 = vmatprep.subr.mxu0 %v849
        %5010 = vmatpush1.msra.mxu0 %v848
        %5011 = vmatprep.subr.mxu0 %v841
        %5012 = vmatpush1.msra.mxu0 %v840
        %5013 = vmatprep.subr.mxu0 %v833
        %5014 = vmatpush1.msra.mxu0 %v832
        %5015 = vmatprep.subr.mxu0 %v825
        %5016 = vmatpush1.msra.mxu0 %v824
        %5017 = vmatprep.subr.mxu0 %v817
        %5018 = vmatpush1.msra.mxu0 %v816
        %5019 = vmatprep.subr.mxu0 %v809
        %5020 = vmatpush1.msra.mxu0 %v808
        %5021 = vmatprep.subr.mxu0 %v801
        %5022 = vmatpush1.msra.mxu0 %v800
        %5023 = vmatprep.subr.mxu0 %v793
        %5024 = vmatpush1.msra.mxu0 %v792
        %5025 = vmatprep.subr.mxu0 %v785
        %5026 = vmatpush1.msra.mxu0 %v784
        %5027 = vmatprep.subr.mxu0 %v777
        %5028 = vmatpush1.msra.mxu0 %v776
        %5029 = vmatprep.subr.mxu0 %v769
        %5030 = vmatpush1.msra.mxu0 %v768
        %5031 = vmatprep.subr.mxu0 %v1017
        %5032 = vmatpush2.msra.mxu0 %v1016
        %5033 = vmatprep.subr.mxu0 %v1009
        %5034 = vmatpush2.msra.mxu0 %v1008
        %5035 = vmatprep.subr.mxu0 %v1001
        %5036 = vmatpush2.msra.mxu0 %v1000
        %5037 = vmatprep.subr.mxu0 %v993
        %5038 = vmatpush2.msra.mxu0 %v992
        %5039 = vmatprep.subr.mxu0 %v985
        %5040 = vmatpush2.msra.mxu0 %v984
        %5041 = vmatprep.subr.mxu0 %v977
        %5042 = vmatpush2.msra.mxu0 %v976
        %5043 = vmatprep.subr.mxu0 %v969
        %5044 = vmatpush2.msra.mxu0 %v968
        %5045 = vmatprep.subr.mxu0 %v961
        %5046 = vmatpush2.msra.mxu0 %v960
        %5047 = vmatprep.subr.mxu0 %v953
        %5048 = vmatpush2.msra.mxu0 %v952
        %5049 = vmatprep.subr.mxu0 %v945
        %5050 = vmatpush2.msra.mxu0 %v944
        %5051 = vmatprep.subr.mxu0 %v937
        %5052 = vmatpush2.msra.mxu0 %v936
        %5053 = vmatprep.subr.mxu0 %v929
        %5054 = vmatpush2.msra.mxu0 %v928
        %5055 = vmatprep.subr.mxu0 %v921
        %5056 = vmatpush2.msra.mxu0 %v920
        %5057 = vmatprep.subr.mxu0 %v913
        %5058 = vmatpush2.msra.mxu0 %v912
        %5059 = vmatprep.subr.mxu0 %v905
        %5060 = vmatpush2.msra.mxu0 %v904
        %5061 = vmatprep.subr.mxu0 %v897
        %5062 = vmatpush2.msra.mxu0 %v896
        %5063 = vmatprep.mubr.f32.mxu0 %v4856
        %5064 = vmatmul.mubr.f32.gmra.mxu0 %v4855
        %v5065 = vpop.f32.mrf.mxu0
        %v5066 = vadd.f32 %v1741, %v5065
        %v5067 = vpop.f32.mrf.mxu0
        %v5068 = vadd.f32 %v1745, %v5067
        %5069 = vdwg.mxu0
        %5070 = vmatprep.subr.mxu0 %v891
        %5071 = vmatpush1.msra.mxu0 %v890
        %5072 = vmatprep.subr.mxu0 %v883
        %5073 = vmatpush1.msra.mxu0 %v882
        %5074 = vmatprep.subr.mxu0 %v875
        %5075 = vmatpush1.msra.mxu0 %v874
        %5076 = vmatprep.subr.mxu0 %v867
        %5077 = vmatpush1.msra.mxu0 %v866
        %5078 = vmatprep.subr.mxu0 %v859
        %5079 = vmatpush1.msra.mxu0 %v858
        %5080 = vmatprep.subr.mxu0 %v851
        %5081 = vmatpush1.msra.mxu0 %v850
        %5082 = vmatprep.subr.mxu0 %v843
        %5083 = vmatpush1.msra.mxu0 %v842
        %5084 = vmatprep.subr.mxu0 %v835
        %5085 = vmatpush1.msra.mxu0 %v834
        %5086 = vmatprep.subr.mxu0 %v827
        %5087 = vmatpush1.msra.mxu0 %v826
        %5088 = vmatprep.subr.mxu0 %v819
        %5089 = vmatpush1.msra.mxu0 %v818
        %5090 = vmatprep.subr.mxu0 %v811
        %5091 = vmatpush1.msra.mxu0 %v810
        %5092 = vmatprep.subr.mxu0 %v803
        %5093 = vmatpush1.msra.mxu0 %v802
        %5094 = vmatprep.subr.mxu0 %v795
        %5095 = vmatpush1.msra.mxu0 %v794
        %5096 = vmatprep.subr.mxu0 %v787
        %5097 = vmatpush1.msra.mxu0 %v786
        %5098 = vmatprep.subr.mxu0 %v779
        %5099 = vmatpush1.msra.mxu0 %v778
        %5100 = vmatprep.subr.mxu0 %v771
        %5101 = vmatpush1.msra.mxu0 %v770
        %5102 = vmatprep.subr.mxu0 %v1019
        %5103 = vmatpush2.msra.mxu0 %v1018
        %5104 = vmatprep.subr.mxu0 %v1011
        %5105 = vmatpush2.msra.mxu0 %v1010
        %5106 = vmatprep.subr.mxu0 %v1003
        %5107 = vmatpush2.msra.mxu0 %v1002
        %5108 = vmatprep.subr.mxu0 %v995
        %5109 = vmatpush2.msra.mxu0 %v994
        %5110 = vmatprep.subr.mxu0 %v987
        %5111 = vmatpush2.msra.mxu0 %v986
        %5112 = vmatprep.subr.mxu0 %v979
        %5113 = vmatpush2.msra.mxu0 %v978
        %5114 = vmatprep.subr.mxu0 %v971
        %5115 = vmatpush2.msra.mxu0 %v970
        %5116 = vmatprep.subr.mxu0 %v963
        %5117 = vmatpush2.msra.mxu0 %v962
        %5118 = vmatprep.subr.mxu0 %v955
        %5119 = vmatpush2.msra.mxu0 %v954
        %5120 = vmatprep.subr.mxu0 %v947
        %5121 = vmatpush2.msra.mxu0 %v946
        %5122 = vmatprep.subr.mxu0 %v939
        %5123 = vmatpush2.msra.mxu0 %v938
        %5124 = vmatprep.subr.mxu0 %v931
        %5125 = vmatpush2.msra.mxu0 %v930
        %5126 = vmatprep.subr.mxu0 %v923
        %5127 = vmatpush2.msra.mxu0 %v922
        %5128 = vmatprep.subr.mxu0 %v915
        %5129 = vmatpush2.msra.mxu0 %v914
        %5130 = vmatprep.subr.mxu0 %v907
        %5131 = vmatpush2.msra.mxu0 %v906
        %5132 = vmatprep.subr.mxu0 %v899
        %5133 = vmatpush2.msra.mxu0 %v898
        %5134 = vmatprep.mubr.f32.mxu0 %v4856
        %5135 = vmatmul.mubr.f32.gmra.mxu0 %v4855
        %v5136 = vpop.f32.mrf.mxu0
        %v5137 = vadd.f32 %v1749, %v5136
        %v5138 = vpop.f32.mrf.mxu0
        %v5139 = vadd.f32 %v1753, %v5138
        %5140 = vdwg.mxu0
        %v5141 = vxor.u32 %v4924, 2147483648
        %v5142 = vxor.u32 %v4926, 2147483648
        %v5143 = vmul.f32 %v5141, 1.442695
        %v5144 = vpow.pop %v5143
        %v5145 = vmul.f32 %v5142, 1.442695
        %v5146 = vpow.pop %v5145
        %v5147 = vadd.f32 %v5144, 1.0
        %v5148 = vadd.f32 %v5146, 1.0
        %v5149 = vrcp.pop %v5147
        %v5150 = vmul.f32 1.0, %v5149
        %v5151 = vrcp.pop %v5148
        %v5152 = vmul.f32 1.0, %v5151
        %v5153 = vxor.u32 %v4995, 2147483648
        %v5154 = vxor.u32 %v4997, 2147483648
        %v5155 = vmul.f32 %v5153, 1.442695
        %v5156 = vpow.pop %v5155
        %v5157 = vmul.f32 %v5154, 1.442695
        %v5158 = vpow.pop %v5157
        %v5159 = vadd.f32 %v5156, 1.0
        %v5160 = vadd.f32 %v5158, 1.0
        %v5161 = vrcp.pop %v5159
        %v5162 = vmul.f32 1.0, %v5161
        %v5163 = vrcp.pop %v5160
        %v5164 = vmul.f32 1.0, %v5163
        %v5165 = vtanh.pop %v5066
        %v5166 = vtanh.pop %v5068
        %v5167 = vxor.u32 %v5137, 2147483648
        %v5168 = vxor.u32 %v5139, 2147483648
        %v5169 = vmul.f32 %v5167, 1.442695
        %v5170 = vpow.pop %v5169
        %v5171 = vmul.f32 %v5168, 1.442695
        %v5172 = vpow.pop %v5171
        %v5173 = vadd.f32 %v5170, 1.0
        %v5174 = vadd.f32 %v5172, 1.0
        %v5175 = vrcp.pop %v5173
        %v5176 = vmul.f32 1.0, %v5175
        %v5177 = vrcp.pop %v5174
        %v5178 = vmul.f32 1.0, %v5177
        %v5179 = vmul.f32 %v5162, %v4851
        %v5180 = vmul.f32 %v5164, %v4852
        %v5181 = vmul.f32 %v5150, %v5165
        %v5182 = vmul.f32 %v5152, %v5166
        %v5183 = vadd.f32 %v5179, %v5181
        %v5184 = vadd.f32 %v5180, %v5182
        %v5185 = vtanh.pop %v5183
        %v5186 = vtanh.pop %v5184
        %v5187 = vmul.f32 %v5176, %v5185
        %v5188 = vmul.f32 %v5178, %v5186
        %5189 = vmatprep.subr.mxu0 0.0
        %5190 = vmatpush1.msra.mxu0 %v1035
        %5191 = vmatprep.subr.mxu0 0.0
        %5192 = vmatpush1.msra.mxu0 %v1034
        %5193 = vmatprep.subr.mxu0 0.0
        %5194 = vmatpush1.msra.mxu0 %v1033
        %5195 = vmatprep.subr.mxu0 0.0
        %5196 = vmatpush1.msra.mxu0 %v1032
        %5197 = vmatprep.subr.mxu0 0.0
        %5198 = vmatpush1.msra.mxu0 %v1031
        %5199 = vmatprep.subr.mxu0 0.0
        %5200 = vmatpush1.msra.mxu0 %v1030
        %5201 = vmatprep.subr.mxu0 0.0
        %5202 = vmatpush1.msra.mxu0 %v1029
        %5203 = vmatprep.subr.mxu0 0.0
        %5204 = vmatpush1.msra.mxu0 %v1028
        %5205 = vmatprep.subr.mxu0 0.0
        %5206 = vmatpush1.msra.mxu0 %v1027
        %5207 = vmatprep.subr.mxu0 0.0
        %5208 = vmatpush1.msra.mxu0 %v1026
        %5209 = vmatprep.subr.mxu0 0.0
        %5210 = vmatpush1.msra.mxu0 %v1025
        %5211 = vmatprep.subr.mxu0 0.0
        %5212 = vmatpush1.msra.mxu0 %v1024
        %5213 = vmatprep.subr.mxu0 0.0
        %5214 = vmatpush1.msra.mxu0 %v1023
        %5215 = vmatprep.subr.mxu0 0.0
        %5216 = vmatpush1.msra.mxu0 %v1022
        %5217 = vmatprep.subr.mxu0 0.0
        %5218 = vmatpush1.msra.mxu0 %v1021
        %5219 = vmatprep.subr.mxu0 0.0
        %5220 = vmatpush1.msra.mxu0 %v1020
        %5221 = vmatprep.subr.mxu0 0.0
        %5222 = vmatpush2.msra.mxu0 %v1051
        %5223 = vmatprep.subr.mxu0 0.0
        %5224 = vmatpush2.msra.mxu0 %v1050
        %5225 = vmatprep.subr.mxu0 0.0
        %5226 = vmatpush2.msra.mxu0 %v1049
        %5227 = vmatprep.subr.mxu0 0.0
        %5228 = vmatpush2.msra.mxu0 %v1048
        %5229 = vmatprep.subr.mxu0 0.0
        %5230 = vmatpush2.msra.mxu0 %v1047
        %5231 = vmatprep.subr.mxu0 0.0
        %5232 = vmatpush2.msra.mxu0 %v1046
        %5233 = vmatprep.subr.mxu0 0.0
        %5234 = vmatpush2.msra.mxu0 %v1045
        %5235 = vmatprep.subr.mxu0 0.0
        %5236 = vmatpush2.msra.mxu0 %v1044
        %5237 = vmatprep.subr.mxu0 0.0
        %5238 = vmatpush2.msra.mxu0 %v1043
        %5239 = vmatprep.subr.mxu0 0.0
        %5240 = vmatpush2.msra.mxu0 %v1042
        %5241 = vmatprep.subr.mxu0 0.0
        %5242 = vmatpush2.msra.mxu0 %v1041
        %5243 = vmatprep.subr.mxu0 0.0
        %5244 = vmatpush2.msra.mxu0 %v1040
        %5245 = vmatprep.subr.mxu0 0.0
        %5246 = vmatpush2.msra.mxu0 %v1039
        %5247 = vmatprep.subr.mxu0 0.0
        %5248 = vmatpush2.msra.mxu0 %v1038
        %5249 = vmatprep.subr.mxu0 0.0
        %5250 = vmatpush2.msra.mxu0 %v1037
        %5251 = vmatprep.subr.mxu0 0.0
        %5252 = vmatpush2.msra.mxu0 %v1036
        %5253 = vmatprep.mubr.f32.mxu0 %v5188
        %5254 = vmatmul.mubr.f32.gmra.mxu0 %v5187
        %v5255 = vpop.f32.mrf.mxu0
        %v5256 = vadd.f32 %v2098, %v5255
        %v5257 = vpop.f32.mrf.mxu0
        %5258 = vdwg.mxu0
        %s5259 = scalar_lea.vmem %s365, 24 [#allocation5]
        %5260 = vst [vmem:[%s5259] sm:$0xff] %v5256
        %5261 = vst [vmem:[#allocation2] sm:$0xff] %v4855
        %5262 = vst [vmem:[#allocation2 + $0x8] sm:$0xff] %v4856
        %5263 = vst [vmem:[#allocation3] sm:$0xff] %v4851
        %5264 = vst [vmem:[#allocation3 + $0x8] sm:$0xff] %v4852
        %s5265 = sand.u32 %s216, 1
        %s5266 = sand.u32 %s216, 1
        %s5267 = smul.addr %s5266, 32
        %s5268 = scalar_lea.vmem [#allocation5], %s5267
        // Predicated region
        $region95: #{lstm_prediction_forward.1} parent=85 // pred_check
          %p5269 = pneg %p226
        $region96: #{lstm_prediction_forward.1} parent=85 // pred_check_branch
          %5271 = sbr.rel (%p5269) target = $region98
        $region97: #{lstm_prediction_forward.1} parent=85 // pred_region
          %s5272 = smul.u32 4, %s24
          %s5273 = smul.addr %s5272, 2
          %s5274 = sadd.s32 %s23, %s5273
          %s5275 = smul.addr %s5274, 8
          %s5276 = scalar_lea.vmem %s8, %s5275
          // Predicated region
          $region99: #{lstm_prediction_forward.1} parent=97 // pred_check
            _
          $region100: #{lstm_prediction_forward.1} parent=97 // pred_check_branch
            %5278 = sbr.rel (0) target = $region102
          $region101: #{lstm_prediction_forward.1} parent=97 // pred_region
            // Predicated region
            $region103: #{lstm_prediction_forward.1} parent=101 // pred_check
              _
            $region104: #{lstm_prediction_forward.1} parent=101 // pred_check_branch
              %5280 = sbr.rel (0) target = $region106
            $region105: #{lstm_prediction_forward.1} parent=101 // pred_region
              // Predicated region
              $region118: #{lstm_prediction_forward.1} parent=105 // pred_check
                _
              $region119: #{lstm_prediction_forward.1} parent=105 // pred_check_branch
                %5302 = sbr.rel (0) target = $region121
              $region120: #{lstm_prediction_forward.1} parent=105 // pred_region
                loop: start=0, step=1, limit=1
                $region122: #{lstm_prediction_forward.1} parent=120 // loop_pre_header
                  _
                $region123: #{lstm_prediction_forward.1} parent=120 // loop_header
                  %s5304 = sphi 0, %s5308
                  %p5305 = scmp.ge.s32.totalorder %s5304, 1
                  %s5309 = sphi %s5268, %s5268
                  %s5310 = sphi %s5276, %s5276
                $region124: #{lstm_prediction_forward.1} parent=120 // loop_header_branch
                  %5307 = sbr.rel (%p5305) target = $region128
                $region125: #{lstm_prediction_forward.1} parent=120 // loop_body
                  %v5311 = vld [vmem:[%s5309] sm:$0xff]
                  %5312 = vst [vmem:[%s5310] sm:$0xff] %v5311
                  %v5313 = vld [vmem:[%s5309 + $0x8] sm:$0xff]
                  %5314 = vst [vmem:[%s5310 + $0x10] sm:$0xff] %v5313
                  %v5315 = vld [vmem:[%s5309 + $0x10] sm:$0xff]
                  %5316 = vst [vmem:[%s5310 + $0x20] sm:$0xff] %v5315
                  %v5317 = vld [vmem:[%s5309 + $0x18] sm:$0xff]
                  %5318 = vst [vmem:[%s5310 + $0x30] sm:$0xff] %v5317
                $region126: #{lstm_prediction_forward.1} parent=120 // loop_footer
                  %s5308 = sadd.s32 1, %s5304
                $region127: #{lstm_prediction_forward.1} parent=120 // loop_footer_branch
                  %5303 = sbr.rel target = $region123
                $region128: #{lstm_prediction_forward.1} parent=120 // loop_exit
                  _
              $region121: #{lstm_prediction_forward.1} parent=105 // pred_fallthru
                _
              // Predicated region
              $region129: #{lstm_prediction_forward.1} parent=105 // pred_check
                _
              $region130: #{lstm_prediction_forward.1} parent=105 // pred_check_branch
                %5320 = sbr.rel target = $region132
              $region131: #{lstm_prediction_forward.1} parent=105 // pred_region
                _
              $region132: #{lstm_prediction_forward.1} parent=105 // pred_fallthru
                _
            $region106: #{lstm_prediction_forward.1} parent=101 // pred_fallthru
              _
            // Predicated region
            $region107: #{lstm_prediction_forward.1} parent=101 // pred_check
              _
            $region108: #{lstm_prediction_forward.1} parent=101 // pred_check_branch
              %5282 = sbr.rel target = $region110
            $region109: #{lstm_prediction_forward.1} parent=101 // pred_region
              %s5284 = ssub.s32 256, 1
              loop: start=0, step=1, limit=1
              $region111: #{lstm_prediction_forward.1} parent=109 // loop_pre_header
                _
              $region112: #{lstm_prediction_forward.1} parent=109 // loop_header
                %s5286 = sphi 0, %s5290
                %p5287 = scmp.ge.s32.totalorder %s5286, 1
                %s5291 = sphi %s5268, %s5268
                %s5292 = sphi %s5276, %s5276
              $region113: #{lstm_prediction_forward.1} parent=109 // loop_header_branch
                %5289 = sbr.rel (%p5287) target = $region117
              $region114: #{lstm_prediction_forward.1} parent=109 // loop_body
                %v5293 = vld [vmem:[%s5291] sm:%s5284]
                %5294 = vst [vmem:[%s5292] sm:%s5284] %v5293
                %v5295 = vld [vmem:[%s5291 + $0x8] sm:%s5284]
                %5296 = vst [vmem:[%s5292 + $0x10] sm:%s5284] %v5295
                %v5297 = vld [vmem:[%s5291 + $0x10] sm:%s5284]
                %5298 = vst [vmem:[%s5292 + $0x20] sm:%s5284] %v5297
                %v5299 = vld [vmem:[%s5291 + $0x18] sm:%s5284]
                %5300 = vst [vmem:[%s5292 + $0x30] sm:%s5284] %v5299
              $region115: #{lstm_prediction_forward.1} parent=109 // loop_footer
                %s5290 = sadd.s32 1, %s5286
              $region116: #{lstm_prediction_forward.1} parent=109 // loop_footer_branch
                %5285 = sbr.rel target = $region112
              $region117: #{lstm_prediction_forward.1} parent=109 // loop_exit
                _
            $region110: #{lstm_prediction_forward.1} parent=101 // pred_fallthru
              _
          $region102: #{lstm_prediction_forward.1} parent=97 // pred_fallthru
            _
          %5321 = vnop
        $region98: #{lstm_prediction_forward.1} parent=85 // pred_fallthru
          _
      $region86: #{lstm_prediction_forward.1} parent=5 // pred_fallthru
        _
      %p5322 = scmp.le.s32.totalorder 2, %s14
      // Predicated region
      $region133: #{lstm_prediction_forward.1} parent=5 // pred_check
        %p5323 = pneg %p5322
      $region134: #{lstm_prediction_forward.1} parent=5 // pred_check_branch
        %5325 = sbr.rel (%p5323) target = $region136
      $region135: #{lstm_prediction_forward.1} parent=5 // pred_region
        %s5326 = ssub.s32 %s14, 2
        // Predicated region
        $region137: #{lstm_prediction_forward.1} parent=135 // pred_check
          %p5327 = pneg %p232
        $region138: #{lstm_prediction_forward.1} parent=135 // pred_check_branch
          %5329 = sbr.rel (%p5327) target = $region140
        $region139: #{lstm_prediction_forward.1} parent=135 // pred_region
          %s5330 = sand.u32 %s217, 1
          %s5331 = sand.u32 %s217, 1
          %s5332 = smul.addr %s5331, 32
          %s5333 = scalar_lea.vmem [#allocation5], %s5332
        $region140: #{lstm_prediction_forward.1} parent=135 // pred_fallthru
          _
      $region136: #{lstm_prediction_forward.1} parent=5 // pred_fallthru
        _
    $region6: #{lstm_prediction_forward.1} parent=1 // loop_footer
      %s18 = sadd.s32 1, %s14
    $region7: #{lstm_prediction_forward.1} parent=1 // loop_footer_branch
      %13 = sbr.rel target = $region3
    $region8: #{lstm_prediction_forward.1} parent=1 // loop_exit
      _

</llo_original>
